<compile_context>
chip_gen: v6e
topology: v6e:2x2x1
jax: 0.10.0
libtpu: 0.0.40
codegen_flags: <defaults>
</compile_context>

<pallas_src>
import functools

import jax
import jax.numpy as jnp
from jax.experimental import pallas as pl
from jax.experimental.pallas import tpu as pltpu

NEG_INF = -1e30        # finite "-inf" (avoids inf-inf -> nan in the online softmax)
LEAKY_SLOPE = 0.2      # GATConv default negative_slope
LANE = 128


def _round_up(x, m):
    return (x + m - 1) // m * m


def _gat_proj_kernel(x_ref, w_ref, mcat_ref, xs_ref, sc_ref):
    """Per node-row block: per-head source projection + fused attention-score projection."""
    x = x_ref[...]                                               # (TI, C_in) f32
    for h in range(w_ref.shape[0]):                              # H small & static -> unrolled
        xs_ref[h] = jnp.dot(x, w_ref[h], preferred_element_type=jnp.float32)
    # columns [0:H) = a_src, [H:2H) = a_dst, rest zero padding (lane-dense store)
    sc_ref[...] = jnp.dot(x, mcat_ref[...], preferred_element_type=jnp.float32)


def _gat_attn_kernel(cnt_ref, sc_ref, asrct_ref, xs_ref, bias_ref, alpha_ref,
                     o_ref, m_sc, l_sc, acc_sc):
    """Online-softmax attention aggregation; finalize applies bias + PReLU once."""
    j = pl.program_id(1)
    n_heads = asrct_ref.shape[0]

    @pl.when(j == 0)
    def _():
        m_sc[...] = jnp.full(m_sc.shape, NEG_INF, m_sc.dtype)
        l_sc[...] = jnp.zeros(l_sc.shape, l_sc.dtype)
        acc_sc[...] = jnp.zeros(acc_sc.shape, acc_sc.dtype)

    cnt = cnt_ref[...].astype(jnp.float32)                       # (TI, TJ) edge multiplicities
    valid = cnt > 0.0
    scores = sc_ref[...]                                         # (TI, LANE); cols [H:2H)=a_dst

    for h in range(n_heads):                                     # H is small & static -> unrolled
        s = scores[:, n_heads + h:n_heads + h + 1] + asrct_ref[h:h + 1, :]   # (TI,1)+(1,TJ)
        s = jnp.maximum(s, LEAKY_SLOPE * s)                      # LeakyReLU(0.2), slope<1
        s_msk = jnp.where(valid, s, NEG_INF)
        m_blk = jnp.max(s_msk, axis=-1, keepdims=True)           # (TI,1)
        m_prev = m_sc[h]
        m_new = jnp.maximum(m_prev, m_blk)
        corr = jnp.exp(m_prev - m_new)                           # (TI,1), <= 1
        # Clamp keeps exp<=1 everywhere (no overflow); cnt==0 zeroes out non-edges.
        # Duplicate edges weighted by multiplicity == torch_geometric scatter-softmax.
        p = cnt * jnp.exp(jnp.minimum(s - m_new, 0.0))           # (TI,TJ)
        l_sc[h] = corr * l_sc[h] + jnp.sum(p, axis=-1, keepdims=True)
        acc_sc[h] = corr * acc_sc[h] + jnp.dot(
            p, xs_ref[h], preferred_element_type=jnp.float32)
        m_sc[h] = m_new

    @pl.when(j == pl.num_programs(1) - 1)
    def _():
        for h in range(n_heads):
            l = l_sc[h]                                          # (TI,1); >=1 if node has edges
            inv = pl.reciprocal(jnp.maximum(l, 1.0), approx=False)
            out = acc_sc[h] * inv + bias_ref[h]                  # isolated nodes: acc == 0
            o_ref[h] = jnp.where(out > 0.0, out, alpha_ref[h] * out).astype(o_ref.dtype)


def lant_gat_forward(x, edge_index, w_src, w_dst, att_src, att_dst, bias, prelu_a,
                     *, heads, block_rows=128, block_cols=128):
    """x: [N, C_in] f32; edge_index: [2, E] int (row 0 = source j, row 1 = target i)."""
    n_nodes, c_in = x.shape
    feat = w_src.shape[0]                       # heads * out_channels
    n_heads = heads
    c_out = feat // n_heads
    assert c_out * n_heads == feat
    assert 2 * n_heads <= LANE
    c_pad = _round_up(c_out, LANE)              # lane-dense per-head channel width
    ti, tj = block_rows, block_cols
    n_pad = _round_up(n_nodes, max(ti, tj))

    f32 = jnp.float32
    x_p = jnp.zeros((n_pad, c_in), f32).at[:n_nodes].set(x.astype(f32))

    # Per-head source projection weights, padded to lane width: [H, C_in, c_pad]
    w_src_h = w_src.astype(f32).reshape(n_heads, c_out, c_in)
    w_dst_h = w_dst.astype(f32).reshape(n_heads, c_out, c_in)
    w_heads = jnp.zeros((n_heads, c_in, c_pad), f32).at[:, :, :c_out].set(
        jnp.transpose(w_src_h, (0, 2, 1)))

    # Fold attention vectors into the linear layers: a_src = x @ m_src, a_dst = x @ m_dst.
    att_s = att_src.astype(f32).reshape(n_heads, c_out)
    att_d = att_dst.astype(f32).reshape(n_heads, c_out)
    m_src = jnp.einsum("hc,hci->ih", att_s, w_src_h)             # [C_in, H]
    m_dst = jnp.einsum("hc,hci->ih", att_d, w_dst_h)             # [C_in, H]
    m_cat = (jnp.zeros((c_in, LANE), f32)
             .at[:, :n_heads].set(m_src)
             .at[:, n_heads:2 * n_heads].set(m_dst))

    n_i = n_pad // ti
    n_j = n_pad // tj
    vmem_cap = 32 * 1024 * 1024                 # safe on v5e/v6e/v7x

    # ---- Stage 1: fused projections ----
    xs, scores = pl.pallas_call(
        _gat_proj_kernel,
        out_shape=(jax.ShapeDtypeStruct((n_heads, n_pad, c_pad), f32),
                   jax.ShapeDtypeStruct((n_pad, LANE), f32)),
        grid_spec=pltpu.PrefetchScalarGridSpec(
            num_scalar_prefetch=0,
            grid=(n_i,),
            in_specs=[
                pl.BlockSpec((ti, c_in), lambda i: (i, 0)),
                pl.BlockSpec((n_heads, c_in, c_pad), lambda i: (0, 0, 0)),   # resident
                pl.BlockSpec((c_in, LANE), lambda i: (0, 0)),                # resident
            ],
            out_specs=(
                pl.BlockSpec((n_heads, ti, c_pad), lambda i: (0, i, 0)),
                pl.BlockSpec((ti, LANE), lambda i: (i, 0)),
            ),
        ),
        compiler_params=pltpu.CompilerParams(
            dimension_semantics=("parallel",), vmem_limit_bytes=vmem_cap),
    )(x_p, w_heads, m_cat)

    a_src_t = scores[:, :n_heads].T                              # [H, n_pad]

    # Dense edge-multiplicity matrix; bf16 is exact for small integer counts.
    src = edge_index[0].astype(jnp.int32)
    dst = edge_index[1].astype(jnp.int32)
    cnt = (jnp.zeros((n_pad, n_pad), f32).at[dst, src].add(1.0)).astype(jnp.bfloat16)

    bias_p = jnp.zeros((n_heads, 1, c_pad), f32).at[:, 0, :c_out].set(
        bias.astype(f32).reshape(n_heads, c_out))
    alpha_p = jnp.zeros((n_heads, 1, c_pad), f32).at[:, 0, :c_out].set(
        prelu_a.astype(f32).reshape(n_heads, c_out))

    # ---- Stage 2: tiled attention aggregation ----
    y = pl.pallas_call(
        _gat_attn_kernel,
        out_shape=jax.ShapeDtypeStruct((n_heads, n_pad, c_pad), f32),
        grid_spec=pltpu.PrefetchScalarGridSpec(
            num_scalar_prefetch=0,
            grid=(n_i, n_j),
            in_specs=[
                pl.BlockSpec((ti, tj), lambda i, j: (i, j)),                 # counts (bf16)
                pl.BlockSpec((ti, LANE), lambda i, j: (i, 0)),               # dst scores slab
                pl.BlockSpec((n_heads, tj), lambda i, j: (0, j)),            # a_src^T
                pl.BlockSpec((n_heads, tj, c_pad), lambda i, j: (0, j, 0)),  # x_src proj
                pl.BlockSpec((n_heads, 1, c_pad), lambda i, j: (0, 0, 0)),   # bias (resident)
                pl.BlockSpec((n_heads, 1, c_pad), lambda i, j: (0, 0, 0)),   # prelu (resident)
            ],
            out_specs=pl.BlockSpec((n_heads, ti, c_pad), lambda i, j: (0, i, 0)),
            scratch_shapes=[
                pltpu.VMEM((n_heads, ti, 1), f32),        # running max
                pltpu.VMEM((n_heads, ti, 1), f32),        # running denominator
                pltpu.VMEM((n_heads, ti, c_pad), f32),    # running numerator
            ],
        ),
        compiler_params=pltpu.CompilerParams(
            dimension_semantics=("parallel", "arbitrary"), vmem_limit_bytes=vmem_cap),
    )(cnt, scores, a_src_t, xs, bias_p, alpha_p)

    # [H, n_pad, c_pad] -> [N, H*c_out]: drop padding, concat heads (host-side layout glue).
    return jnp.transpose(y[:, :n_nodes, :c_out], (1, 0, 2)).reshape(n_nodes, n_heads * c_out)


if __name__ == "__main__":
    N, C_IN, HIDDEN, HEADS, E = 24, 8, 16, 2, 64
    C_OUT = HIDDEN                       # per-head output channels
    FEAT = HIDDEN * HEADS                # concatenated output width

    key = jax.random.PRNGKey(0)
    kx, ks, kd, k1, k2, k3, k4, k5 = jax.random.split(key, 8)

    x = jax.random.normal(kx, (N, C_IN), dtype=jnp.float32)
    edge_index = jnp.stack([
        jax.random.randint(ks, (E,), 0, N, dtype=jnp.int32),    # source j
        jax.random.randint(kd, (E,), 0, N, dtype=jnp.int32),    # target i
    ])

    w_src = 0.3 * jax.random.normal(k1, (FEAT, C_IN), dtype=jnp.float32)   # lin_src (no bias)
    w_dst = 0.3 * jax.random.normal(k2, (FEAT, C_IN), dtype=jnp.float32)   # lin_dst (no bias)
    att_src = 0.3 * jax.random.normal(k3, (1, HEADS, C_OUT), dtype=jnp.float32)
    att_dst = 0.3 * jax.random.normal(k4, (1, HEADS, C_OUT), dtype=jnp.float32)
    bias = 0.1 * jax.random.normal(k5, (FEAT,), dtype=jnp.float32)         # GATConv bias
    prelu_a = jnp.full((FEAT,), 0.25, dtype=jnp.float32)                   # PReLU default init

    fwd = jax.jit(functools.partial(lant_gat_forward, heads=HEADS))
    y = fwd(x, edge_index, w_src, w_dst, att_src, att_dst, bias, prelu_a)
    jax.block_until_ready(y)

    # ---- pure-JAX reference (edge-scatter form, identical to torch_geometric GATConv) ----
    src, dst = edge_index[0], edge_index[1]
    xs_full = (x @ w_src.T).reshape(N, HEADS, C_OUT)
    xd_full = (x @ w_dst.T).reshape(N, HEADS, C_OUT)
    a_src = (xs_full * att_src).sum(-1)                          # [N, H]
    a_dst = (xd_full * att_dst).sum(-1)                          # [N, H]
    e = a_src[src] + a_dst[dst]                                  # [E, H]
    e = jnp.where(e > 0, e, 0.2 * e)                             # LeakyReLU(0.2)
    m = jnp.full((N, HEADS), -jnp.inf).at[dst].max(e)
    p = jnp.exp(e - m[dst])
    denom = jnp.zeros((N, HEADS)).at[dst].add(p)
    coef = p / denom[dst]
    msg = xs_full[src] * coef[:, :, None]                        # [E, H, C_OUT]
    agg = jnp.zeros((N, HEADS, C_OUT)).at[dst].add(msg)
    ref = agg.reshape(N, FEAT) + bias
    ref = jnp.where(ref > 0, ref, prelu_a[None, :] * ref)

    max_diff = jnp.max(jnp.abs(y - ref))
    assert jnp.allclose(y, ref, atol=1e-4, rtol=1e-4), f"mismatch, max abs diff={max_diff}"
    print("KERNEL_OK")
</pallas_src>

<mosaic_0001>
module attributes {stable_mosaic.version = 11 : i64} {
  func.func private @main(%arg0: i32) attributes {dimension_semantics = [#tpu.dimension_semantics<core_parallel>], iteration_bounds = array<i64: 2>, tpu.core_type = #tpu.core_type<sc_scalar_subcore>, window_params = []} {
    return
  }
}

module attributes {stable_mosaic.version = 11 : i64} {
  func.func private @main(%arg0: i32) attributes {dimension_semantics = [#tpu.dimension_semantics<core_parallel>], iteration_bounds = array<i64: 2>, tpu.core_type = #tpu.core_type<sc_scalar_subcore>, window_params = []} {
    return
  }
}

module attributes {stable_mosaic.version = 11 : i64} {
  func.func @_gat_proj_kernel(%arg0: i32, %arg1: memref<128x8xf32, #tpu.memory_space<vmem>>, %arg2: memref<2x8x128xf32, #tpu.memory_space<vmem>>, %arg3: memref<8x128xf32, #tpu.memory_space<vmem>>, %arg4: memref<2x128x128xf32, #tpu.memory_space<vmem>>, %arg5: memref<128x128xf32, #tpu.memory_space<vmem>>) attributes {dimension_semantics = [#tpu.dimension_semantics<parallel>], iteration_bounds = array<i64: 1>, scalar_prefetch = 0 : i64, scratch_operands = 0 : i64, tpu.core_type = #tpu.core_type<tc>, window_params = [{transform_indices = @transform_0, window_bounds = array<i64: 128, 8>}, {pipeline_mode = #tpu.pipeline_mode<synchronous>, transform_indices = @transform_1, window_bounds = array<i64: 2, 8, 128>}, {pipeline_mode = #tpu.pipeline_mode<synchronous>, transform_indices = @transform_2, window_bounds = array<i64: 8, 128>}, {transform_indices = @transform_3, window_bounds = array<i64: 2, 128, 128>}, {transform_indices = @transform_4, window_bounds = array<i64: 128, 128>}]} {
    %c0 = arith.constant 0 : index
    %c0_0 = arith.constant 0 : index
    %0 = vector.load %arg1[%c0, %c0_0] : memref<128x8xf32, #tpu.memory_space<vmem>>, vector<128x8xf32>
    %c0_1 = arith.constant 0 : index
    %c0_2 = arith.constant 0 : index
    %c0_3 = arith.constant 0 : index
    %1 = vector.load %arg2[%c0_1, %c0_2, %c0_3] : memref<2x8x128xf32, #tpu.memory_space<vmem>>, vector<1x8x128xf32>
    %2 = vector.shape_cast %1 : vector<1x8x128xf32> to vector<8x128xf32>
    %cst = arith.constant dense<0.000000e+00> : vector<128x128xf32>
    %3 = tpu.matmul %0, %2, %cst {dimension_numbers = #tpu.dot_dimension_numbers<[1], [0], [0], [1], [0, 0, 1, 1], [], []>} : vector<128x8xf32>, vector<8x128xf32>, vector<128x128xf32> -> vector<128x128xf32>
    %c0_4 = arith.constant 0 : index
    %c0_5 = arith.constant 0 : index
    %c0_6 = arith.constant 0 : index
    %4 = vector.load %arg4[%c0_4, %c0_5, %c0_6] : memref<2x128x128xf32, #tpu.memory_space<vmem>>, vector<1x128x128xf32>
    %5 = vector.shape_cast %4 : vector<1x128x128xf32> to vector<128x128xf32>
    %6 = vector.shape_cast %3 : vector<128x128xf32> to vector<1x128x128xf32>
    tpu.vector_store %arg4[%c0_4, %c0_5, %c0_6], %6 {strides = array<i32>} : memref<2x128x128xf32, #tpu.memory_space<vmem>>, vector<1x128x128xf32>,
    %c1 = arith.constant 1 : index
    %c0_7 = arith.constant 0 : index
    %c0_8 = arith.constant 0 : index
    %7 = vector.load %arg2[%c1, %c0_7, %c0_8] : memref<2x8x128xf32, #tpu.memory_space<vmem>>, vector<1x8x128xf32>
    %8 = vector.shape_cast %7 : vector<1x8x128xf32> to vector<8x128xf32>
    %cst_9 = arith.constant dense<0.000000e+00> : vector<128x128xf32>
    %9 = tpu.matmul %0, %8, %cst_9 {dimension_numbers = #tpu.dot_dimension_numbers<[1], [0], [0], [1], [0, 0, 1, 1], [], []>} : vector<128x8xf32>, vector<8x128xf32>, vector<128x128xf32> -> vector<128x128xf32>
    %c1_10 = arith.constant 1 : index
    %c0_11 = arith.constant 0 : index
    %c0_12 = arith.constant 0 : index
    %10 = vector.load %arg4[%c1_10, %c0_11, %c0_12] : memref<2x128x128xf32, #tpu.memory_space<vmem>>, vector<1x128x128xf32>
    %11 = vector.shape_cast %10 : vector<1x128x128xf32> to vector<128x128xf32>
    %12 = vector.shape_cast %9 : vector<128x128xf32> to vector<1x128x128xf32>
    tpu.vector_store %arg4[%c1_10, %c0_11, %c0_12], %12 {strides = array<i32>} : memref<2x128x128xf32, #tpu.memory_space<vmem>>, vector<1x128x128xf32>,
    %c0_13 = arith.constant 0 : index
    %c0_14 = arith.constant 0 : index
    %13 = vector.load %arg3[%c0_13, %c0_14] : memref<8x128xf32, #tpu.memory_space<vmem>>, vector<8x128xf32>
    %cst_15 = arith.constant dense<0.000000e+00> : vector<128x128xf32>
    %14 = tpu.matmul %0, %13, %cst_15 {dimension_numbers = #tpu.dot_dimension_numbers<[1], [0], [0], [1], [0, 0, 1, 1], [], []>} : vector<128x8xf32>, vector<8x128xf32>, vector<128x128xf32> -> vector<128x128xf32>
    %c0_16 = arith.constant 0 : index
    %c0_17 = arith.constant 0 : index
    %15 = vector.load %arg5[%c0_16, %c0_17] : memref<128x128xf32, #tpu.memory_space<vmem>>, vector<128x128xf32>
    tpu.vector_store %arg5[%c0_16, %c0_17], %14 {strides = array<i32>} : memref<128x128xf32, #tpu.memory_space<vmem>>, vector<128x128xf32>,
    return
  }
  func.func @transform_0(%arg0: i32) -> (i32, i32) {
    %c0_i32 = arith.constant 0 : i32
    %c0_i32_0 = arith.constant 0 : i32
    return %arg0, %c0_i32 : i32, i32
  }
  func.func @transform_1(%arg0: i32) -> (i32, i32, i32) {
    %c0_i32 = arith.constant 0 : i32
    %c0_i32_0 = arith.constant 0 : i32
    %c0_i32_1 = arith.constant 0 : i32
    %c0_i32_2 = arith.constant 0 : i32
    return %c0_i32, %c0_i32_0, %c0_i32_1 : i32, i32, i32
  }
  func.func @transform_2(%arg0: i32) -> (i32, i32) {
    %c0_i32 = arith.constant 0 : i32
    %c0_i32_0 = arith.constant 0 : i32
    %c0_i32_1 = arith.constant 0 : i32
    return %c0_i32, %c0_i32_0 : i32, i32
  }
  func.func @transform_3(%arg0: i32) -> (i32, i32, i32) {
    %c0_i32 = arith.constant 0 : i32
    %c0_i32_0 = arith.constant 0 : i32
    %c0_i32_1 = arith.constant 0 : i32
    return %c0_i32, %arg0, %c0_i32_0 : i32, i32, i32
  }
  func.func @transform_4(%arg0: i32) -> (i32, i32) {
    %c0_i32 = arith.constant 0 : i32
    %c0_i32_0 = arith.constant 0 : i32
    return %arg0, %c0_i32 : i32, i32
  }
}

module attributes {stable_mosaic.version = 11 : i64} {
  func.func @_gat_attn_kernel(%arg0: i32, %arg1: i32, %arg2: memref<128x128xbf16, #tpu.memory_space<vmem>>, %arg3: memref<128x128xf32, #tpu.memory_space<vmem>>, %arg4: memref<2x128xf32, #tpu.memory_space<vmem>>, %arg5: memref<2x128x128xf32, #tpu.memory_space<vmem>>, %arg6: memref<2x1x128xf32, #tpu.memory_space<vmem>>, %arg7: memref<2x1x128xf32, #tpu.memory_space<vmem>>, %arg8: memref<2x128x128xf32, #tpu.memory_space<vmem>>, %arg9: memref<2x128x1xf32, #tpu.memory_space<vmem>>, %arg10: memref<2x128x1xf32, #tpu.memory_space<vmem>>, %arg11: memref<2x128x128xf32, #tpu.memory_space<vmem>>) attributes {dimension_semantics = [#tpu.dimension_semantics<parallel>, #tpu.dimension_semantics<arbitrary>], iteration_bounds = array<i64: 1, 1>, scalar_prefetch = 0 : i64, scratch_operands = 3 : i64, tpu.core_type = #tpu.core_type<tc>, window_params = [{transform_indices = @transform_0, window_bounds = array<i64: 128, 128>}, {transform_indices = @transform_1, window_bounds = array<i64: 128, 128>}, {transform_indices = @transform_2, window_bounds = array<i64: 2, 128>}, {transform_indices = @transform_3, window_bounds = array<i64: 2, 128, 128>}, {pipeline_mode = #tpu.pipeline_mode<synchronous>, transform_indices = @transform_4, window_bounds = array<i64: 2, 1, 128>}, {pipeline_mode = #tpu.pipeline_mode<synchronous>, transform_indices = @transform_5, window_bounds = array<i64: 2, 1, 128>}, {transform_indices = @transform_6, window_bounds = array<i64: 2, 128, 128>}]} {
    %c0_i32 = arith.constant 0 : i32
    %0 = arith.cmpi eq, %arg1, %c0_i32 : i32
    %1 = arith.extui %0 : i1 to i32
    %c0_i32_0 = arith.constant 0 : i32
    %2 = arith.cmpi ne, %1, %c0_i32_0 : i32
    scf.if %2 {
      %cst_63 = arith.constant -1.000000e+30 : f32
      %103 = vector.broadcast %cst_63 : f32 to vector<2x128x1xf32>
      %c0_64 = arith.constant 0 : index
      %c0_65 = arith.constant 0 : index
      %c0_66 = arith.constant 0 : index
      %104 = vector.load %arg9[%c0_64, %c0_65, %c0_66] : memref<2x128x1xf32, #tpu.memory_space<vmem>>, vector<2x128x1xf32>
      tpu.vector_store %arg9[%c0_64, %c0_65, %c0_66], %103 {strides = array<i32>} : memref<2x128x1xf32, #tpu.memory_space<vmem>>, vector<2x128x1xf32>,
      %cst_67 = arith.constant 0.000000e+00 : f32
      %105 = vector.broadcast %cst_67 : f32 to vector<2x128x1xf32>
      %c0_68 = arith.constant 0 : index
      %c0_69 = arith.constant 0 : index
      %c0_70 = arith.constant 0 : index
      %106 = vector.load %arg10[%c0_68, %c0_69, %c0_70] : memref<2x128x1xf32, #tpu.memory_space<vmem>>, vector<2x128x1xf32>
      tpu.vector_store %arg10[%c0_68, %c0_69, %c0_70], %105 {strides = array<i32>} : memref<2x128x1xf32, #tpu.memory_space<vmem>>, vector<2x128x1xf32>,
      %cst_71 = arith.constant 0.000000e+00 : f32
      %107 = vector.broadcast %cst_71 : f32 to vector<2x128x128xf32>
      %c0_72 = arith.constant 0 : index
      %c0_73 = arith.constant 0 : index
      %c0_74 = arith.constant 0 : index
      %108 = vector.load %arg11[%c0_72, %c0_73, %c0_74] : memref<2x128x128xf32, #tpu.memory_space<vmem>>, vector<2x128x128xf32>
      tpu.vector_store %arg11[%c0_72, %c0_73, %c0_74], %107 {strides = array<i32>} : memref<2x128x128xf32, #tpu.memory_space<vmem>>, vector<2x128x128xf32>,
    } else {
    }
    %c0 = arith.constant 0 : index
    %c0_1 = arith.constant 0 : index
    %3 = vector.load %arg2[%c0, %c0_1] : memref<128x128xbf16, #tpu.memory_space<vmem>>, vector<128x128xbf16>
    %4 = arith.extf %3 : vector<128x128xbf16> to vector<128x128xf32>
    %cst = arith.constant 0.000000e+00 : f32
    %5 = vector.broadcast %cst : f32 to vector<128x128xf32>
    %6 = arith.cmpf ogt, %4, %5 : vector<128x128xf32>
    %c0_2 = arith.constant 0 : index
    %c0_3 = arith.constant 0 : index
    %7 = vector.load %arg3[%c0_2, %c0_3] : memref<128x128xf32, #tpu.memory_space<vmem>>, vector<128x128xf32>
    %8 = vector.extract_strided_slice %7 {offsets = [0, 2], sizes = [128, 1], strides = [1, 1]} : vector<128x128xf32> to vector<128x1xf32>
    %c0_4 = arith.constant 0 : index
    %c0_5 = arith.constant 0 : index
    %9 = vector.load %arg4[%c0_4, %c0_5] : memref<2x128xf32, #tpu.memory_space<vmem>>, vector<1x128xf32>
    %10 = vector.broadcast %8 : vector<128x1xf32> to vector<128x128xf32>
    %11 = vector.broadcast %9 : vector<1x128xf32> to vector<128x128xf32>
    %12 = arith.addf %10, %11 : vector<128x128xf32>
    %cst_6 = arith.constant 2.000000e-01 : f32
    %13 = vector.broadcast %cst_6 : f32 to vector<128x128xf32>
    %14 = arith.mulf %13, %12 : vector<128x128xf32>
    %15 = arith.maximumf %12, %14 : vector<128x128xf32>
    %cst_7 = arith.constant -1.000000e+30 : f32
    %16 = vector.broadcast %cst_7 : f32 to vector<128x128xf32>
    %17 = arith.select %6, %15, %16 : vector<128x128xi1>, vector<128x128xf32>
    %cst_8 = arith.constant dense<0xFF800000> : vector<128xf32>
    %18 = vector.multi_reduction <maximumf>, %17, %cst_8 [1] : vector<128x128xf32> to vector<128xf32>
    %19 = vector.shape_cast %18 : vector<128xf32> to vector<128x1xf32>
    %c0_9 = arith.constant 0 : index
    %c0_10 = arith.constant 0 : index
    %c0_11 = arith.constant 0 : index
    %20 = vector.load %arg9[%c0_9, %c0_10, %c0_11] : memref<2x128x1xf32, #tpu.memory_space<vmem>>, vector<1x128x1xf32>
    %21 = vector.shape_cast %20 : vector<1x128x1xf32> to vector<128x1xf32>
    %22 = arith.maximumf %21, %19 : vector<128x1xf32>
    %23 = arith.subf %21, %22 : vector<128x1xf32>
    %24 = math.exp %23 : vector<128x1xf32>
    %25 = vector.broadcast %22 : vector<128x1xf32> to vector<128x128xf32>
    %26 = arith.subf %15, %25 : vector<128x128xf32>
    %cst_12 = arith.constant 0.000000e+00 : f32
    %27 = vector.broadcast %cst_12 : f32 to vector<128x128xf32>
    %28 = arith.minimumf %26, %27 : vector<128x128xf32>
    %29 = math.exp %28 : vector<128x128xf32>
    %30 = arith.mulf %4, %29 : vector<128x128xf32>
    %c0_13 = arith.constant 0 : index
    %c0_14 = arith.constant 0 : index
    %c0_15 = arith.constant 0 : index
    %31 = vector.load %arg10[%c0_13, %c0_14, %c0_15] : memref<2x128x1xf32, #tpu.memory_space<vmem>>, vector<1x128x1xf32>
    %32 = vector.shape_cast %31 : vector<1x128x1xf32> to vector<128x1xf32>
    %33 = arith.mulf %24, %32 : vector<128x1xf32>
    %cst_16 = arith.constant dense<0.000000e+00> : vector<128xf32>
    %34 = vector.multi_reduction <add>, %30, %cst_16 [1] : vector<128x128xf32> to vector<128xf32>
    %35 = vector.shape_cast %34 : vector<128xf32> to vector<128x1xf32>
    %36 = arith.addf %33, %35 : vector<128x1xf32>
    %c0_17 = arith.constant 0 : index
    %c0_18 = arith.constant 0 : index
    %c0_19 = arith.constant 0 : index
    %37 = vector.load %arg10[%c0_17, %c0_18, %c0_19] : memref<2x128x1xf32, #tpu.memory_space<vmem>>, vector<1x128x1xf32>
    %38 = vector.shape_cast %37 : vector<1x128x1xf32> to vector<128x1xf32>
    %39 = vector.shape_cast %36 : vector<128x1xf32> to vector<1x128x1xf32>
    tpu.vector_store %arg10[%c0_17, %c0_18, %c0_19], %39 {strides = array<i32>} : memref<2x128x1xf32, #tpu.memory_space<vmem>>, vector<1x128x1xf32>,
    %c0_20 = arith.constant 0 : index
    %c0_21 = arith.constant 0 : index
    %c0_22 = arith.constant 0 : index
    %40 = vector.load %arg11[%c0_20, %c0_21, %c0_22] : memref<2x128x128xf32, #tpu.memory_space<vmem>>, vector<1x128x128xf32>
    %41 = vector.shape_cast %40 : vector<1x128x128xf32> to vector<128x128xf32>
    %42 = vector.broadcast %24 : vector<128x1xf32> to vector<128x128xf32>
    %43 = arith.mulf %42, %41 : vector<128x128xf32>
    %c0_23 = arith.constant 0 : index
    %c0_24 = arith.constant 0 : index
    %c0_25 = arith.constant 0 : index
    %44 = vector.load %arg5[%c0_23, %c0_24, %c0_25] : memref<2x128x128xf32, #tpu.memory_space<vmem>>, vector<1x128x128xf32>
    %45 = vector.shape_cast %44 : vector<1x128x128xf32> to vector<128x128xf32>
    %cst_26 = arith.constant dense<0.000000e+00> : vector<128x128xf32>
    %46 = tpu.matmul %30, %45, %cst_26 {dimension_numbers = #tpu.dot_dimension_numbers<[1], [0], [0], [1], [0, 0, 1, 1], [], []>} : vector<128x128xf32>, vector<128x128xf32>, vector<128x128xf32> -> vector<128x128xf32>
    %47 = arith.addf %43, %46 : vector<128x128xf32>
    %c0_27 = arith.constant 0 : index
    %c0_28 = arith.constant 0 : index
    %c0_29 = arith.constant 0 : index
    %48 = vector.load %arg11[%c0_27, %c0_28, %c0_29] : memref<2x128x128xf32, #tpu.memory_space<vmem>>, vector<1x128x128xf32>
    %49 = vector.shape_cast %48 : vector<1x128x128xf32> to vector<128x128xf32>
    %50 = vector.shape_cast %47 : vector<128x128xf32> to vector<1x128x128xf32>
    tpu.vector_store %arg11[%c0_27, %c0_28, %c0_29], %50 {strides = array<i32>} : memref<2x128x128xf32, #tpu.memory_space<vmem>>, vector<1x128x128xf32>,
    %c0_30 = arith.constant 0 : index
    %c0_31 = arith.constant 0 : index
    %c0_32 = arith.constant 0 : index
    %51 = vector.load %arg9[%c0_30, %c0_31, %c0_32] : memref<2x128x1xf32, #tpu.memory_space<vmem>>, vector<1x128x1xf32>
    %52 = vector.shape_cast %51 : vector<1x128x1xf32> to vector<128x1xf32>
    %53 = vector.shape_cast %22 : vector<128x1xf32> to vector<1x128x1xf32>
    tpu.vector_store %arg9[%c0_30, %c0_31, %c0_32], %53 {strides = array<i32>} : memref<2x128x1xf32, #tpu.memory_space<vmem>>, vector<1x128x1xf32>,
    %54 = vector.extract_strided_slice %7 {offsets = [0, 3], sizes = [128, 1], strides = [1, 1]} : vector<128x128xf32> to vector<128x1xf32>
    %c1 = arith.constant 1 : index
    %c0_33 = arith.constant 0 : index
    %55 = vector.load %arg4[%c1, %c0_33] : memref<2x128xf32, #tpu.memory_space<vmem>>, vector<1x128xf32>
    %56 = vector.broadcast %54 : vector<128x1xf32> to vector<128x128xf32>
    %57 = vector.broadcast %55 : vector<1x128xf32> to vector<128x128xf32>
    %58 = arith.addf %56, %57 : vector<128x128xf32>
    %cst_34 = arith.constant 2.000000e-01 : f32
    %59 = vector.broadcast %cst_34 : f32 to vector<128x128xf32>
    %60 = arith.mulf %59, %58 : vector<128x128xf32>
    %61 = arith.maximumf %58, %60 : vector<128x128xf32>
    %cst_35 = arith.constant -1.000000e+30 : f32
    %62 = vector.broadcast %cst_35 : f32 to vector<128x128xf32>
    %63 = arith.select %6, %61, %62 : vector<128x128xi1>, vector<128x128xf32>
    %cst_36 = arith.constant dense<0xFF800000> : vector<128xf32>
    %64 = vector.multi_reduction <maximumf>, %63, %cst_36 [1] : vector<128x128xf32> to vector<128xf32>
    %65 = vector.shape_cast %64 : vector<128xf32> to vector<128x1xf32>
    %c1_37 = arith.constant 1 : index
    %c0_38 = arith.constant 0 : index
    %c0_39 = arith.constant 0 : index
    %66 = vector.load %arg9[%c1_37, %c0_38, %c0_39] : memref<2x128x1xf32, #tpu.memory_space<vmem>>, vector<1x128x1xf32>
    %67 = vector.shape_cast %66 : vector<1x128x1xf32> to vector<128x1xf32>
    %68 = arith.maximumf %67, %65 : vector<128x1xf32>
    %69 = arith.subf %67, %68 : vector<128x1xf32>
    %70 = math.exp %69 : vector<128x1xf32>
    %71 = vector.broadcast %68 : vector<128x1xf32> to vector<128x128xf32>
    %72 = arith.subf %61, %71 : vector<128x128xf32>
    %cst_40 = arith.constant 0.000000e+00 : f32
    %73 = vector.broadcast %cst_40 : f32 to vector<128x128xf32>
    %74 = arith.minimumf %72, %73 : vector<128x128xf32>
    %75 = math.exp %74 : vector<128x128xf32>
    %76 = arith.mulf %4, %75 : vector<128x128xf32>
    %c1_41 = arith.constant 1 : index
    %c0_42 = arith.constant 0 : index
    %c0_43 = arith.constant 0 : index
    %77 = vector.load %arg10[%c1_41, %c0_42, %c0_43] : memref<2x128x1xf32, #tpu.memory_space<vmem>>, vector<1x128x1xf32>
    %78 = vector.shape_cast %77 : vector<1x128x1xf32> to vector<128x1xf32>
    %79 = arith.mulf %70, %78 : vector<128x1xf32>
    %cst_44 = arith.constant dense<0.000000e+00> : vector<128xf32>
    %80 = vector.multi_reduction <add>, %76, %cst_44 [1] : vector<128x128xf32> to vector<128xf32>
    %81 = vector.shape_cast %80 : vector<128xf32> to vector<128x1xf32>
    %82 = arith.addf %79, %81 : vector<128x1xf32>
    %c1_45 = arith.constant 1 : index
    %c0_46 = arith.constant 0 : index
    %c0_47 = arith.constant 0 : index
    %83 = vector.load %arg10[%c1_45, %c0_46, %c0_47] : memref<2x128x1xf32, #tpu.memory_space<vmem>>, vector<1x128x1xf32>
    %84 = vector.shape_cast %83 : vector<1x128x1xf32> to vector<128x1xf32>
    %85 = vector.shape_cast %82 : vector<128x1xf32> to vector<1x128x1xf32>
    tpu.vector_store %arg10[%c1_45, %c0_46, %c0_47], %85 {strides = array<i32>} : memref<2x128x1xf32, #tpu.memory_space<vmem>>, vector<1x128x1xf32>,
    %c1_48 = arith.constant 1 : index
    %c0_49 = arith.constant 0 : index
    %c0_50 = arith.constant 0 : index
    %86 = vector.load %arg11[%c1_48, %c0_49, %c0_50] : memref<2x128x128xf32, #tpu.memory_space<vmem>>, vector<1x128x128xf32>
    %87 = vector.shape_cast %86 : vector<1x128x128xf32> to vector<128x128xf32>
    %88 = vector.broadcast %70 : vector<128x1xf32> to vector<128x128xf32>
    %89 = arith.mulf %88, %87 : vector<128x128xf32>
    %c1_51 = arith.constant 1 : index
    %c0_52 = arith.constant 0 : index
    %c0_53 = arith.constant 0 : index
    %90 = vector.load %arg5[%c1_51, %c0_52, %c0_53] : memref<2x128x128xf32, #tpu.memory_space<vmem>>, vector<1x128x128xf32>
    %91 = vector.shape_cast %90 : vector<1x128x128xf32> to vector<128x128xf32>
    %cst_54 = arith.constant dense<0.000000e+00> : vector<128x128xf32>
    %92 = tpu.matmul %76, %91, %cst_54 {dimension_numbers = #tpu.dot_dimension_numbers<[1], [0], [0], [1], [0, 0, 1, 1], [], []>} : vector<128x128xf32>, vector<128x128xf32>, vector<128x128xf32> -> vector<128x128xf32>
    %93 = arith.addf %89, %92 : vector<128x128xf32>
    %c1_55 = arith.constant 1 : index
    %c0_56 = arith.constant 0 : index
    %c0_57 = arith.constant 0 : index
    %94 = vector.load %arg11[%c1_55, %c0_56, %c0_57] : memref<2x128x128xf32, #tpu.memory_space<vmem>>, vector<1x128x128xf32>
    %95 = vector.shape_cast %94 : vector<1x128x128xf32> to vector<128x128xf32>
    %96 = vector.shape_cast %93 : vector<128x128xf32> to vector<1x128x128xf32>
    tpu.vector_store %arg11[%c1_55, %c0_56, %c0_57], %96 {strides = array<i32>} : memref<2x128x128xf32, #tpu.memory_space<vmem>>, vector<1x128x128xf32>,
    %c1_58 = arith.constant 1 : index
    %c0_59 = arith.constant 0 : index
    %c0_60 = arith.constant 0 : index
    %97 = vector.load %arg9[%c1_58, %c0_59, %c0_60] : memref<2x128x1xf32, #tpu.memory_space<vmem>>, vector<1x128x1xf32>
    %98 = vector.shape_cast %97 : vector<1x128x1xf32> to vector<128x1xf32>
    %99 = vector.shape_cast %68 : vector<128x1xf32> to vector<1x128x1xf32>
    tpu.vector_store %arg9[%c1_58, %c0_59, %c0_60], %99 {strides = array<i32>} : memref<2x128x1xf32, #tpu.memory_space<vmem>>, vector<1x128x1xf32>,
    %c0_i32_61 = arith.constant 0 : i32
    %100 = arith.cmpi eq, %arg1, %c0_i32_61 : i32
    %101 = arith.extui %100 : i1 to i32
    %c0_i32_62 = arith.constant 0 : i32
    %102 = arith.cmpi ne, %101, %c0_i32_62 : i32
    scf.if %102 {
      %c0_63 = arith.constant 0 : index
      %c0_64 = arith.constant 0 : index
      %c0_65 = arith.constant 0 : index
      %103 = vector.load %arg10[%c0_63, %c0_64, %c0_65] : memref<2x128x1xf32, #tpu.memory_space<vmem>>, vector<1x128x1xf32>
      %104 = vector.shape_cast %103 : vector<1x128x1xf32> to vector<128x1xf32>
      %cst_66 = arith.constant 1.000000e+00 : f32
      %105 = vector.broadcast %cst_66 : f32 to vector<128x1xf32>
      %106 = arith.maximumf %104, %105 : vector<128x1xf32>
      %107 = tpu.reciprocal %106 : vector<128x1xf32> -> vector<128x1xf32>
      %c0_67 = arith.constant 0 : index
      %c0_68 = arith.constant 0 : index
      %c0_69 = arith.constant 0 : index
      %108 = vector.load %arg11[%c0_67, %c0_68, %c0_69] : memref<2x128x128xf32, #tpu.memory_space<vmem>>, vector<1x128x128xf32>
      %109 = vector.shape_cast %108 : vector<1x128x128xf32> to vector<128x128xf32>
      %110 = vector.broadcast %107 : vector<128x1xf32> to vector<128x128xf32>
      %111 = arith.mulf %109, %110 : vector<128x128xf32>
      %c0_70 = arith.constant 0 : index
      %c0_71 = arith.constant 0 : index
      %c0_72 = arith.constant 0 : index
      %112 = vector.load %arg6[%c0_70, %c0_71, %c0_72] : memref<2x1x128xf32, #tpu.memory_space<vmem>>, vector<1x1x128xf32>
      %113 = vector.shape_cast %112 : vector<1x1x128xf32> to vector<1x128xf32>
      %114 = vector.broadcast %113 : vector<1x128xf32> to vector<128x128xf32>
      %115 = arith.addf %111, %114 : vector<128x128xf32>
      %cst_73 = arith.constant 0.000000e+00 : f32
      %116 = vector.broadcast %cst_73 : f32 to vector<128x128xf32>
      %117 = arith.cmpf ogt, %115, %116 : vector<128x128xf32>
      %c0_74 = arith.constant 0 : index
      %c0_75 = arith.constant 0 : index
      %c0_76 = arith.constant 0 : index
      %118 = vector.load %arg7[%c0_74, %c0_75, %c0_76] : memref<2x1x128xf32, #tpu.memory_space<vmem>>, vector<1x1x128xf32>
      %119 = vector.shape_cast %118 : vector<1x1x128xf32> to vector<1x128xf32>
      %120 = vector.broadcast %119 : vector<1x128xf32> to vector<128x128xf32>
      %121 = arith.mulf %120, %115 : vector<128x128xf32>
      %122 = arith.select %117, %115, %121 : vector<128x128xi1>, vector<128x128xf32>
      %c0_77 = arith.constant 0 : index
      %c0_78 = arith.constant 0 : index
      %c0_79 = arith.constant 0 : index
      %123 = vector.load %arg8[%c0_77, %c0_78, %c0_79] : memref<2x128x128xf32, #tpu.memory_space<vmem>>, vector<1x128x128xf32>
      %124 = vector.shape_cast %123 : vector<1x128x128xf32> to vector<128x128xf32>
      %125 = vector.shape_cast %122 : vector<128x128xf32> to vector<1x128x128xf32>
      tpu.vector_store %arg8[%c0_77, %c0_78, %c0_79], %125 {strides = array<i32>} : memref<2x128x128xf32, #tpu.memory_space<vmem>>, vector<1x128x128xf32>,
      %c1_80 = arith.constant 1 : index
      %c0_81 = arith.constant 0 : index
      %c0_82 = arith.constant 0 : index
      %126 = vector.load %arg10[%c1_80, %c0_81, %c0_82] : memref<2x128x1xf32, #tpu.memory_space<vmem>>, vector<1x128x1xf32>
      %127 = vector.shape_cast %126 : vector<1x128x1xf32> to vector<128x1xf32>
      %cst_83 = arith.constant 1.000000e+00 : f32
      %128 = vector.broadcast %cst_83 : f32 to vector<128x1xf32>
      %129 = arith.maximumf %127, %128 : vector<128x1xf32>
      %130 = tpu.reciprocal %129 : vector<128x1xf32> -> vector<128x1xf32>
      %c1_84 = arith.constant 1 : index
      %c0_85 = arith.constant 0 : index
      %c0_86 = arith.constant 0 : index
      %131 = vector.load %arg11[%c1_84, %c0_85, %c0_86] : memref<2x128x128xf32, #tpu.memory_space<vmem>>, vector<1x128x128xf32>
      %132 = vector.shape_cast %131 : vector<1x128x128xf32> to vector<128x128xf32>
      %133 = vector.broadcast %130 : vector<128x1xf32> to vector<128x128xf32>
      %134 = arith.mulf %132, %133 : vector<128x128xf32>
      %c1_87 = arith.constant 1 : index
      %c0_88 = arith.constant 0 : index
      %c0_89 = arith.constant 0 : index
      %135 = vector.load %arg6[%c1_87, %c0_88, %c0_89] : memref<2x1x128xf32, #tpu.memory_space<vmem>>, vector<1x1x128xf32>
      %136 = vector.shape_cast %135 : vector<1x1x128xf32> to vector<1x128xf32>
      %137 = vector.broadcast %136 : vector<1x128xf32> to vector<128x128xf32>
      %138 = arith.addf %134, %137 : vector<128x128xf32>
      %cst_90 = arith.constant 0.000000e+00 : f32
      %139 = vector.broadcast %cst_90 : f32 to vector<128x128xf32>
      %140 = arith.cmpf ogt, %138, %139 : vector<128x128xf32>
      %c1_91 = arith.constant 1 : index
      %c0_92 = arith.constant 0 : index
      %c0_93 = arith.constant 0 : index
      %141 = vector.load %arg7[%c1_91, %c0_92, %c0_93] : memref<2x1x128xf32, #tpu.memory_space<vmem>>, vector<1x1x128xf32>
      %142 = vector.shape_cast %141 : vector<1x1x128xf32> to vector<1x128xf32>
      %143 = vector.broadcast %142 : vector<1x128xf32> to vector<128x128xf32>
      %144 = arith.mulf %143, %138 : vector<128x128xf32>
      %145 = arith.select %140, %138, %144 : vector<128x128xi1>, vector<128x128xf32>
      %c1_94 = arith.constant 1 : index
      %c0_95 = arith.constant 0 : index
      %c0_96 = arith.constant 0 : index
      %146 = vector.load %arg8[%c1_94, %c0_95, %c0_96] : memref<2x128x128xf32, #tpu.memory_space<vmem>>, vector<1x128x128xf32>
      %147 = vector.shape_cast %146 : vector<1x128x128xf32> to vector<128x128xf32>
      %148 = vector.shape_cast %145 : vector<128x128xf32> to vector<1x128x128xf32>
      tpu.vector_store %arg8[%c1_94, %c0_95, %c0_96], %148 {strides = array<i32>} : memref<2x128x128xf32, #tpu.memory_space<vmem>>, vector<1x128x128xf32>,
    } else {
    }
    return
  }
  func.func @transform_0(%arg0: i32, %arg1: i32) -> (i32, i32) {
    %c0_i32 = arith.constant 0 : i32
    return %arg0, %arg1 : i32, i32
  }
  func.func @transform_1(%arg0: i32, %arg1: i32) -> (i32, i32) {
    %c0_i32 = arith.constant 0 : i32
    %c0_i32_0 = arith.constant 0 : i32
    return %arg0, %c0_i32 : i32, i32
  }
  func.func @transform_2(%arg0: i32, %arg1: i32) -> (i32, i32) {
    %c0_i32 = arith.constant 0 : i32
    %c0_i32_0 = arith.constant 0 : i32
    return %c0_i32, %arg1 : i32, i32
  }
  func.func @transform_3(%arg0: i32, %arg1: i32) -> (i32, i32, i32) {
    %c0_i32 = arith.constant 0 : i32
    %c0_i32_0 = arith.constant 0 : i32
    %c0_i32_1 = arith.constant 0 : i32
    return %c0_i32, %arg1, %c0_i32_0 : i32, i32, i32
  }
  func.func @transform_4(%arg0: i32, %arg1: i32) -> (i32, i32, i32) {
    %c0_i32 = arith.constant 0 : i32
    %c0_i32_0 = arith.constant 0 : i32
    %c0_i32_1 = arith.constant 0 : i32
    %c0_i32_2 = arith.constant 0 : i32
    return %c0_i32, %c0_i32_0, %c0_i32_1 : i32, i32, i32
  }
  func.func @transform_5(%arg0: i32, %arg1: i32) -> (i32, i32, i32) {
    %c0_i32 = arith.constant 0 : i32
    %c0_i32_0 = arith.constant 0 : i32
    %c0_i32_1 = arith.constant 0 : i32
    %c0_i32_2 = arith.constant 0 : i32
    return %c0_i32, %c0_i32_0, %c0_i32_1 : i32, i32, i32
  }
  func.func @transform_6(%arg0: i32, %arg1: i32) -> (i32, i32, i32) {
    %c0_i32 = arith.constant 0 : i32
    %c0_i32_0 = arith.constant 0 : i32
    %c0_i32_1 = arith.constant 0 : i32
    return %c0_i32, %arg0, %c0_i32_0 : i32, i32, i32
  }
}

</mosaic_0001>

<llo_original>
// kernel: lant_gat_forward.2
$region0: #{lant_gat_forward.2}
  #allocation0 [shape = 'u32[]', space=smem, size = 0x4, offset = 0x4, fixed_abs, tag = 'smem constant byte address 0x4 - core index']
  #allocation1 [shape = 'u32[144,128]{1,0:T(1,128)}', space=vmem, size = 0x12000, scoped, tag = 'internal scratch']
  %s0 = inlined_call_operand.vmem [shape: f32[128,8], index: 0, kind: input, shape index: {}]
  %s1 = inlined_call_operand.vmem [shape: f32[2,8,128], index: 1, kind: input, shape index: {}]
  %s2 = inlined_call_operand.vmem [shape: f32[8,128], index: 2, kind: input, shape index: {}]
  %s3 = inlined_call_operand.vmem [shape: f32[2,128,128], index: 3, kind: output, shape index: {0}]
  %s4 = inlined_call_operand.vmem [shape: f32[128,128], index: 4, kind: output, shape index: {1}]
  %5 = xla_tuple %s3, %s4
  %s6 = sld [smem:[#allocation0]]
  $region30: #{lant_gat_forward.2} parent=0
    _
  %s8 = ssub.s32 1, %s6
  %s9 = scalar_select 0, %s8, %s6
  // Predicated region
  $region2: #{lant_gat_forward.2} parent=0 // pred_check
    _
  $region3: #{lant_gat_forward.2} parent=0 // pred_check_branch
    %11 = sbr.rel (0) target = $region5
  $region4: #{lant_gat_forward.2} parent=0 // pred_region
    _
  $region5: #{lant_gat_forward.2} parent=0 // pred_fallthru
    _
  // Predicated region
  $region6: #{lant_gat_forward.2} parent=0 // pred_check
    _
  $region7: #{lant_gat_forward.2} parent=0 // pred_check_branch
    %13 = sbr.rel (0) target = $region9
  $region8: #{lant_gat_forward.2} parent=0 // pred_region
    _
  $region9: #{lant_gat_forward.2} parent=0 // pred_fallthru
    _
  // Predicated region
  $region10: #{lant_gat_forward.2} parent=0 // pred_check
    _
  $region11: #{lant_gat_forward.2} parent=0 // pred_check_branch
    %15 = sbr.rel (0) target = $region13
  $region12: #{lant_gat_forward.2} parent=0 // pred_region
    _
  $region13: #{lant_gat_forward.2} parent=0 // pred_fallthru
    _
  %v16 = vld [vmem:[%s0] sm:$0xff]
  %v17 = vld [vmem:[%s0 + $0x8] sm:$0xff]
  %v18 = vld [vmem:[%s0 + $0x10] sm:$0xff]
  %v19 = vld [vmem:[%s0 + $0x18] sm:$0xff]
  %v20 = vld [vmem:[%s0 + $0x20] sm:$0xff]
  %v21 = vld [vmem:[%s0 + $0x28] sm:$0xff]
  %v22 = vld [vmem:[%s0 + $0x30] sm:$0xff]
  %v23 = vld [vmem:[%s0 + $0x38] sm:$0xff]
  %v24 = vld [vmem:[%s0 + $0x40] sm:$0xff]
  %v25 = vld [vmem:[%s0 + $0x48] sm:$0xff]
  %v26 = vld [vmem:[%s0 + $0x50] sm:$0xff]
  %v27 = vld [vmem:[%s0 + $0x58] sm:$0xff]
  %v28 = vld [vmem:[%s0 + $0x60] sm:$0xff]
  %v29 = vld [vmem:[%s0 + $0x68] sm:$0xff]
  %v30 = vld [vmem:[%s0 + $0x70] sm:$0xff]
  %v31 = vld [vmem:[%s0 + $0x78] sm:$0xff]
  %v32 = vld [vmem:[%s1] sm:$0xff]
  %vm33 = vcmask 64512
  %v35 = vsel %vm33, %v16, 0
  %v38 = vsel %vm33, %v17, 0
  %v41 = vsel %vm33, %v18, 0
  %v44 = vsel %vm33, %v19, 0
  %v47 = vsel %vm33, %v20, 0
  %v50 = vsel %vm33, %v21, 0
  %v53 = vsel %vm33, %v22, 0
  %v56 = vsel %vm33, %v23, 0
  %v59 = vsel %vm33, %v24, 0
  %v62 = vsel %vm33, %v25, 0
  %v65 = vsel %vm33, %v26, 0
  %v68 = vsel %vm33, %v27, 0
  %v71 = vsel %vm33, %v28, 0
  %v74 = vsel %vm33, %v29, 0
  %v77 = vsel %vm33, %v30, 0
  %v80 = vsel %vm33, %v31, 0
  %82 = vmatprep.subr.mxu0 0.0
  %83 = vmatpush1.msra.mxu0 0.0
  %84 = vmatprep.subr.mxu0 0.0
  %85 = vmatpush1.msra.mxu0 0.0
  %86 = vmatprep.subr.mxu0 0.0
  %87 = vmatpush1.msra.mxu0 0.0
  %88 = vmatprep.subr.mxu0 0.0
  %89 = vmatpush1.msra.mxu0 0.0
  %90 = vmatprep.subr.mxu0 0.0
  %91 = vmatpush1.msra.mxu0 0.0
  %92 = vmatprep.subr.mxu0 0.0
  %93 = vmatpush1.msra.mxu0 0.0
  %94 = vmatprep.subr.mxu0 0.0
  %95 = vmatpush1.msra.mxu0 0.0
  %96 = vmatprep.subr.mxu0 0.0
  %97 = vmatpush1.msra.mxu0 0.0
  %98 = vmatprep.subr.mxu0 0.0
  %99 = vmatpush1.msra.mxu0 0.0
  %100 = vmatprep.subr.mxu0 0.0
  %101 = vmatpush1.msra.mxu0 0.0
  %102 = vmatprep.subr.mxu0 0.0
  %103 = vmatpush1.msra.mxu0 0.0
  %104 = vmatprep.subr.mxu0 0.0
  %105 = vmatpush1.msra.mxu0 0.0
  %106 = vmatprep.subr.mxu0 0.0
  %107 = vmatpush1.msra.mxu0 0.0
  %108 = vmatprep.subr.mxu0 0.0
  %109 = vmatpush1.msra.mxu0 0.0
  %110 = vmatprep.subr.mxu0 0.0
  %111 = vmatpush1.msra.mxu0 0.0
  %112 = vmatprep.subr.mxu0 0.0
  %113 = vmatpush1.msra.mxu0 %v32
  %114 = vmatprep.subr.mxu0 0.0
  %115 = vmatpush2.msra.mxu0 0.0
  %116 = vmatprep.subr.mxu0 0.0
  %117 = vmatpush2.msra.mxu0 0.0
  %118 = vmatprep.subr.mxu0 0.0
  %119 = vmatpush2.msra.mxu0 0.0
  %120 = vmatprep.subr.mxu0 0.0
  %121 = vmatpush2.msra.mxu0 0.0
  %122 = vmatprep.subr.mxu0 0.0
  %123 = vmatpush2.msra.mxu0 0.0
  %124 = vmatprep.subr.mxu0 0.0
  %125 = vmatpush2.msra.mxu0 0.0
  %126 = vmatprep.subr.mxu0 0.0
  %127 = vmatpush2.msra.mxu0 0.0
  %128 = vmatprep.subr.mxu0 0.0
  %129 = vmatpush2.msra.mxu0 0.0
  %130 = vmatprep.subr.mxu0 0.0
  %131 = vmatpush2.msra.mxu0 0.0
  %132 = vmatprep.subr.mxu0 0.0
  %133 = vmatpush2.msra.mxu0 0.0
  %134 = vmatprep.subr.mxu0 0.0
  %135 = vmatpush2.msra.mxu0 0.0
  %136 = vmatprep.subr.mxu0 0.0
  %137 = vmatpush2.msra.mxu0 0.0
  %138 = vmatprep.subr.mxu0 0.0
  %139 = vmatpush2.msra.mxu0 0.0
  %140 = vmatprep.subr.mxu0 0.0
  %141 = vmatpush2.msra.mxu0 0.0
  %142 = vmatprep.subr.mxu0 0.0
  %143 = vmatpush2.msra.mxu0 0.0
  %144 = vmatprep.subr.mxu0 0.0
  %145 = vmatpush2.msra.mxu0 0.0
  %146 = vmatprep.mubr.f32.mxu0 0.0
  %147 = vmatmul.mubr.f32.gmra.mxu0 %v35
  %v148 = vpop.f32.mrf.mxu0
  %v149 = vadd.f32 0.0, %v148
  %v150 = vpop.f32.mrf.mxu0
  %151 = vmatprep.mubr.f32.mxu0 0.0
  %152 = vmatmul.mubr.f32.gmra.mxu0 %v38
  %v153 = vpop.f32.mrf.mxu0
  %v154 = vadd.f32 0.0, %v153
  %v155 = vpop.f32.mrf.mxu0
  %156 = vmatprep.mubr.f32.mxu0 0.0
  %157 = vmatmul.mubr.f32.gmra.mxu0 %v41
  %v158 = vpop.f32.mrf.mxu0
  %v159 = vadd.f32 0.0, %v158
  %v160 = vpop.f32.mrf.mxu0
  %161 = vmatprep.mubr.f32.mxu0 0.0
  %162 = vmatmul.mubr.f32.gmra.mxu0 %v44
  %v163 = vpop.f32.mrf.mxu0
  %v164 = vadd.f32 0.0, %v163
  %v165 = vpop.f32.mrf.mxu0
  %166 = vmatprep.mubr.f32.mxu0 0.0
  %167 = vmatmul.mubr.f32.gmra.mxu0 %v47
  %v168 = vpop.f32.mrf.mxu0
  %v169 = vadd.f32 0.0, %v168
  %v170 = vpop.f32.mrf.mxu0
  %171 = vmatprep.mubr.f32.mxu0 0.0
  %172 = vmatmul.mubr.f32.gmra.mxu0 %v50
  %v173 = vpop.f32.mrf.mxu0
  %v174 = vadd.f32 0.0, %v173
  %v175 = vpop.f32.mrf.mxu0
  %176 = vmatprep.mubr.f32.mxu0 0.0
  %177 = vmatmul.mubr.f32.gmra.mxu0 %v53
  %v178 = vpop.f32.mrf.mxu0
  %v179 = vadd.f32 0.0, %v178
  %v180 = vpop.f32.mrf.mxu0
  %181 = vmatprep.mubr.f32.mxu0 0.0
  %182 = vmatmul.mubr.f32.gmra.mxu0 %v56
  %v183 = vpop.f32.mrf.mxu0
  %v184 = vadd.f32 0.0, %v183
  %v185 = vpop.f32.mrf.mxu0
  %186 = vmatprep.mubr.f32.mxu0 0.0
  %187 = vmatmul.mubr.f32.gmra.mxu0 %v59
  %v188 = vpop.f32.mrf.mxu0
  %v189 = vadd.f32 0.0, %v188
  %v190 = vpop.f32.mrf.mxu0
  %191 = vmatprep.mubr.f32.mxu0 0.0
  %192 = vmatmul.mubr.f32.gmra.mxu0 %v62
  %v193 = vpop.f32.mrf.mxu0
  %v194 = vadd.f32 0.0, %v193
  %v195 = vpop.f32.mrf.mxu0
  %196 = vmatprep.mubr.f32.mxu0 0.0
  %197 = vmatmul.mubr.f32.gmra.mxu0 %v65
  %v198 = vpop.f32.mrf.mxu0
  %v199 = vadd.f32 0.0, %v198
  %v200 = vpop.f32.mrf.mxu0
  %201 = vmatprep.mubr.f32.mxu0 0.0
  %202 = vmatmul.mubr.f32.gmra.mxu0 %v68
  %v203 = vpop.f32.mrf.mxu0
  %v204 = vadd.f32 0.0, %v203
  %v205 = vpop.f32.mrf.mxu0
  %206 = vmatprep.mubr.f32.mxu0 0.0
  %207 = vmatmul.mubr.f32.gmra.mxu0 %v71
  %v208 = vpop.f32.mrf.mxu0
  %v209 = vadd.f32 0.0, %v208
  %v210 = vpop.f32.mrf.mxu0
  %211 = vmatprep.mubr.f32.mxu0 0.0
  %212 = vmatmul.mubr.f32.gmra.mxu0 %v74
  %v213 = vpop.f32.mrf.mxu0
  %v214 = vadd.f32 0.0, %v213
  %v215 = vpop.f32.mrf.mxu0
  %216 = vmatprep.mubr.f32.mxu0 0.0
  %217 = vmatmul.mubr.f32.gmra.mxu0 %v77
  %v218 = vpop.f32.mrf.mxu0
  %v219 = vadd.f32 0.0, %v218
  %v220 = vpop.f32.mrf.mxu0
  %221 = vmatprep.mubr.f32.mxu0 0.0
  %222 = vmatmul.mubr.f32.gmra.mxu0 %v80
  %v223 = vpop.f32.mrf.mxu0
  %v224 = vadd.f32 0.0, %v223
  %v225 = vpop.f32.mrf.mxu0
  %226 = vdwg.mxu0
  %227 = vst [vmem:[%s3] sm:$0xff] %v149
  %228 = vst [vmem:[%s3 + $0x8] sm:$0xff] %v154
  %229 = vst [vmem:[%s3 + $0x10] sm:$0xff] %v159
  %230 = vst [vmem:[%s3 + $0x18] sm:$0xff] %v164
  %231 = vst [vmem:[%s3 + $0x20] sm:$0xff] %v169
  %232 = vst [vmem:[%s3 + $0x28] sm:$0xff] %v174
  %233 = vst [vmem:[%s3 + $0x30] sm:$0xff] %v179
  %234 = vst [vmem:[%s3 + $0x38] sm:$0xff] %v184
  %235 = vst [vmem:[%s3 + $0x40] sm:$0xff] %v189
  %236 = vst [vmem:[%s3 + $0x48] sm:$0xff] %v194
  %237 = vst [vmem:[%s3 + $0x50] sm:$0xff] %v199
  %238 = vst [vmem:[%s3 + $0x58] sm:$0xff] %v204
  %239 = vst [vmem:[%s3 + $0x60] sm:$0xff] %v209
  %240 = vst [vmem:[%s3 + $0x68] sm:$0xff] %v214
  %241 = vst [vmem:[%s3 + $0x70] sm:$0xff] %v219
  %242 = vst [vmem:[%s3 + $0x78] sm:$0xff] %v224
  %s243 = scalar_lea.vmem %s1, 8
  %v244 = vld [vmem:[%s243] sm:$0xff]
  %245 = vmatprep.subr.mxu0 0.0
  %246 = vmatpush1.msra.mxu0 0.0
  %247 = vmatprep.subr.mxu0 0.0
  %248 = vmatpush1.msra.mxu0 0.0
  %249 = vmatprep.subr.mxu0 0.0
  %250 = vmatpush1.msra.mxu0 0.0
  %251 = vmatprep.subr.mxu0 0.0
  %252 = vmatpush1.msra.mxu0 0.0
  %253 = vmatprep.subr.mxu0 0.0
  %254 = vmatpush1.msra.mxu0 0.0
  %255 = vmatprep.subr.mxu0 0.0
  %256 = vmatpush1.msra.mxu0 0.0
  %257 = vmatprep.subr.mxu0 0.0
  %258 = vmatpush1.msra.mxu0 0.0
  %259 = vmatprep.subr.mxu0 0.0
  %260 = vmatpush1.msra.mxu0 0.0
  %261 = vmatprep.subr.mxu0 0.0
  %262 = vmatpush1.msra.mxu0 0.0
  %263 = vmatprep.subr.mxu0 0.0
  %264 = vmatpush1.msra.mxu0 0.0
  %265 = vmatprep.subr.mxu0 0.0
  %266 = vmatpush1.msra.mxu0 0.0
  %267 = vmatprep.subr.mxu0 0.0
  %268 = vmatpush1.msra.mxu0 0.0
  %269 = vmatprep.subr.mxu0 0.0
  %270 = vmatpush1.msra.mxu0 0.0
  %271 = vmatprep.subr.mxu0 0.0
  %272 = vmatpush1.msra.mxu0 0.0
  %273 = vmatprep.subr.mxu0 0.0
  %274 = vmatpush1.msra.mxu0 0.0
  %275 = vmatprep.subr.mxu0 0.0
  %276 = vmatpush1.msra.mxu0 %v244
  %277 = vmatprep.subr.mxu0 0.0
  %278 = vmatpush2.msra.mxu0 0.0
  %279 = vmatprep.subr.mxu0 0.0
  %280 = vmatpush2.msra.mxu0 0.0
  %281 = vmatprep.subr.mxu0 0.0
  %282 = vmatpush2.msra.mxu0 0.0
  %283 = vmatprep.subr.mxu0 0.0
  %284 = vmatpush2.msra.mxu0 0.0
  %285 = vmatprep.subr.mxu0 0.0
  %286 = vmatpush2.msra.mxu0 0.0
  %287 = vmatprep.subr.mxu0 0.0
  %288 = vmatpush2.msra.mxu0 0.0
  %289 = vmatprep.subr.mxu0 0.0
  %290 = vmatpush2.msra.mxu0 0.0
  %291 = vmatprep.subr.mxu0 0.0
  %292 = vmatpush2.msra.mxu0 0.0
  %293 = vmatprep.subr.mxu0 0.0
  %294 = vmatpush2.msra.mxu0 0.0
  %295 = vmatprep.subr.mxu0 0.0
  %296 = vmatpush2.msra.mxu0 0.0
  %297 = vmatprep.subr.mxu0 0.0
  %298 = vmatpush2.msra.mxu0 0.0
  %299 = vmatprep.subr.mxu0 0.0
  %300 = vmatpush2.msra.mxu0 0.0
  %301 = vmatprep.subr.mxu0 0.0
  %302 = vmatpush2.msra.mxu0 0.0
  %303 = vmatprep.subr.mxu0 0.0
  %304 = vmatpush2.msra.mxu0 0.0
  %305 = vmatprep.subr.mxu0 0.0
  %306 = vmatpush2.msra.mxu0 0.0
  %307 = vmatprep.subr.mxu0 0.0
  %308 = vmatpush2.msra.mxu0 0.0
  %309 = vmatprep.mubr.f32.mxu0 0.0
  %310 = vmatmul.mubr.f32.gmra.mxu0 %v35
  %v311 = vpop.f32.mrf.mxu0
  %v312 = vadd.f32 0.0, %v311
  %v313 = vpop.f32.mrf.mxu0
  %314 = vmatprep.mubr.f32.mxu0 0.0
  %315 = vmatmul.mubr.f32.gmra.mxu0 %v38
  %v316 = vpop.f32.mrf.mxu0
  %v317 = vadd.f32 0.0, %v316
  %v318 = vpop.f32.mrf.mxu0
  %319 = vmatprep.mubr.f32.mxu0 0.0
  %320 = vmatmul.mubr.f32.gmra.mxu0 %v41
  %v321 = vpop.f32.mrf.mxu0
  %v322 = vadd.f32 0.0, %v321
  %v323 = vpop.f32.mrf.mxu0
  %324 = vmatprep.mubr.f32.mxu0 0.0
  %325 = vmatmul.mubr.f32.gmra.mxu0 %v44
  %v326 = vpop.f32.mrf.mxu0
  %v327 = vadd.f32 0.0, %v326
  %v328 = vpop.f32.mrf.mxu0
  %329 = vmatprep.mubr.f32.mxu0 0.0
  %330 = vmatmul.mubr.f32.gmra.mxu0 %v47
  %v331 = vpop.f32.mrf.mxu0
  %v332 = vadd.f32 0.0, %v331
  %v333 = vpop.f32.mrf.mxu0
  %334 = vmatprep.mubr.f32.mxu0 0.0
  %335 = vmatmul.mubr.f32.gmra.mxu0 %v50
  %v336 = vpop.f32.mrf.mxu0
  %v337 = vadd.f32 0.0, %v336
  %v338 = vpop.f32.mrf.mxu0
  %339 = vmatprep.mubr.f32.mxu0 0.0
  %340 = vmatmul.mubr.f32.gmra.mxu0 %v53
  %v341 = vpop.f32.mrf.mxu0
  %v342 = vadd.f32 0.0, %v341
  %v343 = vpop.f32.mrf.mxu0
  %344 = vmatprep.mubr.f32.mxu0 0.0
  %345 = vmatmul.mubr.f32.gmra.mxu0 %v56
  %v346 = vpop.f32.mrf.mxu0
  %v347 = vadd.f32 0.0, %v346
  %v348 = vpop.f32.mrf.mxu0
  %349 = vmatprep.mubr.f32.mxu0 0.0
  %350 = vmatmul.mubr.f32.gmra.mxu0 %v59
  %v351 = vpop.f32.mrf.mxu0
  %v352 = vadd.f32 0.0, %v351
  %v353 = vpop.f32.mrf.mxu0
  %354 = vmatprep.mubr.f32.mxu0 0.0
  %355 = vmatmul.mubr.f32.gmra.mxu0 %v62
  %v356 = vpop.f32.mrf.mxu0
  %v357 = vadd.f32 0.0, %v356
  %v358 = vpop.f32.mrf.mxu0
  %359 = vmatprep.mubr.f32.mxu0 0.0
  %360 = vmatmul.mubr.f32.gmra.mxu0 %v65
  %v361 = vpop.f32.mrf.mxu0
  %v362 = vadd.f32 0.0, %v361
  %v363 = vpop.f32.mrf.mxu0
  %364 = vmatprep.mubr.f32.mxu0 0.0
  %365 = vmatmul.mubr.f32.gmra.mxu0 %v68
  %v366 = vpop.f32.mrf.mxu0
  %v367 = vadd.f32 0.0, %v366
  %v368 = vpop.f32.mrf.mxu0
  %369 = vmatprep.mubr.f32.mxu0 0.0
  %370 = vmatmul.mubr.f32.gmra.mxu0 %v71
  %v371 = vpop.f32.mrf.mxu0
  %v372 = vadd.f32 0.0, %v371
  %v373 = vpop.f32.mrf.mxu0
  %374 = vmatprep.mubr.f32.mxu0 0.0
  %375 = vmatmul.mubr.f32.gmra.mxu0 %v74
  %v376 = vpop.f32.mrf.mxu0
  %v377 = vadd.f32 0.0, %v376
  %v378 = vpop.f32.mrf.mxu0
  %379 = vmatprep.mubr.f32.mxu0 0.0
  %380 = vmatmul.mubr.f32.gmra.mxu0 %v77
  %v381 = vpop.f32.mrf.mxu0
  %v382 = vadd.f32 0.0, %v381
  %v383 = vpop.f32.mrf.mxu0
  %384 = vmatprep.mubr.f32.mxu0 0.0
  %385 = vmatmul.mubr.f32.gmra.mxu0 %v80
  %v386 = vpop.f32.mrf.mxu0
  %v387 = vadd.f32 0.0, %v386
  %v388 = vpop.f32.mrf.mxu0
  %389 = vdwg.mxu0
  %s390 = scalar_lea.vmem %s3, 128
  %391 = vst [vmem:[%s390] sm:$0xff] %v312
  %392 = vst [vmem:[%s390 + $0x8] sm:$0xff] %v317
  %393 = vst [vmem:[%s390 + $0x10] sm:$0xff] %v322
  %394 = vst [vmem:[%s390 + $0x18] sm:$0xff] %v327
  %395 = vst [vmem:[%s390 + $0x20] sm:$0xff] %v332
  %396 = vst [vmem:[%s390 + $0x28] sm:$0xff] %v337
  %397 = vst [vmem:[%s390 + $0x30] sm:$0xff] %v342
  %398 = vst [vmem:[%s390 + $0x38] sm:$0xff] %v347
  %399 = vst [vmem:[%s390 + $0x40] sm:$0xff] %v352
  %400 = vst [vmem:[%s390 + $0x48] sm:$0xff] %v357
  %401 = vst [vmem:[%s390 + $0x50] sm:$0xff] %v362
  %402 = vst [vmem:[%s390 + $0x58] sm:$0xff] %v367
  %403 = vst [vmem:[%s390 + $0x60] sm:$0xff] %v372
  %404 = vst [vmem:[%s390 + $0x68] sm:$0xff] %v377
  %405 = vst [vmem:[%s390 + $0x70] sm:$0xff] %v382
  %406 = vst [vmem:[%s390 + $0x78] sm:$0xff] %v387
  %v407 = vld [vmem:[%s2] sm:$0xff]
  %408 = vmatprep.subr.mxu0 0.0
  %409 = vmatpush1.msra.mxu0 0.0
  %410 = vmatprep.subr.mxu0 0.0
  %411 = vmatpush1.msra.mxu0 0.0
  %412 = vmatprep.subr.mxu0 0.0
  %413 = vmatpush1.msra.mxu0 0.0
  %414 = vmatprep.subr.mxu0 0.0
  %415 = vmatpush1.msra.mxu0 0.0
  %416 = vmatprep.subr.mxu0 0.0
  %417 = vmatpush1.msra.mxu0 0.0
  %418 = vmatprep.subr.mxu0 0.0
  %419 = vmatpush1.msra.mxu0 0.0
  %420 = vmatprep.subr.mxu0 0.0
  %421 = vmatpush1.msra.mxu0 0.0
  %422 = vmatprep.subr.mxu0 0.0
  %423 = vmatpush1.msra.mxu0 0.0
  %424 = vmatprep.subr.mxu0 0.0
  %425 = vmatpush1.msra.mxu0 0.0
  %426 = vmatprep.subr.mxu0 0.0
  %427 = vmatpush1.msra.mxu0 0.0
  %428 = vmatprep.subr.mxu0 0.0
  %429 = vmatpush1.msra.mxu0 0.0
  %430 = vmatprep.subr.mxu0 0.0
  %431 = vmatpush1.msra.mxu0 0.0
  %432 = vmatprep.subr.mxu0 0.0
  %433 = vmatpush1.msra.mxu0 0.0
  %434 = vmatprep.subr.mxu0 0.0
  %435 = vmatpush1.msra.mxu0 0.0
  %436 = vmatprep.subr.mxu0 0.0
  %437 = vmatpush1.msra.mxu0 0.0
  %438 = vmatprep.subr.mxu0 0.0
  %439 = vmatpush1.msra.mxu0 %v407
  %440 = vmatprep.subr.mxu0 0.0
  %441 = vmatpush2.msra.mxu0 0.0
  %442 = vmatprep.subr.mxu0 0.0
  %443 = vmatpush2.msra.mxu0 0.0
  %444 = vmatprep.subr.mxu0 0.0
  %445 = vmatpush2.msra.mxu0 0.0
  %446 = vmatprep.subr.mxu0 0.0
  %447 = vmatpush2.msra.mxu0 0.0
  %448 = vmatprep.subr.mxu0 0.0
  %449 = vmatpush2.msra.mxu0 0.0
  %450 = vmatprep.subr.mxu0 0.0
  %451 = vmatpush2.msra.mxu0 0.0
  %452 = vmatprep.subr.mxu0 0.0
  %453 = vmatpush2.msra.mxu0 0.0
  %454 = vmatprep.subr.mxu0 0.0
  %455 = vmatpush2.msra.mxu0 0.0
  %456 = vmatprep.subr.mxu0 0.0
  %457 = vmatpush2.msra.mxu0 0.0
  %458 = vmatprep.subr.mxu0 0.0
  %459 = vmatpush2.msra.mxu0 0.0
  %460 = vmatprep.subr.mxu0 0.0
  %461 = vmatpush2.msra.mxu0 0.0
  %462 = vmatprep.subr.mxu0 0.0
  %463 = vmatpush2.msra.mxu0 0.0
  %464 = vmatprep.subr.mxu0 0.0
  %465 = vmatpush2.msra.mxu0 0.0
  %466 = vmatprep.subr.mxu0 0.0
  %467 = vmatpush2.msra.mxu0 0.0
  %468 = vmatprep.subr.mxu0 0.0
  %469 = vmatpush2.msra.mxu0 0.0
  %470 = vmatprep.subr.mxu0 0.0
  %471 = vmatpush2.msra.mxu0 0.0
  %472 = vmatprep.mubr.f32.mxu0 0.0
  %473 = vmatmul.mubr.f32.gmra.mxu0 %v35
  %v474 = vpop.f32.mrf.mxu0
  %v475 = vadd.f32 0.0, %v474
  %v476 = vpop.f32.mrf.mxu0
  %477 = vmatprep.mubr.f32.mxu0 0.0
  %478 = vmatmul.mubr.f32.gmra.mxu0 %v38
  %v479 = vpop.f32.mrf.mxu0
  %v480 = vadd.f32 0.0, %v479
  %v481 = vpop.f32.mrf.mxu0
  %482 = vmatprep.mubr.f32.mxu0 0.0
  %483 = vmatmul.mubr.f32.gmra.mxu0 %v41
  %v484 = vpop.f32.mrf.mxu0
  %v485 = vadd.f32 0.0, %v484
  %v486 = vpop.f32.mrf.mxu0
  %487 = vmatprep.mubr.f32.mxu0 0.0
  %488 = vmatmul.mubr.f32.gmra.mxu0 %v44
  %v489 = vpop.f32.mrf.mxu0
  %v490 = vadd.f32 0.0, %v489
  %v491 = vpop.f32.mrf.mxu0
  %492 = vmatprep.mubr.f32.mxu0 0.0
  %493 = vmatmul.mubr.f32.gmra.mxu0 %v47
  %v494 = vpop.f32.mrf.mxu0
  %v495 = vadd.f32 0.0, %v494
  %v496 = vpop.f32.mrf.mxu0
  %497 = vmatprep.mubr.f32.mxu0 0.0
  %498 = vmatmul.mubr.f32.gmra.mxu0 %v50
  %v499 = vpop.f32.mrf.mxu0
  %v500 = vadd.f32 0.0, %v499
  %v501 = vpop.f32.mrf.mxu0
  %502 = vmatprep.mubr.f32.mxu0 0.0
  %503 = vmatmul.mubr.f32.gmra.mxu0 %v53
  %v504 = vpop.f32.mrf.mxu0
  %v505 = vadd.f32 0.0, %v504
  %v506 = vpop.f32.mrf.mxu0
  %507 = vmatprep.mubr.f32.mxu0 0.0
  %508 = vmatmul.mubr.f32.gmra.mxu0 %v56
  %v509 = vpop.f32.mrf.mxu0
  %v510 = vadd.f32 0.0, %v509
  %v511 = vpop.f32.mrf.mxu0
  %512 = vmatprep.mubr.f32.mxu0 0.0
  %513 = vmatmul.mubr.f32.gmra.mxu0 %v59
  %v514 = vpop.f32.mrf.mxu0
  %v515 = vadd.f32 0.0, %v514
  %v516 = vpop.f32.mrf.mxu0
  %517 = vmatprep.mubr.f32.mxu0 0.0
  %518 = vmatmul.mubr.f32.gmra.mxu0 %v62
  %v519 = vpop.f32.mrf.mxu0
  %v520 = vadd.f32 0.0, %v519
  %v521 = vpop.f32.mrf.mxu0
  %522 = vmatprep.mubr.f32.mxu0 0.0
  %523 = vmatmul.mubr.f32.gmra.mxu0 %v65
  %v524 = vpop.f32.mrf.mxu0
  %v525 = vadd.f32 0.0, %v524
  %v526 = vpop.f32.mrf.mxu0
  %527 = vmatprep.mubr.f32.mxu0 0.0
  %528 = vmatmul.mubr.f32.gmra.mxu0 %v68
  %v529 = vpop.f32.mrf.mxu0
  %v530 = vadd.f32 0.0, %v529
  %v531 = vpop.f32.mrf.mxu0
  %532 = vmatprep.mubr.f32.mxu0 0.0
  %533 = vmatmul.mubr.f32.gmra.mxu0 %v71
  %v534 = vpop.f32.mrf.mxu0
  %v535 = vadd.f32 0.0, %v534
  %v536 = vpop.f32.mrf.mxu0
  %537 = vmatprep.mubr.f32.mxu0 0.0
  %538 = vmatmul.mubr.f32.gmra.mxu0 %v74
  %v539 = vpop.f32.mrf.mxu0
  %v540 = vadd.f32 0.0, %v539
  %v541 = vpop.f32.mrf.mxu0
  %542 = vmatprep.mubr.f32.mxu0 0.0
  %543 = vmatmul.mubr.f32.gmra.mxu0 %v77
  %v544 = vpop.f32.mrf.mxu0
  %v545 = vadd.f32 0.0, %v544
  %v546 = vpop.f32.mrf.mxu0
  %547 = vmatprep.mubr.f32.mxu0 0.0
  %548 = vmatmul.mubr.f32.gmra.mxu0 %v80
  %v549 = vpop.f32.mrf.mxu0
  %v550 = vadd.f32 0.0, %v549
  %v551 = vpop.f32.mrf.mxu0
  %552 = vdwg.mxu0
  %553 = vst [vmem:[%s4] sm:$0xff] %v475
  %554 = vst [vmem:[%s4 + $0x8] sm:$0xff] %v480
  %555 = vst [vmem:[%s4 + $0x10] sm:$0xff] %v485
  %556 = vst [vmem:[%s4 + $0x18] sm:$0xff] %v490
  %557 = vst [vmem:[%s4 + $0x20] sm:$0xff] %v495
  %558 = vst [vmem:[%s4 + $0x28] sm:$0xff] %v500
  %559 = vst [vmem:[%s4 + $0x30] sm:$0xff] %v505
  %560 = vst [vmem:[%s4 + $0x38] sm:$0xff] %v510
  %561 = vst [vmem:[%s4 + $0x40] sm:$0xff] %v515
  %562 = vst [vmem:[%s4 + $0x48] sm:$0xff] %v520
  %563 = vst [vmem:[%s4 + $0x50] sm:$0xff] %v525
  %564 = vst [vmem:[%s4 + $0x58] sm:$0xff] %v530
  %565 = vst [vmem:[%s4 + $0x60] sm:$0xff] %v535
  %566 = vst [vmem:[%s4 + $0x68] sm:$0xff] %v540
  %567 = vst [vmem:[%s4 + $0x70] sm:$0xff] %v545
  %568 = vst [vmem:[%s4 + $0x78] sm:$0xff] %v550
  // Predicated region
  $region14: #{lant_gat_forward.2} parent=0 // pred_check
    _
  $region15: #{lant_gat_forward.2} parent=0 // pred_check_branch
    %570 = sbr.rel (0) target = $region17
  $region16: #{lant_gat_forward.2} parent=0 // pred_region
    _
  $region17: #{lant_gat_forward.2} parent=0 // pred_fallthru
    _
  // Predicated region
  $region18: #{lant_gat_forward.2} parent=0 // pred_check
    _
  $region19: #{lant_gat_forward.2} parent=0 // pred_check_branch
    %572 = sbr.rel (0) target = $region21
  $region20: #{lant_gat_forward.2} parent=0 // pred_region
    _
  $region21: #{lant_gat_forward.2} parent=0 // pred_fallthru
    _
  // Predicated region
  $region22: #{lant_gat_forward.2} parent=0 // pred_check
    _
  $region23: #{lant_gat_forward.2} parent=0 // pred_check_branch
    %574 = sbr.rel (0) target = $region25
  $region24: #{lant_gat_forward.2} parent=0 // pred_region
    _
  $region25: #{lant_gat_forward.2} parent=0 // pred_fallthru
    _
  // Predicated region
  $region26: #{lant_gat_forward.2} parent=0 // pred_check
    _
  $region27: #{lant_gat_forward.2} parent=0 // pred_check_branch
    %576 = sbr.rel (0) target = $region29
  $region28: #{lant_gat_forward.2} parent=0 // pred_region
    _
  $region29: #{lant_gat_forward.2} parent=0 // pred_fallthru
    _

// kernel: lant_gat_forward.3
$region0: #{lant_gat_forward.3}
  #allocation0 [shape = 'u32[]', space=smem, size = 0x4, offset = 0x4, fixed_abs, tag = 'smem constant byte address 0x4 - core index']
  #allocation1 [shape = 'u32[144,128]{1,0:T(1,128)}', space=vmem, size = 0x12000, scoped, tag = 'internal scratch']
  #allocation2 [shape = 'f32[2,128,1]{2,1,0:T(8,128)}', space=vmem, size = 0x20000, scoped, tag = 'scratch operand']
  #allocation3 [shape = 'f32[2,128,1]{2,1,0:T(8,128)}', space=vmem, size = 0x20000, scoped, tag = 'scratch operand']
  #allocation4 [shape = 'f32[2,128,128]{2,1,0:T(8,128)}', space=vmem, size = 0x20000, scoped, tag = 'scratch operand']
  %s0 = inlined_call_operand.vmem [shape: bf16[128,128], index: 0, kind: input, shape index: {}]
  %s1 = inlined_call_operand.vmem [shape: f32[128,128], index: 1, kind: input, shape index: {}]
  %s2 = inlined_call_operand.vmem [shape: f32[2,128], index: 2, kind: input, shape index: {}]
  %s3 = inlined_call_operand.vmem [shape: f32[2,128,128], index: 3, kind: input, shape index: {}]
  %s4 = inlined_call_operand.vmem [shape: f32[2,1,128], index: 4, kind: input, shape index: {}]
  %s5 = inlined_call_operand.vmem [shape: f32[2,1,128], index: 5, kind: input, shape index: {}]
  %s6 = inlined_call_operand.vmem [shape: f32[2,128,128], index: 6, kind: output, shape index: {}]
  %s7 = sld [smem:[#allocation0]]
  $region42: #{lant_gat_forward.3} parent=0
    _
  %s9 = ssub.s32 1, %s7
  %s10 = scalar_select 0, %s9, %s7
  // Predicated region
  $region2: #{lant_gat_forward.3} parent=0 // pred_check
    _
  $region3: #{lant_gat_forward.3} parent=0 // pred_check_branch
    %12 = sbr.rel (0) target = $region5
  $region4: #{lant_gat_forward.3} parent=0 // pred_region
    _
  $region5: #{lant_gat_forward.3} parent=0 // pred_fallthru
    _
  // Predicated region
  $region6: #{lant_gat_forward.3} parent=0 // pred_check
    _
  $region7: #{lant_gat_forward.3} parent=0 // pred_check_branch
    %14 = sbr.rel (0) target = $region9
  $region8: #{lant_gat_forward.3} parent=0 // pred_region
    _
  $region9: #{lant_gat_forward.3} parent=0 // pred_fallthru
    _
  // Predicated region
  $region10: #{lant_gat_forward.3} parent=0 // pred_check
    _
  $region11: #{lant_gat_forward.3} parent=0 // pred_check_branch
    %16 = sbr.rel (0) target = $region13
  $region12: #{lant_gat_forward.3} parent=0 // pred_region
    _
  $region13: #{lant_gat_forward.3} parent=0 // pred_fallthru
    _
  // Predicated region
  $region14: #{lant_gat_forward.3} parent=0 // pred_check
    _
  $region15: #{lant_gat_forward.3} parent=0 // pred_check_branch
    %18 = sbr.rel (0) target = $region17
  $region16: #{lant_gat_forward.3} parent=0 // pred_region
    _
  $region17: #{lant_gat_forward.3} parent=0 // pred_fallthru
    _
  // Predicated region
  $region18: #{lant_gat_forward.3} parent=0 // pred_check
    _
  $region19: #{lant_gat_forward.3} parent=0 // pred_check_branch
    %20 = sbr.rel (0) target = $region21
  $region20: #{lant_gat_forward.3} parent=0 // pred_region
    _
  $region21: #{lant_gat_forward.3} parent=0 // pred_fallthru
    _
  // Predicated region
  $region22: #{lant_gat_forward.3} parent=0 // pred_check
    _
  $region23: #{lant_gat_forward.3} parent=0 // pred_check_branch
    %22 = sbr.rel (0) target = $region25
  $region24: #{lant_gat_forward.3} parent=0 // pred_region
    _
  $region25: #{lant_gat_forward.3} parent=0 // pred_fallthru
    _
  %p23 = scmp.eq.s32.totalorder 0, 0
  // Predicated region
  $region26: #{lant_gat_forward.3} parent=0 // pred_check
    %p24 = pneg %p23
  $region27: #{lant_gat_forward.3} parent=0 // pred_check_branch
    %26 = sbr.rel (%p24) target = $region29
  $region28: #{lant_gat_forward.3} parent=0 // pred_region
    %vm27 = vcmask 7168
    %28 = vst.msk [vmem:[#allocation2] sm:$0xff] %vm27, -1e+30
    %29 = vst.msk [vmem:[#allocation2 + $0x8] sm:$0xff] %vm27, -1e+30
    %30 = vst.msk [vmem:[#allocation2 + $0x10] sm:$0xff] %vm27, -1e+30
    %31 = vst.msk [vmem:[#allocation2 + $0x18] sm:$0xff] %vm27, -1e+30
    %32 = vst.msk [vmem:[#allocation2 + $0x20] sm:$0xff] %vm27, -1e+30
    %33 = vst.msk [vmem:[#allocation2 + $0x28] sm:$0xff] %vm27, -1e+30
    %34 = vst.msk [vmem:[#allocation2 + $0x30] sm:$0xff] %vm27, -1e+30
    %35 = vst.msk [vmem:[#allocation2 + $0x38] sm:$0xff] %vm27, -1e+30
    %36 = vst.msk [vmem:[#allocation2 + $0x40] sm:$0xff] %vm27, -1e+30
    %37 = vst.msk [vmem:[#allocation2 + $0x48] sm:$0xff] %vm27, -1e+30
    %38 = vst.msk [vmem:[#allocation2 + $0x50] sm:$0xff] %vm27, -1e+30
    %39 = vst.msk [vmem:[#allocation2 + $0x58] sm:$0xff] %vm27, -1e+30
    %40 = vst.msk [vmem:[#allocation2 + $0x60] sm:$0xff] %vm27, -1e+30
    %41 = vst.msk [vmem:[#allocation2 + $0x68] sm:$0xff] %vm27, -1e+30
    %42 = vst.msk [vmem:[#allocation2 + $0x70] sm:$0xff] %vm27, -1e+30
    %43 = vst.msk [vmem:[#allocation2 + $0x78] sm:$0xff] %vm27, -1e+30
    %44 = vst.msk [vmem:[#allocation2 + $0x80] sm:$0xff] %vm27, -1e+30
    %45 = vst.msk [vmem:[#allocation2 + $0x88] sm:$0xff] %vm27, -1e+30
    %46 = vst.msk [vmem:[#allocation2 + $0x90] sm:$0xff] %vm27, -1e+30
    %47 = vst.msk [vmem:[#allocation2 + $0x98] sm:$0xff] %vm27, -1e+30
    %48 = vst.msk [vmem:[#allocation2 + $0xa0] sm:$0xff] %vm27, -1e+30
    %49 = vst.msk [vmem:[#allocation2 + $0xa8] sm:$0xff] %vm27, -1e+30
    %50 = vst.msk [vmem:[#allocation2 + $0xb0] sm:$0xff] %vm27, -1e+30
    %51 = vst.msk [vmem:[#allocation2 + $0xb8] sm:$0xff] %vm27, -1e+30
    %52 = vst.msk [vmem:[#allocation2 + $0xc0] sm:$0xff] %vm27, -1e+30
    %53 = vst.msk [vmem:[#allocation2 + $0xc8] sm:$0xff] %vm27, -1e+30
    %54 = vst.msk [vmem:[#allocation2 + $0xd0] sm:$0xff] %vm27, -1e+30
    %55 = vst.msk [vmem:[#allocation2 + $0xd8] sm:$0xff] %vm27, -1e+30
    %56 = vst.msk [vmem:[#allocation2 + $0xe0] sm:$0xff] %vm27, -1e+30
    %57 = vst.msk [vmem:[#allocation2 + $0xe8] sm:$0xff] %vm27, -1e+30
    %58 = vst.msk [vmem:[#allocation2 + $0xf0] sm:$0xff] %vm27, -1e+30
    %59 = vst.msk [vmem:[#allocation2 + $0xf8] sm:$0xff] %vm27, -1e+30
    %60 = vst.msk [vmem:[#allocation3] sm:$0xff] %vm27, 0.0
    %61 = vst.msk [vmem:[#allocation3 + $0x8] sm:$0xff] %vm27, 0.0
    %62 = vst.msk [vmem:[#allocation3 + $0x10] sm:$0xff] %vm27, 0.0
    %63 = vst.msk [vmem:[#allocation3 + $0x18] sm:$0xff] %vm27, 0.0
    %64 = vst.msk [vmem:[#allocation3 + $0x20] sm:$0xff] %vm27, 0.0
    %65 = vst.msk [vmem:[#allocation3 + $0x28] sm:$0xff] %vm27, 0.0
    %66 = vst.msk [vmem:[#allocation3 + $0x30] sm:$0xff] %vm27, 0.0
    %67 = vst.msk [vmem:[#allocation3 + $0x38] sm:$0xff] %vm27, 0.0
    %68 = vst.msk [vmem:[#allocation3 + $0x40] sm:$0xff] %vm27, 0.0
    %69 = vst.msk [vmem:[#allocation3 + $0x48] sm:$0xff] %vm27, 0.0
    %70 = vst.msk [vmem:[#allocation3 + $0x50] sm:$0xff] %vm27, 0.0
    %71 = vst.msk [vmem:[#allocation3 + $0x58] sm:$0xff] %vm27, 0.0
    %72 = vst.msk [vmem:[#allocation3 + $0x60] sm:$0xff] %vm27, 0.0
    %73 = vst.msk [vmem:[#allocation3 + $0x68] sm:$0xff] %vm27, 0.0
    %74 = vst.msk [vmem:[#allocation3 + $0x70] sm:$0xff] %vm27, 0.0
    %75 = vst.msk [vmem:[#allocation3 + $0x78] sm:$0xff] %vm27, 0.0
    %76 = vst.msk [vmem:[#allocation3 + $0x80] sm:$0xff] %vm27, 0.0
    %77 = vst.msk [vmem:[#allocation3 + $0x88] sm:$0xff] %vm27, 0.0
    %78 = vst.msk [vmem:[#allocation3 + $0x90] sm:$0xff] %vm27, 0.0
    %79 = vst.msk [vmem:[#allocation3 + $0x98] sm:$0xff] %vm27, 0.0
    %80 = vst.msk [vmem:[#allocation3 + $0xa0] sm:$0xff] %vm27, 0.0
    %81 = vst.msk [vmem:[#allocation3 + $0xa8] sm:$0xff] %vm27, 0.0
    %82 = vst.msk [vmem:[#allocation3 + $0xb0] sm:$0xff] %vm27, 0.0
    %83 = vst.msk [vmem:[#allocation3 + $0xb8] sm:$0xff] %vm27, 0.0
    %84 = vst.msk [vmem:[#allocation3 + $0xc0] sm:$0xff] %vm27, 0.0
    %85 = vst.msk [vmem:[#allocation3 + $0xc8] sm:$0xff] %vm27, 0.0
    %86 = vst.msk [vmem:[#allocation3 + $0xd0] sm:$0xff] %vm27, 0.0
    %87 = vst.msk [vmem:[#allocation3 + $0xd8] sm:$0xff] %vm27, 0.0
    %88 = vst.msk [vmem:[#allocation3 + $0xe0] sm:$0xff] %vm27, 0.0
    %89 = vst.msk [vmem:[#allocation3 + $0xe8] sm:$0xff] %vm27, 0.0
    %90 = vst.msk [vmem:[#allocation3 + $0xf0] sm:$0xff] %vm27, 0.0
    %91 = vst.msk [vmem:[#allocation3 + $0xf8] sm:$0xff] %vm27, 0.0
    %92 = vst [vmem:[#allocation4] sm:$0xff] 0.0
    %93 = vst [vmem:[#allocation4 + $0x8] sm:$0xff] 0.0
    %94 = vst [vmem:[#allocation4 + $0x10] sm:$0xff] 0.0
    %95 = vst [vmem:[#allocation4 + $0x18] sm:$0xff] 0.0
    %96 = vst [vmem:[#allocation4 + $0x20] sm:$0xff] 0.0
    %97 = vst [vmem:[#allocation4 + $0x28] sm:$0xff] 0.0
    %98 = vst [vmem:[#allocation4 + $0x30] sm:$0xff] 0.0
    %99 = vst [vmem:[#allocation4 + $0x38] sm:$0xff] 0.0
    %100 = vst [vmem:[#allocation4 + $0x40] sm:$0xff] 0.0
    %101 = vst [vmem:[#allocation4 + $0x48] sm:$0xff] 0.0
    %102 = vst [vmem:[#allocation4 + $0x50] sm:$0xff] 0.0
    %103 = vst [vmem:[#allocation4 + $0x58] sm:$0xff] 0.0
    %104 = vst [vmem:[#allocation4 + $0x60] sm:$0xff] 0.0
    %105 = vst [vmem:[#allocation4 + $0x68] sm:$0xff] 0.0
    %106 = vst [vmem:[#allocation4 + $0x70] sm:$0xff] 0.0
    %107 = vst [vmem:[#allocation4 + $0x78] sm:$0xff] 0.0
    %108 = vst [vmem:[#allocation4 + $0x80] sm:$0xff] 0.0
    %109 = vst [vmem:[#allocation4 + $0x88] sm:$0xff] 0.0
    %110 = vst [vmem:[#allocation4 + $0x90] sm:$0xff] 0.0
    %111 = vst [vmem:[#allocation4 + $0x98] sm:$0xff] 0.0
    %112 = vst [vmem:[#allocation4 + $0xa0] sm:$0xff] 0.0
    %113 = vst [vmem:[#allocation4 + $0xa8] sm:$0xff] 0.0
    %114 = vst [vmem:[#allocation4 + $0xb0] sm:$0xff] 0.0
    %115 = vst [vmem:[#allocation4 + $0xb8] sm:$0xff] 0.0
    %116 = vst [vmem:[#allocation4 + $0xc0] sm:$0xff] 0.0
    %117 = vst [vmem:[#allocation4 + $0xc8] sm:$0xff] 0.0
    %118 = vst [vmem:[#allocation4 + $0xd0] sm:$0xff] 0.0
    %119 = vst [vmem:[#allocation4 + $0xd8] sm:$0xff] 0.0
    %120 = vst [vmem:[#allocation4 + $0xe0] sm:$0xff] 0.0
    %121 = vst [vmem:[#allocation4 + $0xe8] sm:$0xff] 0.0
    %122 = vst [vmem:[#allocation4 + $0xf0] sm:$0xff] 0.0
    %123 = vst [vmem:[#allocation4 + $0xf8] sm:$0xff] 0.0
  $region29: #{lant_gat_forward.3} parent=0 // pred_fallthru
    _
  %v124 = vld [vmem:[%s0] sm:$0xf]
  %v125 = vld [vmem:[%s0 + $0x4] sm:$0xf]
  %v126 = vld [vmem:[%s0 + $0x8] sm:$0xf]
  %v127 = vld [vmem:[%s0 + $0xc] sm:$0xf]
  %v128 = vld [vmem:[%s0 + $0x10] sm:$0xf]
  %v129 = vld [vmem:[%s0 + $0x14] sm:$0xf]
  %v130 = vld [vmem:[%s0 + $0x18] sm:$0xf]
  %v131 = vld [vmem:[%s0 + $0x1c] sm:$0xf]
  %v132 = vld [vmem:[%s0 + $0x20] sm:$0xf]
  %v133 = vld [vmem:[%s0 + $0x24] sm:$0xf]
  %v134 = vld [vmem:[%s0 + $0x28] sm:$0xf]
  %v135 = vld [vmem:[%s0 + $0x2c] sm:$0xf]
  %v136 = vld [vmem:[%s0 + $0x30] sm:$0xf]
  %v137 = vld [vmem:[%s0 + $0x34] sm:$0xf]
  %v138 = vld [vmem:[%s0 + $0x38] sm:$0xf]
  %v139 = vld [vmem:[%s0 + $0x3c] sm:$0xf]
  %v140 = vunpack.c.l.bf16 %v124
  %v141 = vunpack.c.l.bf16 %v125
  %v142 = vunpack.c.l.bf16 %v126
  %v143 = vunpack.c.l.bf16 %v127
  %v144 = vunpack.c.l.bf16 %v128
  %v145 = vunpack.c.l.bf16 %v129
  %v146 = vunpack.c.l.bf16 %v130
  %v147 = vunpack.c.l.bf16 %v131
  %v148 = vunpack.c.l.bf16 %v132
  %v149 = vunpack.c.l.bf16 %v133
  %v150 = vunpack.c.l.bf16 %v134
  %v151 = vunpack.c.l.bf16 %v135
  %v152 = vunpack.c.l.bf16 %v136
  %v153 = vunpack.c.l.bf16 %v137
  %v154 = vunpack.c.l.bf16 %v138
  %v155 = vunpack.c.l.bf16 %v139
  %vm156 = vcmp.gt.f32.partialorder %v140, 0.0
  %vm157 = vcmp.gt.f32.partialorder %v141, 0.0
  %vm158 = vcmp.gt.f32.partialorder %v142, 0.0
  %vm159 = vcmp.gt.f32.partialorder %v143, 0.0
  %vm160 = vcmp.gt.f32.partialorder %v144, 0.0
  %vm161 = vcmp.gt.f32.partialorder %v145, 0.0
  %vm162 = vcmp.gt.f32.partialorder %v146, 0.0
  %vm163 = vcmp.gt.f32.partialorder %v147, 0.0
  %vm164 = vcmp.gt.f32.partialorder %v148, 0.0
  %vm165 = vcmp.gt.f32.partialorder %v149, 0.0
  %vm166 = vcmp.gt.f32.partialorder %v150, 0.0
  %vm167 = vcmp.gt.f32.partialorder %v151, 0.0
  %vm168 = vcmp.gt.f32.partialorder %v152, 0.0
  %vm169 = vcmp.gt.f32.partialorder %v153, 0.0
  %vm170 = vcmp.gt.f32.partialorder %v154, 0.0
  %vm171 = vcmp.gt.f32.partialorder %v155, 0.0
  %v172 = vld [vmem:[%s1] sm:$0xff]
  %v173 = vld [vmem:[%s1 + $0x8] sm:$0xff]
  %v174 = vld [vmem:[%s1 + $0x10] sm:$0xff]
  %v175 = vld [vmem:[%s1 + $0x18] sm:$0xff]
  %v176 = vld [vmem:[%s1 + $0x20] sm:$0xff]
  %v177 = vld [vmem:[%s1 + $0x28] sm:$0xff]
  %v178 = vld [vmem:[%s1 + $0x30] sm:$0xff]
  %v179 = vld [vmem:[%s1 + $0x38] sm:$0xff]
  %v180 = vld [vmem:[%s1 + $0x40] sm:$0xff]
  %v181 = vld [vmem:[%s1 + $0x48] sm:$0xff]
  %v182 = vld [vmem:[%s1 + $0x50] sm:$0xff]
  %v183 = vld [vmem:[%s1 + $0x58] sm:$0xff]
  %v184 = vld [vmem:[%s1 + $0x60] sm:$0xff]
  %v185 = vld [vmem:[%s1 + $0x68] sm:$0xff]
  %v186 = vld [vmem:[%s1 + $0x70] sm:$0xff]
  %v187 = vld [vmem:[%s1 + $0x78] sm:$0xff]
  %v188 = vld [vmem:[%s2] sm:$0x1]
  %190 = vset.pattern.permute.xlu0 2
  %191 = vperm.xlu0 %190, %v172
  %v192 = vpop.permute.xlu0 %191
  %195 = vset.pattern.permute.xlu0 2
  %196 = vperm.xlu0 %195, %v173
  %v197 = vpop.permute.xlu0 %196
  %200 = vset.pattern.permute.xlu0 2
  %201 = vperm.xlu0 %200, %v174
  %v202 = vpop.permute.xlu0 %201
  %205 = vset.pattern.permute.xlu0 2
  %206 = vperm.xlu0 %205, %v175
  %v207 = vpop.permute.xlu0 %206
  %210 = vset.pattern.permute.xlu0 2
  %211 = vperm.xlu0 %210, %v176
  %v212 = vpop.permute.xlu0 %211
  %215 = vset.pattern.permute.xlu0 2
  %216 = vperm.xlu0 %215, %v177
  %v217 = vpop.permute.xlu0 %216
  %220 = vset.pattern.permute.xlu0 2
  %221 = vperm.xlu0 %220, %v178
  %v222 = vpop.permute.xlu0 %221
  %225 = vset.pattern.permute.xlu0 2
  %226 = vperm.xlu0 %225, %v179
  %v227 = vpop.permute.xlu0 %226
  %230 = vset.pattern.permute.xlu0 2
  %231 = vperm.xlu0 %230, %v180
  %v232 = vpop.permute.xlu0 %231
  %235 = vset.pattern.permute.xlu0 2
  %236 = vperm.xlu0 %235, %v181
  %v237 = vpop.permute.xlu0 %236
  %240 = vset.pattern.permute.xlu0 2
  %241 = vperm.xlu0 %240, %v182
  %v242 = vpop.permute.xlu0 %241
  %245 = vset.pattern.permute.xlu0 2
  %246 = vperm.xlu0 %245, %v183
  %v247 = vpop.permute.xlu0 %246
  %250 = vset.pattern.permute.xlu0 2
  %251 = vperm.xlu0 %250, %v184
  %v252 = vpop.permute.xlu0 %251
  %255 = vset.pattern.permute.xlu0 2
  %256 = vperm.xlu0 %255, %v185
  %v257 = vpop.permute.xlu0 %256
  %260 = vset.pattern.permute.xlu0 2
  %261 = vperm.xlu0 %260, %v186
  %v262 = vpop.permute.xlu0 %261
  %265 = vset.pattern.permute.xlu0 2
  %266 = vperm.xlu0 %265, %v187
  %v267 = vpop.permute.xlu0 %266
  %v269 = vlaneseq
  %v270 = vshrl.u32 %v269, 7
  %v271 = vsub.s32 0, %v270
  %v272 = vrot.slane %v188, %v271
  %v273 = vadd.f32 %v192, %v272
  %v274 = vadd.f32 %v197, %v272
  %v275 = vadd.f32 %v202, %v272
  %v276 = vadd.f32 %v207, %v272
  %v277 = vadd.f32 %v212, %v272
  %v278 = vadd.f32 %v217, %v272
  %v279 = vadd.f32 %v222, %v272
  %v280 = vadd.f32 %v227, %v272
  %v281 = vadd.f32 %v232, %v272
  %v282 = vadd.f32 %v237, %v272
  %v283 = vadd.f32 %v242, %v272
  %v284 = vadd.f32 %v247, %v272
  %v285 = vadd.f32 %v252, %v272
  %v286 = vadd.f32 %v257, %v272
  %v287 = vadd.f32 %v262, %v272
  %v288 = vadd.f32 %v267, %v272
  %v289 = vmul.f32 %v273, 0.2
  %v290 = vmul.f32 %v274, 0.2
  %v291 = vmul.f32 %v275, 0.2
  %v292 = vmul.f32 %v276, 0.2
  %v293 = vmul.f32 %v277, 0.2
  %v294 = vmul.f32 %v278, 0.2
  %v295 = vmul.f32 %v279, 0.2
  %v296 = vmul.f32 %v280, 0.2
  %v297 = vmul.f32 %v281, 0.2
  %v298 = vmul.f32 %v282, 0.2
  %v299 = vmul.f32 %v283, 0.2
  %v300 = vmul.f32 %v284, 0.2
  %v301 = vmul.f32 %v285, 0.2
  %v302 = vmul.f32 %v286, 0.2
  %v303 = vmul.f32 %v287, 0.2
  %v304 = vmul.f32 %v288, 0.2
  %v305 = vmax.f32 %v273, %v289
  %v306 = vmax.f32 %v274, %v290
  %v307 = vmax.f32 %v275, %v291
  %v308 = vmax.f32 %v276, %v292
  %v309 = vmax.f32 %v277, %v293
  %v310 = vmax.f32 %v278, %v294
  %v311 = vmax.f32 %v279, %v295
  %v312 = vmax.f32 %v280, %v296
  %v313 = vmax.f32 %v281, %v297
  %v314 = vmax.f32 %v282, %v298
  %v315 = vmax.f32 %v283, %v299
  %v316 = vmax.f32 %v284, %v300
  %v317 = vmax.f32 %v285, %v301
  %v318 = vmax.f32 %v286, %v302
  %v319 = vmax.f32 %v287, %v303
  %v320 = vmax.f32 %v288, %v304
  %v321 = vsel %vm156, %v305, -1e+30
  %v322 = vsel %vm157, %v306, -1e+30
  %v323 = vsel %vm158, %v307, -1e+30
  %v324 = vsel %vm159, %v308, -1e+30
  %v325 = vsel %vm160, %v309, -1e+30
  %v326 = vsel %vm161, %v310, -1e+30
  %v327 = vsel %vm162, %v311, -1e+30
  %v328 = vsel %vm163, %v312, -1e+30
  %v329 = vsel %vm164, %v313, -1e+30
  %v330 = vsel %vm165, %v314, -1e+30
  %v331 = vsel %vm166, %v315, -1e+30
  %v332 = vsel %vm167, %v316, -1e+30
  %v333 = vsel %vm168, %v317, -1e+30
  %v334 = vsel %vm169, %v318, -1e+30
  %v335 = vsel %vm170, %v319, -1e+30
  %v336 = vsel %vm171, %v320, -1e+30
  %337 = vmax.xlane.f32.xlu0 %v321
  %v338 = vpop.xlane.xlu0 %337
  %339 = vmax.xlane.f32.xlu0 %v322
  %v340 = vpop.xlane.xlu0 %339
  %341 = vmax.xlane.f32.xlu0 %v323
  %v342 = vpop.xlane.xlu0 %341
  %343 = vmax.xlane.f32.xlu0 %v324
  %v344 = vpop.xlane.xlu0 %343
  %345 = vmax.xlane.f32.xlu0 %v325
  %v346 = vpop.xlane.xlu0 %345
  %347 = vmax.xlane.f32.xlu0 %v326
  %v348 = vpop.xlane.xlu0 %347
  %349 = vmax.xlane.f32.xlu0 %v327
  %v350 = vpop.xlane.xlu0 %349
  %351 = vmax.xlane.f32.xlu0 %v328
  %v352 = vpop.xlane.xlu0 %351
  %353 = vmax.xlane.f32.xlu0 %v329
  %v354 = vpop.xlane.xlu0 %353
  %355 = vmax.xlane.f32.xlu0 %v330
  %v356 = vpop.xlane.xlu0 %355
  %357 = vmax.xlane.f32.xlu0 %v331
  %v358 = vpop.xlane.xlu0 %357
  %359 = vmax.xlane.f32.xlu0 %v332
  %v360 = vpop.xlane.xlu0 %359
  %361 = vmax.xlane.f32.xlu0 %v333
  %v362 = vpop.xlane.xlu0 %361
  %363 = vmax.xlane.f32.xlu0 %v334
  %v364 = vpop.xlane.xlu0 %363
  %365 = vmax.xlane.f32.xlu0 %v335
  %v366 = vpop.xlane.xlu0 %365
  %367 = vmax.xlane.f32.xlu0 %v336
  %v368 = vpop.xlane.xlu0 %367
  %v369 = vld [vmem:[#allocation2] sm:$0xff]
  %v370 = vld [vmem:[#allocation2 + $0x8] sm:$0xff]
  %v371 = vld [vmem:[#allocation2 + $0x10] sm:$0xff]
  %v372 = vld [vmem:[#allocation2 + $0x18] sm:$0xff]
  %v373 = vld [vmem:[#allocation2 + $0x20] sm:$0xff]
  %v374 = vld [vmem:[#allocation2 + $0x28] sm:$0xff]
  %v375 = vld [vmem:[#allocation2 + $0x30] sm:$0xff]
  %v376 = vld [vmem:[#allocation2 + $0x38] sm:$0xff]
  %v377 = vld [vmem:[#allocation2 + $0x40] sm:$0xff]
  %v378 = vld [vmem:[#allocation2 + $0x48] sm:$0xff]
  %v379 = vld [vmem:[#allocation2 + $0x50] sm:$0xff]
  %v380 = vld [vmem:[#allocation2 + $0x58] sm:$0xff]
  %v381 = vld [vmem:[#allocation2 + $0x60] sm:$0xff]
  %v382 = vld [vmem:[#allocation2 + $0x68] sm:$0xff]
  %v383 = vld [vmem:[#allocation2 + $0x70] sm:$0xff]
  %v384 = vld [vmem:[#allocation2 + $0x78] sm:$0xff]
  %v385 = vmax.f32 %v369, %v338
  %v386 = vmax.f32 %v370, %v340
  %v387 = vmax.f32 %v371, %v342
  %v388 = vmax.f32 %v372, %v344
  %v389 = vmax.f32 %v373, %v346
  %v390 = vmax.f32 %v374, %v348
  %v391 = vmax.f32 %v375, %v350
  %v392 = vmax.f32 %v376, %v352
  %v393 = vmax.f32 %v377, %v354
  %v394 = vmax.f32 %v378, %v356
  %v395 = vmax.f32 %v379, %v358
  %v396 = vmax.f32 %v380, %v360
  %v397 = vmax.f32 %v381, %v362
  %v398 = vmax.f32 %v382, %v364
  %v399 = vmax.f32 %v383, %v366
  %v400 = vmax.f32 %v384, %v368
  %v401 = vsub.f32 %v369, %v385
  %v402 = vsub.f32 %v370, %v386
  %v403 = vsub.f32 %v371, %v387
  %v404 = vsub.f32 %v372, %v388
  %v405 = vsub.f32 %v373, %v389
  %v406 = vsub.f32 %v374, %v390
  %v407 = vsub.f32 %v375, %v391
  %v408 = vsub.f32 %v376, %v392
  %v409 = vsub.f32 %v377, %v393
  %v410 = vsub.f32 %v378, %v394
  %v411 = vsub.f32 %v379, %v395
  %v412 = vsub.f32 %v380, %v396
  %v413 = vsub.f32 %v381, %v397
  %v414 = vsub.f32 %v382, %v398
  %v415 = vsub.f32 %v383, %v399
  %v416 = vsub.f32 %v384, %v400
  %v417 = vmul.f32 %v401, 1.442695
  %v418 = vpow.pop %v417
  %v419 = vmul.f32 %v402, 1.442695
  %v420 = vpow.pop %v419
  %v421 = vmul.f32 %v403, 1.442695
  %v422 = vpow.pop %v421
  %v423 = vmul.f32 %v404, 1.442695
  %v424 = vpow.pop %v423
  %v425 = vmul.f32 %v405, 1.442695
  %v426 = vpow.pop %v425
  %v427 = vmul.f32 %v406, 1.442695
  %v428 = vpow.pop %v427
  %v429 = vmul.f32 %v407, 1.442695
  %v430 = vpow.pop %v429
  %v431 = vmul.f32 %v408, 1.442695
  %v432 = vpow.pop %v431
  %v433 = vmul.f32 %v409, 1.442695
  %v434 = vpow.pop %v433
  %v435 = vmul.f32 %v410, 1.442695
  %v436 = vpow.pop %v435
  %v437 = vmul.f32 %v411, 1.442695
  %v438 = vpow.pop %v437
  %v439 = vmul.f32 %v412, 1.442695
  %v440 = vpow.pop %v439
  %v441 = vmul.f32 %v413, 1.442695
  %v442 = vpow.pop %v441
  %v443 = vmul.f32 %v414, 1.442695
  %v444 = vpow.pop %v443
  %v445 = vmul.f32 %v415, 1.442695
  %v446 = vpow.pop %v445
  %v447 = vmul.f32 %v416, 1.442695
  %v448 = vpow.pop %v447
  %450 = vset.pattern.permute.xlu0 0
  %451 = vperm.xlu0 %450, %v385
  %v452 = vpop.permute.xlu0 %451
  %455 = vset.pattern.permute.xlu0 0
  %456 = vperm.xlu0 %455, %v386
  %v457 = vpop.permute.xlu0 %456
  %460 = vset.pattern.permute.xlu0 0
  %461 = vperm.xlu0 %460, %v387
  %v462 = vpop.permute.xlu0 %461
  %465 = vset.pattern.permute.xlu0 0
  %466 = vperm.xlu0 %465, %v388
  %v467 = vpop.permute.xlu0 %466
  %470 = vset.pattern.permute.xlu0 0
  %471 = vperm.xlu0 %470, %v389
  %v472 = vpop.permute.xlu0 %471
  %475 = vset.pattern.permute.xlu0 0
  %476 = vperm.xlu0 %475, %v390
  %v477 = vpop.permute.xlu0 %476
  %480 = vset.pattern.permute.xlu0 0
  %481 = vperm.xlu0 %480, %v391
  %v482 = vpop.permute.xlu0 %481
  %485 = vset.pattern.permute.xlu0 0
  %486 = vperm.xlu0 %485, %v392
  %v487 = vpop.permute.xlu0 %486
  %490 = vset.pattern.permute.xlu0 0
  %491 = vperm.xlu0 %490, %v393
  %v492 = vpop.permute.xlu0 %491
  %495 = vset.pattern.permute.xlu0 0
  %496 = vperm.xlu0 %495, %v394
  %v497 = vpop.permute.xlu0 %496
  %500 = vset.pattern.permute.xlu0 0
  %501 = vperm.xlu0 %500, %v395
  %v502 = vpop.permute.xlu0 %501
  %505 = vset.pattern.permute.xlu0 0
  %506 = vperm.xlu0 %505, %v396
  %v507 = vpop.permute.xlu0 %506
  %510 = vset.pattern.permute.xlu0 0
  %511 = vperm.xlu0 %510, %v397
  %v512 = vpop.permute.xlu0 %511
  %515 = vset.pattern.permute.xlu0 0
  %516 = vperm.xlu0 %515, %v398
  %v517 = vpop.permute.xlu0 %516
  %520 = vset.pattern.permute.xlu0 0
  %521 = vperm.xlu0 %520, %v399
  %v522 = vpop.permute.xlu0 %521
  %525 = vset.pattern.permute.xlu0 0
  %526 = vperm.xlu0 %525, %v400
  %v527 = vpop.permute.xlu0 %526
  %v529 = vsub.f32 %v305, %v452
  %v530 = vsub.f32 %v306, %v457
  %v531 = vsub.f32 %v307, %v462
  %v532 = vsub.f32 %v308, %v467
  %v533 = vsub.f32 %v309, %v472
  %v534 = vsub.f32 %v310, %v477
  %v535 = vsub.f32 %v311, %v482
  %v536 = vsub.f32 %v312, %v487
  %v537 = vsub.f32 %v313, %v492
  %v538 = vsub.f32 %v314, %v497
  %v539 = vsub.f32 %v315, %v502
  %v540 = vsub.f32 %v316, %v507
  %v541 = vsub.f32 %v317, %v512
  %v542 = vsub.f32 %v318, %v517
  %v543 = vsub.f32 %v319, %v522
  %v544 = vsub.f32 %v320, %v527
  %v545 = vmin.f32 %v529, 0.0
  %v546 = vmin.f32 %v530, 0.0
  %v547 = vmin.f32 %v531, 0.0
  %v548 = vmin.f32 %v532, 0.0
  %v549 = vmin.f32 %v533, 0.0
  %v550 = vmin.f32 %v534, 0.0
  %v551 = vmin.f32 %v535, 0.0
  %v552 = vmin.f32 %v536, 0.0
  %v553 = vmin.f32 %v537, 0.0
  %v554 = vmin.f32 %v538, 0.0
  %v555 = vmin.f32 %v539, 0.0
  %v556 = vmin.f32 %v540, 0.0
  %v557 = vmin.f32 %v541, 0.0
  %v558 = vmin.f32 %v542, 0.0
  %v559 = vmin.f32 %v543, 0.0
  %v560 = vmin.f32 %v544, 0.0
  %v561 = vmul.f32 %v545, 1.442695
  %v562 = vpow.pop %v561
  %v563 = vmul.f32 %v546, 1.442695
  %v564 = vpow.pop %v563
  %v565 = vmul.f32 %v547, 1.442695
  %v566 = vpow.pop %v565
  %v567 = vmul.f32 %v548, 1.442695
  %v568 = vpow.pop %v567
  %v569 = vmul.f32 %v549, 1.442695
  %v570 = vpow.pop %v569
  %v571 = vmul.f32 %v550, 1.442695
  %v572 = vpow.pop %v571
  %v573 = vmul.f32 %v551, 1.442695
  %v574 = vpow.pop %v573
  %v575 = vmul.f32 %v552, 1.442695
  %v576 = vpow.pop %v575
  %v577 = vmul.f32 %v553, 1.442695
  %v578 = vpow.pop %v577
  %v579 = vmul.f32 %v554, 1.442695
  %v580 = vpow.pop %v579
  %v581 = vmul.f32 %v555, 1.442695
  %v582 = vpow.pop %v581
  %v583 = vmul.f32 %v556, 1.442695
  %v584 = vpow.pop %v583
  %v585 = vmul.f32 %v557, 1.442695
  %v586 = vpow.pop %v585
  %v587 = vmul.f32 %v558, 1.442695
  %v588 = vpow.pop %v587
  %v589 = vmul.f32 %v559, 1.442695
  %v590 = vpow.pop %v589
  %v591 = vmul.f32 %v560, 1.442695
  %v592 = vpow.pop %v591
  %v593 = vmul.f32 %v140, %v562
  %v594 = vmul.f32 %v141, %v564
  %v595 = vmul.f32 %v142, %v566
  %v596 = vmul.f32 %v143, %v568
  %v597 = vmul.f32 %v144, %v570
  %v598 = vmul.f32 %v145, %v572
  %v599 = vmul.f32 %v146, %v574
  %v600 = vmul.f32 %v147, %v576
  %v601 = vmul.f32 %v148, %v578
  %v602 = vmul.f32 %v149, %v580
  %v603 = vmul.f32 %v150, %v582
  %v604 = vmul.f32 %v151, %v584
  %v605 = vmul.f32 %v152, %v586
  %v606 = vmul.f32 %v153, %v588
  %v607 = vmul.f32 %v154, %v590
  %v608 = vmul.f32 %v155, %v592
  %v609 = vld [vmem:[#allocation3] sm:$0xff]
  %v610 = vld [vmem:[#allocation3 + $0x8] sm:$0xff]
  %v611 = vld [vmem:[#allocation3 + $0x10] sm:$0xff]
  %v612 = vld [vmem:[#allocation3 + $0x18] sm:$0xff]
  %v613 = vld [vmem:[#allocation3 + $0x20] sm:$0xff]
  %v614 = vld [vmem:[#allocation3 + $0x28] sm:$0xff]
  %v615 = vld [vmem:[#allocation3 + $0x30] sm:$0xff]
  %v616 = vld [vmem:[#allocation3 + $0x38] sm:$0xff]
  %v617 = vld [vmem:[#allocation3 + $0x40] sm:$0xff]
  %v618 = vld [vmem:[#allocation3 + $0x48] sm:$0xff]
  %v619 = vld [vmem:[#allocation3 + $0x50] sm:$0xff]
  %v620 = vld [vmem:[#allocation3 + $0x58] sm:$0xff]
  %v621 = vld [vmem:[#allocation3 + $0x60] sm:$0xff]
  %v622 = vld [vmem:[#allocation3 + $0x68] sm:$0xff]
  %v623 = vld [vmem:[#allocation3 + $0x70] sm:$0xff]
  %v624 = vld [vmem:[#allocation3 + $0x78] sm:$0xff]
  %v625 = vmul.f32 %v418, %v609
  %v626 = vmul.f32 %v420, %v610
  %v627 = vmul.f32 %v422, %v611
  %v628 = vmul.f32 %v424, %v612
  %v629 = vmul.f32 %v426, %v613
  %v630 = vmul.f32 %v428, %v614
  %v631 = vmul.f32 %v430, %v615
  %v632 = vmul.f32 %v432, %v616
  %v633 = vmul.f32 %v434, %v617
  %v634 = vmul.f32 %v436, %v618
  %v635 = vmul.f32 %v438, %v619
  %v636 = vmul.f32 %v440, %v620
  %v637 = vmul.f32 %v442, %v621
  %v638 = vmul.f32 %v444, %v622
  %v639 = vmul.f32 %v446, %v623
  %v640 = vmul.f32 %v448, %v624
  %641 = vadd.xlane.f32.xlu0 %v593
  %v642 = vpop.xlane.xlu0 %641
  %643 = vadd.xlane.f32.xlu0 %v594
  %v644 = vpop.xlane.xlu0 %643
  %645 = vadd.xlane.f32.xlu0 %v595
  %v646 = vpop.xlane.xlu0 %645
  %647 = vadd.xlane.f32.xlu0 %v596
  %v648 = vpop.xlane.xlu0 %647
  %649 = vadd.xlane.f32.xlu0 %v597
  %v650 = vpop.xlane.xlu0 %649
  %651 = vadd.xlane.f32.xlu0 %v598
  %v652 = vpop.xlane.xlu0 %651
  %653 = vadd.xlane.f32.xlu0 %v599
  %v654 = vpop.xlane.xlu0 %653
  %655 = vadd.xlane.f32.xlu0 %v600
  %v656 = vpop.xlane.xlu0 %655
  %657 = vadd.xlane.f32.xlu0 %v601
  %v658 = vpop.xlane.xlu0 %657
  %659 = vadd.xlane.f32.xlu0 %v602
  %v660 = vpop.xlane.xlu0 %659
  %661 = vadd.xlane.f32.xlu0 %v603
  %v662 = vpop.xlane.xlu0 %661
  %663 = vadd.xlane.f32.xlu0 %v604
  %v664 = vpop.xlane.xlu0 %663
  %665 = vadd.xlane.f32.xlu0 %v605
  %v666 = vpop.xlane.xlu0 %665
  %667 = vadd.xlane.f32.xlu0 %v606
  %v668 = vpop.xlane.xlu0 %667
  %669 = vadd.xlane.f32.xlu0 %v607
  %v670 = vpop.xlane.xlu0 %669
  %671 = vadd.xlane.f32.xlu0 %v608
  %v672 = vpop.xlane.xlu0 %671
  %v673 = vadd.f32 %v625, %v642
  %v674 = vadd.f32 %v626, %v644
  %v675 = vadd.f32 %v627, %v646
  %v676 = vadd.f32 %v628, %v648
  %v677 = vadd.f32 %v629, %v650
  %v678 = vadd.f32 %v630, %v652
  %v679 = vadd.f32 %v631, %v654
  %v680 = vadd.f32 %v632, %v656
  %v681 = vadd.f32 %v633, %v658
  %v682 = vadd.f32 %v634, %v660
  %v683 = vadd.f32 %v635, %v662
  %v684 = vadd.f32 %v636, %v664
  %v685 = vadd.f32 %v637, %v666
  %v686 = vadd.f32 %v638, %v668
  %v687 = vadd.f32 %v639, %v670
  %v688 = vadd.f32 %v640, %v672
  %vm689 = vcmask 7168
  %690 = vst.msk [vmem:[#allocation3] sm:$0xff] %vm689, %v673
  %691 = vst.msk [vmem:[#allocation3 + $0x8] sm:$0xff] %vm689, %v674
  %692 = vst.msk [vmem:[#allocation3 + $0x10] sm:$0xff] %vm689, %v675
  %693 = vst.msk [vmem:[#allocation3 + $0x18] sm:$0xff] %vm689, %v676
  %694 = vst.msk [vmem:[#allocation3 + $0x20] sm:$0xff] %vm689, %v677
  %695 = vst.msk [vmem:[#allocation3 + $0x28] sm:$0xff] %vm689, %v678
  %696 = vst.msk [vmem:[#allocation3 + $0x30] sm:$0xff] %vm689, %v679
  %697 = vst.msk [vmem:[#allocation3 + $0x38] sm:$0xff] %vm689, %v680
  %698 = vst.msk [vmem:[#allocation3 + $0x40] sm:$0xff] %vm689, %v681
  %699 = vst.msk [vmem:[#allocation3 + $0x48] sm:$0xff] %vm689, %v682
  %700 = vst.msk [vmem:[#allocation3 + $0x50] sm:$0xff] %vm689, %v683
  %701 = vst.msk [vmem:[#allocation3 + $0x58] sm:$0xff] %vm689, %v684
  %702 = vst.msk [vmem:[#allocation3 + $0x60] sm:$0xff] %vm689, %v685
  %703 = vst.msk [vmem:[#allocation3 + $0x68] sm:$0xff] %vm689, %v686
  %704 = vst.msk [vmem:[#allocation3 + $0x70] sm:$0xff] %vm689, %v687
  %705 = vst.msk [vmem:[#allocation3 + $0x78] sm:$0xff] %vm689, %v688
  %v706 = vld [vmem:[#allocation4] sm:$0xff]
  %v707 = vld [vmem:[#allocation4 + $0x8] sm:$0xff]
  %v708 = vld [vmem:[#allocation4 + $0x10] sm:$0xff]
  %v709 = vld [vmem:[#allocation4 + $0x18] sm:$0xff]
  %v710 = vld [vmem:[#allocation4 + $0x20] sm:$0xff]
  %v711 = vld [vmem:[#allocation4 + $0x28] sm:$0xff]
  %v712 = vld [vmem:[#allocation4 + $0x30] sm:$0xff]
  %v713 = vld [vmem:[#allocation4 + $0x38] sm:$0xff]
  %v714 = vld [vmem:[#allocation4 + $0x40] sm:$0xff]
  %v715 = vld [vmem:[#allocation4 + $0x48] sm:$0xff]
  %v716 = vld [vmem:[#allocation4 + $0x50] sm:$0xff]
  %v717 = vld [vmem:[#allocation4 + $0x58] sm:$0xff]
  %v718 = vld [vmem:[#allocation4 + $0x60] sm:$0xff]
  %v719 = vld [vmem:[#allocation4 + $0x68] sm:$0xff]
  %v720 = vld [vmem:[#allocation4 + $0x70] sm:$0xff]
  %v721 = vld [vmem:[#allocation4 + $0x78] sm:$0xff]
  %723 = vset.pattern.permute.xlu0 0
  %724 = vperm.xlu0 %723, %v418
  %v725 = vpop.permute.xlu0 %724
  %728 = vset.pattern.permute.xlu0 0
  %729 = vperm.xlu0 %728, %v420
  %v730 = vpop.permute.xlu0 %729
  %733 = vset.pattern.permute.xlu0 0
  %734 = vperm.xlu0 %733, %v422
  %v735 = vpop.permute.xlu0 %734
  %738 = vset.pattern.permute.xlu0 0
  %739 = vperm.xlu0 %738, %v424
  %v740 = vpop.permute.xlu0 %739
  %743 = vset.pattern.permute.xlu0 0
  %744 = vperm.xlu0 %743, %v426
  %v745 = vpop.permute.xlu0 %744
  %748 = vset.pattern.permute.xlu0 0
  %749 = vperm.xlu0 %748, %v428
  %v750 = vpop.permute.xlu0 %749
  %753 = vset.pattern.permute.xlu0 0
  %754 = vperm.xlu0 %753, %v430
  %v755 = vpop.permute.xlu0 %754
  %758 = vset.pattern.permute.xlu0 0
  %759 = vperm.xlu0 %758, %v432
  %v760 = vpop.permute.xlu0 %759
  %763 = vset.pattern.permute.xlu0 0
  %764 = vperm.xlu0 %763, %v434
  %v765 = vpop.permute.xlu0 %764
  %768 = vset.pattern.permute.xlu0 0
  %769 = vperm.xlu0 %768, %v436
  %v770 = vpop.permute.xlu0 %769
  %773 = vset.pattern.permute.xlu0 0
  %774 = vperm.xlu0 %773, %v438
  %v775 = vpop.permute.xlu0 %774
  %778 = vset.pattern.permute.xlu0 0
  %779 = vperm.xlu0 %778, %v440
  %v780 = vpop.permute.xlu0 %779
  %783 = vset.pattern.permute.xlu0 0
  %784 = vperm.xlu0 %783, %v442
  %v785 = vpop.permute.xlu0 %784
  %788 = vset.pattern.permute.xlu0 0
  %789 = vperm.xlu0 %788, %v444
  %v790 = vpop.permute.xlu0 %789
  %793 = vset.pattern.permute.xlu0 0
  %794 = vperm.xlu0 %793, %v446
  %v795 = vpop.permute.xlu0 %794
  %798 = vset.pattern.permute.xlu0 0
  %799 = vperm.xlu0 %798, %v448
  %v800 = vpop.permute.xlu0 %799
  %v802 = vmul.f32 %v725, %v706
  %v803 = vmul.f32 %v730, %v707
  %v804 = vmul.f32 %v735, %v708
  %v805 = vmul.f32 %v740, %v709
  %v806 = vmul.f32 %v745, %v710
  %v807 = vmul.f32 %v750, %v711
  %v808 = vmul.f32 %v755, %v712
  %v809 = vmul.f32 %v760, %v713
  %v810 = vmul.f32 %v765, %v714
  %v811 = vmul.f32 %v770, %v715
  %v812 = vmul.f32 %v775, %v716
  %v813 = vmul.f32 %v780, %v717
  %v814 = vmul.f32 %v785, %v718
  %v815 = vmul.f32 %v790, %v719
  %v816 = vmul.f32 %v795, %v720
  %v817 = vmul.f32 %v800, %v721
  %v818 = vld [vmem:[%s3] sm:$0xff]
  %v819 = vld [vmem:[%s3 + $0x8] sm:$0xff]
  %v820 = vld [vmem:[%s3 + $0x10] sm:$0xff]
  %v821 = vld [vmem:[%s3 + $0x18] sm:$0xff]
  %v822 = vld [vmem:[%s3 + $0x20] sm:$0xff]
  %v823 = vld [vmem:[%s3 + $0x28] sm:$0xff]
  %v824 = vld [vmem:[%s3 + $0x30] sm:$0xff]
  %v825 = vld [vmem:[%s3 + $0x38] sm:$0xff]
  %v826 = vld [vmem:[%s3 + $0x40] sm:$0xff]
  %v827 = vld [vmem:[%s3 + $0x48] sm:$0xff]
  %v828 = vld [vmem:[%s3 + $0x50] sm:$0xff]
  %v829 = vld [vmem:[%s3 + $0x58] sm:$0xff]
  %v830 = vld [vmem:[%s3 + $0x60] sm:$0xff]
  %v831 = vld [vmem:[%s3 + $0x68] sm:$0xff]
  %v832 = vld [vmem:[%s3 + $0x70] sm:$0xff]
  %v833 = vld [vmem:[%s3 + $0x78] sm:$0xff]
  %834 = vmatprep.subr.mxu0 0.0
  %835 = vmatpush1.msra.mxu0 %v833
  %836 = vmatprep.subr.mxu0 0.0
  %837 = vmatpush1.msra.mxu0 %v832
  %838 = vmatprep.subr.mxu0 0.0
  %839 = vmatpush1.msra.mxu0 %v831
  %840 = vmatprep.subr.mxu0 0.0
  %841 = vmatpush1.msra.mxu0 %v830
  %842 = vmatprep.subr.mxu0 0.0
  %843 = vmatpush1.msra.mxu0 %v829
  %844 = vmatprep.subr.mxu0 0.0
  %845 = vmatpush1.msra.mxu0 %v828
  %846 = vmatprep.subr.mxu0 0.0
  %847 = vmatpush1.msra.mxu0 %v827
  %848 = vmatprep.subr.mxu0 0.0
  %849 = vmatpush1.msra.mxu0 %v826
  %850 = vmatprep.subr.mxu0 0.0
  %851 = vmatpush1.msra.mxu0 %v825
  %852 = vmatprep.subr.mxu0 0.0
  %853 = vmatpush1.msra.mxu0 %v824
  %854 = vmatprep.subr.mxu0 0.0
  %855 = vmatpush1.msra.mxu0 %v823
  %856 = vmatprep.subr.mxu0 0.0
  %857 = vmatpush1.msra.mxu0 %v822
  %858 = vmatprep.subr.mxu0 0.0
  %859 = vmatpush1.msra.mxu0 %v821
  %860 = vmatprep.subr.mxu0 0.0
  %861 = vmatpush1.msra.mxu0 %v820
  %862 = vmatprep.subr.mxu0 0.0
  %863 = vmatpush1.msra.mxu0 %v819
  %864 = vmatprep.subr.mxu0 0.0
  %865 = vmatpush1.msra.mxu0 %v818
  %866 = vmatprep.subr.mxu0 0.0
  %867 = vmatpush2.msra.mxu0 0.0
  %868 = vmatprep.subr.mxu0 0.0
  %869 = vmatpush2.msra.mxu0 0.0
  %870 = vmatprep.subr.mxu0 0.0
  %871 = vmatpush2.msra.mxu0 0.0
  %872 = vmatprep.subr.mxu0 0.0
  %873 = vmatpush2.msra.mxu0 0.0
  %874 = vmatprep.subr.mxu0 0.0
  %875 = vmatpush2.msra.mxu0 0.0
  %876 = vmatprep.subr.mxu0 0.0
  %877 = vmatpush2.msra.mxu0 0.0
  %878 = vmatprep.subr.mxu0 0.0
  %879 = vmatpush2.msra.mxu0 0.0
  %880 = vmatprep.subr.mxu0 0.0
  %881 = vmatpush2.msra.mxu0 0.0
  %882 = vmatprep.subr.mxu0 0.0
  %883 = vmatpush2.msra.mxu0 0.0
  %884 = vmatprep.subr.mxu0 0.0
  %885 = vmatpush2.msra.mxu0 0.0
  %886 = vmatprep.subr.mxu0 0.0
  %887 = vmatpush2.msra.mxu0 0.0
  %888 = vmatprep.subr.mxu0 0.0
  %889 = vmatpush2.msra.mxu0 0.0
  %890 = vmatprep.subr.mxu0 0.0
  %891 = vmatpush2.msra.mxu0 0.0
  %892 = vmatprep.subr.mxu0 0.0
  %893 = vmatpush2.msra.mxu0 0.0
  %894 = vmatprep.subr.mxu0 0.0
  %895 = vmatpush2.msra.mxu0 0.0
  %896 = vmatprep.subr.mxu0 0.0
  %897 = vmatpush2.msra.mxu0 0.0
  %898 = vmatprep.mubr.f32.mxu0 0.0
  %899 = vmatmul.mubr.f32.gmra.mxu0 %v593
  %v900 = vpop.f32.mrf.mxu0
  %v901 = vadd.f32 0.0, %v900
  %v902 = vpop.f32.mrf.mxu0
  %903 = vmatprep.mubr.f32.mxu0 0.0
  %904 = vmatmul.mubr.f32.gmra.mxu0 %v594
  %v905 = vpop.f32.mrf.mxu0
  %v906 = vadd.f32 0.0, %v905
  %v907 = vpop.f32.mrf.mxu0
  %908 = vmatprep.mubr.f32.mxu0 0.0
  %909 = vmatmul.mubr.f32.gmra.mxu0 %v595
  %v910 = vpop.f32.mrf.mxu0
  %v911 = vadd.f32 0.0, %v910
  %v912 = vpop.f32.mrf.mxu0
  %913 = vmatprep.mubr.f32.mxu0 0.0
  %914 = vmatmul.mubr.f32.gmra.mxu0 %v596
  %v915 = vpop.f32.mrf.mxu0
  %v916 = vadd.f32 0.0, %v915
  %v917 = vpop.f32.mrf.mxu0
  %918 = vmatprep.mubr.f32.mxu0 0.0
  %919 = vmatmul.mubr.f32.gmra.mxu0 %v597
  %v920 = vpop.f32.mrf.mxu0
  %v921 = vadd.f32 0.0, %v920
  %v922 = vpop.f32.mrf.mxu0
  %923 = vmatprep.mubr.f32.mxu0 0.0
  %924 = vmatmul.mubr.f32.gmra.mxu0 %v598
  %v925 = vpop.f32.mrf.mxu0
  %v926 = vadd.f32 0.0, %v925
  %v927 = vpop.f32.mrf.mxu0
  %928 = vmatprep.mubr.f32.mxu0 0.0
  %929 = vmatmul.mubr.f32.gmra.mxu0 %v599
  %v930 = vpop.f32.mrf.mxu0
  %v931 = vadd.f32 0.0, %v930
  %v932 = vpop.f32.mrf.mxu0
  %933 = vmatprep.mubr.f32.mxu0 0.0
  %934 = vmatmul.mubr.f32.gmra.mxu0 %v600
  %v935 = vpop.f32.mrf.mxu0
  %v936 = vadd.f32 0.0, %v935
  %v937 = vpop.f32.mrf.mxu0
  %938 = vmatprep.mubr.f32.mxu0 0.0
  %939 = vmatmul.mubr.f32.gmra.mxu0 %v601
  %v940 = vpop.f32.mrf.mxu0
  %v941 = vadd.f32 0.0, %v940
  %v942 = vpop.f32.mrf.mxu0
  %943 = vmatprep.mubr.f32.mxu0 0.0
  %944 = vmatmul.mubr.f32.gmra.mxu0 %v602
  %v945 = vpop.f32.mrf.mxu0
  %v946 = vadd.f32 0.0, %v945
  %v947 = vpop.f32.mrf.mxu0
  %948 = vmatprep.mubr.f32.mxu0 0.0
  %949 = vmatmul.mubr.f32.gmra.mxu0 %v603
  %v950 = vpop.f32.mrf.mxu0
  %v951 = vadd.f32 0.0, %v950
  %v952 = vpop.f32.mrf.mxu0
  %953 = vmatprep.mubr.f32.mxu0 0.0
  %954 = vmatmul.mubr.f32.gmra.mxu0 %v604
  %v955 = vpop.f32.mrf.mxu0
  %v956 = vadd.f32 0.0, %v955
  %v957 = vpop.f32.mrf.mxu0
  %958 = vmatprep.mubr.f32.mxu0 0.0
  %959 = vmatmul.mubr.f32.gmra.mxu0 %v605
  %v960 = vpop.f32.mrf.mxu0
  %v961 = vadd.f32 0.0, %v960
  %v962 = vpop.f32.mrf.mxu0
  %963 = vmatprep.mubr.f32.mxu0 0.0
  %964 = vmatmul.mubr.f32.gmra.mxu0 %v606
  %v965 = vpop.f32.mrf.mxu0
  %v966 = vadd.f32 0.0, %v965
  %v967 = vpop.f32.mrf.mxu0
  %968 = vmatprep.mubr.f32.mxu0 0.0
  %969 = vmatmul.mubr.f32.gmra.mxu0 %v607
  %v970 = vpop.f32.mrf.mxu0
  %v971 = vadd.f32 0.0, %v970
  %v972 = vpop.f32.mrf.mxu0
  %973 = vmatprep.mubr.f32.mxu0 0.0
  %974 = vmatmul.mubr.f32.gmra.mxu0 %v608
  %v975 = vpop.f32.mrf.mxu0
  %v976 = vadd.f32 0.0, %v975
  %v977 = vpop.f32.mrf.mxu0
  %978 = vdwg.mxu0
  %v979 = vadd.f32 %v802, %v901
  %v980 = vadd.f32 %v803, %v906
  %v981 = vadd.f32 %v804, %v911
  %v982 = vadd.f32 %v805, %v916
  %v983 = vadd.f32 %v806, %v921
  %v984 = vadd.f32 %v807, %v926
  %v985 = vadd.f32 %v808, %v931
  %v986 = vadd.f32 %v809, %v936
  %v987 = vadd.f32 %v810, %v941
  %v988 = vadd.f32 %v811, %v946
  %v989 = vadd.f32 %v812, %v951
  %v990 = vadd.f32 %v813, %v956
  %v991 = vadd.f32 %v814, %v961
  %v992 = vadd.f32 %v815, %v966
  %v993 = vadd.f32 %v816, %v971
  %v994 = vadd.f32 %v817, %v976
  %995 = vst [vmem:[#allocation4] sm:$0xff] %v979
  %996 = vst [vmem:[#allocation4 + $0x8] sm:$0xff] %v980
  %997 = vst [vmem:[#allocation4 + $0x10] sm:$0xff] %v981
  %998 = vst [vmem:[#allocation4 + $0x18] sm:$0xff] %v982
  %999 = vst [vmem:[#allocation4 + $0x20] sm:$0xff] %v983
  %1000 = vst [vmem:[#allocation4 + $0x28] sm:$0xff] %v984
  %1001 = vst [vmem:[#allocation4 + $0x30] sm:$0xff] %v985
  %1002 = vst [vmem:[#allocation4 + $0x38] sm:$0xff] %v986
  %1003 = vst [vmem:[#allocation4 + $0x40] sm:$0xff] %v987
  %1004 = vst [vmem:[#allocation4 + $0x48] sm:$0xff] %v988
  %1005 = vst [vmem:[#allocation4 + $0x50] sm:$0xff] %v989
  %1006 = vst [vmem:[#allocation4 + $0x58] sm:$0xff] %v990
  %1007 = vst [vmem:[#allocation4 + $0x60] sm:$0xff] %v991
  %1008 = vst [vmem:[#allocation4 + $0x68] sm:$0xff] %v992
  %1009 = vst [vmem:[#allocation4 + $0x70] sm:$0xff] %v993
  %1010 = vst [vmem:[#allocation4 + $0x78] sm:$0xff] %v994
  %1011 = vst.msk [vmem:[#allocation2] sm:$0xff] %vm689, %v385
  %1012 = vst.msk [vmem:[#allocation2 + $0x8] sm:$0xff] %vm689, %v386
  %1013 = vst.msk [vmem:[#allocation2 + $0x10] sm:$0xff] %vm689, %v387
  %1014 = vst.msk [vmem:[#allocation2 + $0x18] sm:$0xff] %vm689, %v388
  %1015 = vst.msk [vmem:[#allocation2 + $0x20] sm:$0xff] %vm689, %v389
  %1016 = vst.msk [vmem:[#allocation2 + $0x28] sm:$0xff] %vm689, %v390
  %1017 = vst.msk [vmem:[#allocation2 + $0x30] sm:$0xff] %vm689, %v391
  %1018 = vst.msk [vmem:[#allocation2 + $0x38] sm:$0xff] %vm689, %v392
  %1019 = vst.msk [vmem:[#allocation2 + $0x40] sm:$0xff] %vm689, %v393
  %1020 = vst.msk [vmem:[#allocation2 + $0x48] sm:$0xff] %vm689, %v394
  %1021 = vst.msk [vmem:[#allocation2 + $0x50] sm:$0xff] %vm689, %v395
  %1022 = vst.msk [vmem:[#allocation2 + $0x58] sm:$0xff] %vm689, %v396
  %1023 = vst.msk [vmem:[#allocation2 + $0x60] sm:$0xff] %vm689, %v397
  %1024 = vst.msk [vmem:[#allocation2 + $0x68] sm:$0xff] %vm689, %v398
  %1025 = vst.msk [vmem:[#allocation2 + $0x70] sm:$0xff] %vm689, %v399
  %1026 = vst.msk [vmem:[#allocation2 + $0x78] sm:$0xff] %vm689, %v400
  %v1027 = vld [vmem:[%s2 + $0x1] sm:$0x1]
  %1028 = vset.pattern.permute.xlu0 3
  %1029 = vperm.xlu0 %1028, %v172
  %v1030 = vpop.permute.xlu0 %1029
  %1032 = vset.pattern.permute.xlu0 3
  %1033 = vperm.xlu0 %1032, %v173
  %v1034 = vpop.permute.xlu0 %1033
  %1036 = vset.pattern.permute.xlu0 3
  %1037 = vperm.xlu0 %1036, %v174
  %v1038 = vpop.permute.xlu0 %1037
  %1040 = vset.pattern.permute.xlu0 3
  %1041 = vperm.xlu0 %1040, %v175
  %v1042 = vpop.permute.xlu0 %1041
  %1044 = vset.pattern.permute.xlu0 3
  %1045 = vperm.xlu0 %1044, %v176
  %v1046 = vpop.permute.xlu0 %1045
  %1048 = vset.pattern.permute.xlu0 3
  %1049 = vperm.xlu0 %1048, %v177
  %v1050 = vpop.permute.xlu0 %1049
  %1052 = vset.pattern.permute.xlu0 3
  %1053 = vperm.xlu0 %1052, %v178
  %v1054 = vpop.permute.xlu0 %1053
  %1056 = vset.pattern.permute.xlu0 3
  %1057 = vperm.xlu0 %1056, %v179
  %v1058 = vpop.permute.xlu0 %1057
  %1060 = vset.pattern.permute.xlu0 3
  %1061 = vperm.xlu0 %1060, %v180
  %v1062 = vpop.permute.xlu0 %1061
  %1064 = vset.pattern.permute.xlu0 3
  %1065 = vperm.xlu0 %1064, %v181
  %v1066 = vpop.permute.xlu0 %1065
  %1068 = vset.pattern.permute.xlu0 3
  %1069 = vperm.xlu0 %1068, %v182
  %v1070 = vpop.permute.xlu0 %1069
  %1072 = vset.pattern.permute.xlu0 3
  %1073 = vperm.xlu0 %1072, %v183
  %v1074 = vpop.permute.xlu0 %1073
  %1076 = vset.pattern.permute.xlu0 3
  %1077 = vperm.xlu0 %1076, %v184
  %v1078 = vpop.permute.xlu0 %1077
  %1080 = vset.pattern.permute.xlu0 3
  %1081 = vperm.xlu0 %1080, %v185
  %v1082 = vpop.permute.xlu0 %1081
  %1084 = vset.pattern.permute.xlu0 3
  %1085 = vperm.xlu0 %1084, %v186
  %v1086 = vpop.permute.xlu0 %1085
  %1088 = vset.pattern.permute.xlu0 3
  %1089 = vperm.xlu0 %1088, %v187
  %v1090 = vpop.permute.xlu0 %1089
  %v1092 = vlaneseq
  %v1093 = vshrl.u32 %v1092, 7
  %v1094 = vsub.s32 0, %v1093
  %v1095 = vrot.slane %v1027, %v1094
  %v1096 = vadd.f32 %v1030, %v1095
  %v1097 = vadd.f32 %v1034, %v1095
  %v1098 = vadd.f32 %v1038, %v1095
  %v1099 = vadd.f32 %v1042, %v1095
  %v1100 = vadd.f32 %v1046, %v1095
  %v1101 = vadd.f32 %v1050, %v1095
  %v1102 = vadd.f32 %v1054, %v1095
  %v1103 = vadd.f32 %v1058, %v1095
  %v1104 = vadd.f32 %v1062, %v1095
  %v1105 = vadd.f32 %v1066, %v1095
  %v1106 = vadd.f32 %v1070, %v1095
  %v1107 = vadd.f32 %v1074, %v1095
  %v1108 = vadd.f32 %v1078, %v1095
  %v1109 = vadd.f32 %v1082, %v1095
  %v1110 = vadd.f32 %v1086, %v1095
  %v1111 = vadd.f32 %v1090, %v1095
  %v1112 = vmul.f32 %v1096, 0.2
  %v1113 = vmul.f32 %v1097, 0.2
  %v1114 = vmul.f32 %v1098, 0.2
  %v1115 = vmul.f32 %v1099, 0.2
  %v1116 = vmul.f32 %v1100, 0.2
  %v1117 = vmul.f32 %v1101, 0.2
  %v1118 = vmul.f32 %v1102, 0.2
  %v1119 = vmul.f32 %v1103, 0.2
  %v1120 = vmul.f32 %v1104, 0.2
  %v1121 = vmul.f32 %v1105, 0.2
  %v1122 = vmul.f32 %v1106, 0.2
  %v1123 = vmul.f32 %v1107, 0.2
  %v1124 = vmul.f32 %v1108, 0.2
  %v1125 = vmul.f32 %v1109, 0.2
  %v1126 = vmul.f32 %v1110, 0.2
  %v1127 = vmul.f32 %v1111, 0.2
  %v1128 = vmax.f32 %v1096, %v1112
  %v1129 = vmax.f32 %v1097, %v1113
  %v1130 = vmax.f32 %v1098, %v1114
  %v1131 = vmax.f32 %v1099, %v1115
  %v1132 = vmax.f32 %v1100, %v1116
  %v1133 = vmax.f32 %v1101, %v1117
  %v1134 = vmax.f32 %v1102, %v1118
  %v1135 = vmax.f32 %v1103, %v1119
  %v1136 = vmax.f32 %v1104, %v1120
  %v1137 = vmax.f32 %v1105, %v1121
  %v1138 = vmax.f32 %v1106, %v1122
  %v1139 = vmax.f32 %v1107, %v1123
  %v1140 = vmax.f32 %v1108, %v1124
  %v1141 = vmax.f32 %v1109, %v1125
  %v1142 = vmax.f32 %v1110, %v1126
  %v1143 = vmax.f32 %v1111, %v1127
  %v1144 = vsel %vm156, %v1128, -1e+30
  %v1145 = vsel %vm157, %v1129, -1e+30
  %v1146 = vsel %vm158, %v1130, -1e+30
  %v1147 = vsel %vm159, %v1131, -1e+30
  %v1148 = vsel %vm160, %v1132, -1e+30
  %v1149 = vsel %vm161, %v1133, -1e+30
  %v1150 = vsel %vm162, %v1134, -1e+30
  %v1151 = vsel %vm163, %v1135, -1e+30
  %v1152 = vsel %vm164, %v1136, -1e+30
  %v1153 = vsel %vm165, %v1137, -1e+30
  %v1154 = vsel %vm166, %v1138, -1e+30
  %v1155 = vsel %vm167, %v1139, -1e+30
  %v1156 = vsel %vm168, %v1140, -1e+30
  %v1157 = vsel %vm169, %v1141, -1e+30
  %v1158 = vsel %vm170, %v1142, -1e+30
  %v1159 = vsel %vm171, %v1143, -1e+30
  %1160 = vmax.xlane.f32.xlu0 %v1144
  %v1161 = vpop.xlane.xlu0 %1160
  %1162 = vmax.xlane.f32.xlu0 %v1145
  %v1163 = vpop.xlane.xlu0 %1162
  %1164 = vmax.xlane.f32.xlu0 %v1146
  %v1165 = vpop.xlane.xlu0 %1164
  %1166 = vmax.xlane.f32.xlu0 %v1147
  %v1167 = vpop.xlane.xlu0 %1166
  %1168 = vmax.xlane.f32.xlu0 %v1148
  %v1169 = vpop.xlane.xlu0 %1168
  %1170 = vmax.xlane.f32.xlu0 %v1149
  %v1171 = vpop.xlane.xlu0 %1170
  %1172 = vmax.xlane.f32.xlu0 %v1150
  %v1173 = vpop.xlane.xlu0 %1172
  %1174 = vmax.xlane.f32.xlu0 %v1151
  %v1175 = vpop.xlane.xlu0 %1174
  %1176 = vmax.xlane.f32.xlu0 %v1152
  %v1177 = vpop.xlane.xlu0 %1176
  %1178 = vmax.xlane.f32.xlu0 %v1153
  %v1179 = vpop.xlane.xlu0 %1178
  %1180 = vmax.xlane.f32.xlu0 %v1154
  %v1181 = vpop.xlane.xlu0 %1180
  %1182 = vmax.xlane.f32.xlu0 %v1155
  %v1183 = vpop.xlane.xlu0 %1182
  %1184 = vmax.xlane.f32.xlu0 %v1156
  %v1185 = vpop.xlane.xlu0 %1184
  %1186 = vmax.xlane.f32.xlu0 %v1157
  %v1187 = vpop.xlane.xlu0 %1186
  %1188 = vmax.xlane.f32.xlu0 %v1158
  %v1189 = vpop.xlane.xlu0 %1188
  %1190 = vmax.xlane.f32.xlu0 %v1159
  %v1191 = vpop.xlane.xlu0 %1190
  %s1192 = scalar_lea.vmem [#allocation2], 128
  %v1193 = vld [vmem:[%s1192] sm:$0xff]
  %v1194 = vld [vmem:[%s1192 + $0x8] sm:$0xff]
  %v1195 = vld [vmem:[%s1192 + $0x10] sm:$0xff]
  %v1196 = vld [vmem:[%s1192 + $0x18] sm:$0xff]
  %v1197 = vld [vmem:[%s1192 + $0x20] sm:$0xff]
  %v1198 = vld [vmem:[%s1192 + $0x28] sm:$0xff]
  %v1199 = vld [vmem:[%s1192 + $0x30] sm:$0xff]
  %v1200 = vld [vmem:[%s1192 + $0x38] sm:$0xff]
  %v1201 = vld [vmem:[%s1192 + $0x40] sm:$0xff]
  %v1202 = vld [vmem:[%s1192 + $0x48] sm:$0xff]
  %v1203 = vld [vmem:[%s1192 + $0x50] sm:$0xff]
  %v1204 = vld [vmem:[%s1192 + $0x58] sm:$0xff]
  %v1205 = vld [vmem:[%s1192 + $0x60] sm:$0xff]
  %v1206 = vld [vmem:[%s1192 + $0x68] sm:$0xff]
  %v1207 = vld [vmem:[%s1192 + $0x70] sm:$0xff]
  %v1208 = vld [vmem:[%s1192 + $0x78] sm:$0xff]
  %v1209 = vmax.f32 %v1193, %v1161
  %v1210 = vmax.f32 %v1194, %v1163
  %v1211 = vmax.f32 %v1195, %v1165
  %v1212 = vmax.f32 %v1196, %v1167
  %v1213 = vmax.f32 %v1197, %v1169
  %v1214 = vmax.f32 %v1198, %v1171
  %v1215 = vmax.f32 %v1199, %v1173
  %v1216 = vmax.f32 %v1200, %v1175
  %v1217 = vmax.f32 %v1201, %v1177
  %v1218 = vmax.f32 %v1202, %v1179
  %v1219 = vmax.f32 %v1203, %v1181
  %v1220 = vmax.f32 %v1204, %v1183
  %v1221 = vmax.f32 %v1205, %v1185
  %v1222 = vmax.f32 %v1206, %v1187
  %v1223 = vmax.f32 %v1207, %v1189
  %v1224 = vmax.f32 %v1208, %v1191
  %v1225 = vsub.f32 %v1193, %v1209
  %v1226 = vsub.f32 %v1194, %v1210
  %v1227 = vsub.f32 %v1195, %v1211
  %v1228 = vsub.f32 %v1196, %v1212
  %v1229 = vsub.f32 %v1197, %v1213
  %v1230 = vsub.f32 %v1198, %v1214
  %v1231 = vsub.f32 %v1199, %v1215
  %v1232 = vsub.f32 %v1200, %v1216
  %v1233 = vsub.f32 %v1201, %v1217
  %v1234 = vsub.f32 %v1202, %v1218
  %v1235 = vsub.f32 %v1203, %v1219
  %v1236 = vsub.f32 %v1204, %v1220
  %v1237 = vsub.f32 %v1205, %v1221
  %v1238 = vsub.f32 %v1206, %v1222
  %v1239 = vsub.f32 %v1207, %v1223
  %v1240 = vsub.f32 %v1208, %v1224
  %v1241 = vmul.f32 %v1225, 1.442695
  %v1242 = vpow.pop %v1241
  %v1243 = vmul.f32 %v1226, 1.442695
  %v1244 = vpow.pop %v1243
  %v1245 = vmul.f32 %v1227, 1.442695
  %v1246 = vpow.pop %v1245
  %v1247 = vmul.f32 %v1228, 1.442695
  %v1248 = vpow.pop %v1247
  %v1249 = vmul.f32 %v1229, 1.442695
  %v1250 = vpow.pop %v1249
  %v1251 = vmul.f32 %v1230, 1.442695
  %v1252 = vpow.pop %v1251
  %v1253 = vmul.f32 %v1231, 1.442695
  %v1254 = vpow.pop %v1253
  %v1255 = vmul.f32 %v1232, 1.442695
  %v1256 = vpow.pop %v1255
  %v1257 = vmul.f32 %v1233, 1.442695
  %v1258 = vpow.pop %v1257
  %v1259 = vmul.f32 %v1234, 1.442695
  %v1260 = vpow.pop %v1259
  %v1261 = vmul.f32 %v1235, 1.442695
  %v1262 = vpow.pop %v1261
  %v1263 = vmul.f32 %v1236, 1.442695
  %v1264 = vpow.pop %v1263
  %v1265 = vmul.f32 %v1237, 1.442695
  %v1266 = vpow.pop %v1265
  %v1267 = vmul.f32 %v1238, 1.442695
  %v1268 = vpow.pop %v1267
  %v1269 = vmul.f32 %v1239, 1.442695
  %v1270 = vpow.pop %v1269
  %v1271 = vmul.f32 %v1240, 1.442695
  %v1272 = vpow.pop %v1271
  %1274 = vset.pattern.permute.xlu0 0
  %1275 = vperm.xlu0 %1274, %v1209
  %v1276 = vpop.permute.xlu0 %1275
  %1279 = vset.pattern.permute.xlu0 0
  %1280 = vperm.xlu0 %1279, %v1210
  %v1281 = vpop.permute.xlu0 %1280
  %1284 = vset.pattern.permute.xlu0 0
  %1285 = vperm.xlu0 %1284, %v1211
  %v1286 = vpop.permute.xlu0 %1285
  %1289 = vset.pattern.permute.xlu0 0
  %1290 = vperm.xlu0 %1289, %v1212
  %v1291 = vpop.permute.xlu0 %1290
  %1294 = vset.pattern.permute.xlu0 0
  %1295 = vperm.xlu0 %1294, %v1213
  %v1296 = vpop.permute.xlu0 %1295
  %1299 = vset.pattern.permute.xlu0 0
  %1300 = vperm.xlu0 %1299, %v1214
  %v1301 = vpop.permute.xlu0 %1300
  %1304 = vset.pattern.permute.xlu0 0
  %1305 = vperm.xlu0 %1304, %v1215
  %v1306 = vpop.permute.xlu0 %1305
  %1309 = vset.pattern.permute.xlu0 0
  %1310 = vperm.xlu0 %1309, %v1216
  %v1311 = vpop.permute.xlu0 %1310
  %1314 = vset.pattern.permute.xlu0 0
  %1315 = vperm.xlu0 %1314, %v1217
  %v1316 = vpop.permute.xlu0 %1315
  %1319 = vset.pattern.permute.xlu0 0
  %1320 = vperm.xlu0 %1319, %v1218
  %v1321 = vpop.permute.xlu0 %1320
  %1324 = vset.pattern.permute.xlu0 0
  %1325 = vperm.xlu0 %1324, %v1219
  %v1326 = vpop.permute.xlu0 %1325
  %1329 = vset.pattern.permute.xlu0 0
  %1330 = vperm.xlu0 %1329, %v1220
  %v1331 = vpop.permute.xlu0 %1330
  %1334 = vset.pattern.permute.xlu0 0
  %1335 = vperm.xlu0 %1334, %v1221
  %v1336 = vpop.permute.xlu0 %1335
  %1339 = vset.pattern.permute.xlu0 0
  %1340 = vperm.xlu0 %1339, %v1222
  %v1341 = vpop.permute.xlu0 %1340
  %1344 = vset.pattern.permute.xlu0 0
  %1345 = vperm.xlu0 %1344, %v1223
  %v1346 = vpop.permute.xlu0 %1345
  %1349 = vset.pattern.permute.xlu0 0
  %1350 = vperm.xlu0 %1349, %v1224
  %v1351 = vpop.permute.xlu0 %1350
  %v1353 = vsub.f32 %v1128, %v1276
  %v1354 = vsub.f32 %v1129, %v1281
  %v1355 = vsub.f32 %v1130, %v1286
  %v1356 = vsub.f32 %v1131, %v1291
  %v1357 = vsub.f32 %v1132, %v1296
  %v1358 = vsub.f32 %v1133, %v1301
  %v1359 = vsub.f32 %v1134, %v1306
  %v1360 = vsub.f32 %v1135, %v1311
  %v1361 = vsub.f32 %v1136, %v1316
  %v1362 = vsub.f32 %v1137, %v1321
  %v1363 = vsub.f32 %v1138, %v1326
  %v1364 = vsub.f32 %v1139, %v1331
  %v1365 = vsub.f32 %v1140, %v1336
  %v1366 = vsub.f32 %v1141, %v1341
  %v1367 = vsub.f32 %v1142, %v1346
  %v1368 = vsub.f32 %v1143, %v1351
  %v1369 = vmin.f32 %v1353, 0.0
  %v1370 = vmin.f32 %v1354, 0.0
  %v1371 = vmin.f32 %v1355, 0.0
  %v1372 = vmin.f32 %v1356, 0.0
  %v1373 = vmin.f32 %v1357, 0.0
  %v1374 = vmin.f32 %v1358, 0.0
  %v1375 = vmin.f32 %v1359, 0.0
  %v1376 = vmin.f32 %v1360, 0.0
  %v1377 = vmin.f32 %v1361, 0.0
  %v1378 = vmin.f32 %v1362, 0.0
  %v1379 = vmin.f32 %v1363, 0.0
  %v1380 = vmin.f32 %v1364, 0.0
  %v1381 = vmin.f32 %v1365, 0.0
  %v1382 = vmin.f32 %v1366, 0.0
  %v1383 = vmin.f32 %v1367, 0.0
  %v1384 = vmin.f32 %v1368, 0.0
  %v1385 = vmul.f32 %v1369, 1.442695
  %v1386 = vpow.pop %v1385
  %v1387 = vmul.f32 %v1370, 1.442695
  %v1388 = vpow.pop %v1387
  %v1389 = vmul.f32 %v1371, 1.442695
  %v1390 = vpow.pop %v1389
  %v1391 = vmul.f32 %v1372, 1.442695
  %v1392 = vpow.pop %v1391
  %v1393 = vmul.f32 %v1373, 1.442695
  %v1394 = vpow.pop %v1393
  %v1395 = vmul.f32 %v1374, 1.442695
  %v1396 = vpow.pop %v1395
  %v1397 = vmul.f32 %v1375, 1.442695
  %v1398 = vpow.pop %v1397
  %v1399 = vmul.f32 %v1376, 1.442695
  %v1400 = vpow.pop %v1399
  %v1401 = vmul.f32 %v1377, 1.442695
  %v1402 = vpow.pop %v1401
  %v1403 = vmul.f32 %v1378, 1.442695
  %v1404 = vpow.pop %v1403
  %v1405 = vmul.f32 %v1379, 1.442695
  %v1406 = vpow.pop %v1405
  %v1407 = vmul.f32 %v1380, 1.442695
  %v1408 = vpow.pop %v1407
  %v1409 = vmul.f32 %v1381, 1.442695
  %v1410 = vpow.pop %v1409
  %v1411 = vmul.f32 %v1382, 1.442695
  %v1412 = vpow.pop %v1411
  %v1413 = vmul.f32 %v1383, 1.442695
  %v1414 = vpow.pop %v1413
  %v1415 = vmul.f32 %v1384, 1.442695
  %v1416 = vpow.pop %v1415
  %v1417 = vmul.f32 %v140, %v1386
  %v1418 = vmul.f32 %v141, %v1388
  %v1419 = vmul.f32 %v142, %v1390
  %v1420 = vmul.f32 %v143, %v1392
  %v1421 = vmul.f32 %v144, %v1394
  %v1422 = vmul.f32 %v145, %v1396
  %v1423 = vmul.f32 %v146, %v1398
  %v1424 = vmul.f32 %v147, %v1400
  %v1425 = vmul.f32 %v148, %v1402
  %v1426 = vmul.f32 %v149, %v1404
  %v1427 = vmul.f32 %v150, %v1406
  %v1428 = vmul.f32 %v151, %v1408
  %v1429 = vmul.f32 %v152, %v1410
  %v1430 = vmul.f32 %v153, %v1412
  %v1431 = vmul.f32 %v154, %v1414
  %v1432 = vmul.f32 %v155, %v1416
  %s1433 = scalar_lea.vmem [#allocation3], 128
  %v1434 = vld [vmem:[%s1433] sm:$0xff]
  %v1435 = vld [vmem:[%s1433 + $0x8] sm:$0xff]
  %v1436 = vld [vmem:[%s1433 + $0x10] sm:$0xff]
  %v1437 = vld [vmem:[%s1433 + $0x18] sm:$0xff]
  %v1438 = vld [vmem:[%s1433 + $0x20] sm:$0xff]
  %v1439 = vld [vmem:[%s1433 + $0x28] sm:$0xff]
  %v1440 = vld [vmem:[%s1433 + $0x30] sm:$0xff]
  %v1441 = vld [vmem:[%s1433 + $0x38] sm:$0xff]
  %v1442 = vld [vmem:[%s1433 + $0x40] sm:$0xff]
  %v1443 = vld [vmem:[%s1433 + $0x48] sm:$0xff]
  %v1444 = vld [vmem:[%s1433 + $0x50] sm:$0xff]
  %v1445 = vld [vmem:[%s1433 + $0x58] sm:$0xff]
  %v1446 = vld [vmem:[%s1433 + $0x60] sm:$0xff]
  %v1447 = vld [vmem:[%s1433 + $0x68] sm:$0xff]
  %v1448 = vld [vmem:[%s1433 + $0x70] sm:$0xff]
  %v1449 = vld [vmem:[%s1433 + $0x78] sm:$0xff]
  %v1450 = vmul.f32 %v1242, %v1434
  %v1451 = vmul.f32 %v1244, %v1435
  %v1452 = vmul.f32 %v1246, %v1436
  %v1453 = vmul.f32 %v1248, %v1437
  %v1454 = vmul.f32 %v1250, %v1438
  %v1455 = vmul.f32 %v1252, %v1439
  %v1456 = vmul.f32 %v1254, %v1440
  %v1457 = vmul.f32 %v1256, %v1441
  %v1458 = vmul.f32 %v1258, %v1442
  %v1459 = vmul.f32 %v1260, %v1443
  %v1460 = vmul.f32 %v1262, %v1444
  %v1461 = vmul.f32 %v1264, %v1445
  %v1462 = vmul.f32 %v1266, %v1446
  %v1463 = vmul.f32 %v1268, %v1447
  %v1464 = vmul.f32 %v1270, %v1448
  %v1465 = vmul.f32 %v1272, %v1449
  %1466 = vadd.xlane.f32.xlu0 %v1417
  %v1467 = vpop.xlane.xlu0 %1466
  %1468 = vadd.xlane.f32.xlu0 %v1418
  %v1469 = vpop.xlane.xlu0 %1468
  %1470 = vadd.xlane.f32.xlu0 %v1419
  %v1471 = vpop.xlane.xlu0 %1470
  %1472 = vadd.xlane.f32.xlu0 %v1420
  %v1473 = vpop.xlane.xlu0 %1472
  %1474 = vadd.xlane.f32.xlu0 %v1421
  %v1475 = vpop.xlane.xlu0 %1474
  %1476 = vadd.xlane.f32.xlu0 %v1422
  %v1477 = vpop.xlane.xlu0 %1476
  %1478 = vadd.xlane.f32.xlu0 %v1423
  %v1479 = vpop.xlane.xlu0 %1478
  %1480 = vadd.xlane.f32.xlu0 %v1424
  %v1481 = vpop.xlane.xlu0 %1480
  %1482 = vadd.xlane.f32.xlu0 %v1425
  %v1483 = vpop.xlane.xlu0 %1482
  %1484 = vadd.xlane.f32.xlu0 %v1426
  %v1485 = vpop.xlane.xlu0 %1484
  %1486 = vadd.xlane.f32.xlu0 %v1427
  %v1487 = vpop.xlane.xlu0 %1486
  %1488 = vadd.xlane.f32.xlu0 %v1428
  %v1489 = vpop.xlane.xlu0 %1488
  %1490 = vadd.xlane.f32.xlu0 %v1429
  %v1491 = vpop.xlane.xlu0 %1490
  %1492 = vadd.xlane.f32.xlu0 %v1430
  %v1493 = vpop.xlane.xlu0 %1492
  %1494 = vadd.xlane.f32.xlu0 %v1431
  %v1495 = vpop.xlane.xlu0 %1494
  %1496 = vadd.xlane.f32.xlu0 %v1432
  %v1497 = vpop.xlane.xlu0 %1496
  %v1498 = vadd.f32 %v1450, %v1467
  %v1499 = vadd.f32 %v1451, %v1469
  %v1500 = vadd.f32 %v1452, %v1471
  %v1501 = vadd.f32 %v1453, %v1473
  %v1502 = vadd.f32 %v1454, %v1475
  %v1503 = vadd.f32 %v1455, %v1477
  %v1504 = vadd.f32 %v1456, %v1479
  %v1505 = vadd.f32 %v1457, %v1481
  %v1506 = vadd.f32 %v1458, %v1483
  %v1507 = vadd.f32 %v1459, %v1485
  %v1508 = vadd.f32 %v1460, %v1487
  %v1509 = vadd.f32 %v1461, %v1489
  %v1510 = vadd.f32 %v1462, %v1491
  %v1511 = vadd.f32 %v1463, %v1493
  %v1512 = vadd.f32 %v1464, %v1495
  %v1513 = vadd.f32 %v1465, %v1497
  %1514 = vst.msk [vmem:[%s1433] sm:$0xff] %vm689, %v1498
  %1515 = vst.msk [vmem:[%s1433 + $0x8] sm:$0xff] %vm689, %v1499
  %1516 = vst.msk [vmem:[%s1433 + $0x10] sm:$0xff] %vm689, %v1500
  %1517 = vst.msk [vmem:[%s1433 + $0x18] sm:$0xff] %vm689, %v1501
  %1518 = vst.msk [vmem:[%s1433 + $0x20] sm:$0xff] %vm689, %v1502
  %1519 = vst.msk [vmem:[%s1433 + $0x28] sm:$0xff] %vm689, %v1503
  %1520 = vst.msk [vmem:[%s1433 + $0x30] sm:$0xff] %vm689, %v1504
  %1521 = vst.msk [vmem:[%s1433 + $0x38] sm:$0xff] %vm689, %v1505
  %1522 = vst.msk [vmem:[%s1433 + $0x40] sm:$0xff] %vm689, %v1506
  %1523 = vst.msk [vmem:[%s1433 + $0x48] sm:$0xff] %vm689, %v1507
  %1524 = vst.msk [vmem:[%s1433 + $0x50] sm:$0xff] %vm689, %v1508
  %1525 = vst.msk [vmem:[%s1433 + $0x58] sm:$0xff] %vm689, %v1509
  %1526 = vst.msk [vmem:[%s1433 + $0x60] sm:$0xff] %vm689, %v1510
  %1527 = vst.msk [vmem:[%s1433 + $0x68] sm:$0xff] %vm689, %v1511
  %1528 = vst.msk [vmem:[%s1433 + $0x70] sm:$0xff] %vm689, %v1512
  %1529 = vst.msk [vmem:[%s1433 + $0x78] sm:$0xff] %vm689, %v1513
  %s1530 = scalar_lea.vmem [#allocation4], 128
  %v1531 = vld [vmem:[%s1530] sm:$0xff]
  %v1532 = vld [vmem:[%s1530 + $0x8] sm:$0xff]
  %v1533 = vld [vmem:[%s1530 + $0x10] sm:$0xff]
  %v1534 = vld [vmem:[%s1530 + $0x18] sm:$0xff]
  %v1535 = vld [vmem:[%s1530 + $0x20] sm:$0xff]
  %v1536 = vld [vmem:[%s1530 + $0x28] sm:$0xff]
  %v1537 = vld [vmem:[%s1530 + $0x30] sm:$0xff]
  %v1538 = vld [vmem:[%s1530 + $0x38] sm:$0xff]
  %v1539 = vld [vmem:[%s1530 + $0x40] sm:$0xff]
  %v1540 = vld [vmem:[%s1530 + $0x48] sm:$0xff]
  %v1541 = vld [vmem:[%s1530 + $0x50] sm:$0xff]
  %v1542 = vld [vmem:[%s1530 + $0x58] sm:$0xff]
  %v1543 = vld [vmem:[%s1530 + $0x60] sm:$0xff]
  %v1544 = vld [vmem:[%s1530 + $0x68] sm:$0xff]
  %v1545 = vld [vmem:[%s1530 + $0x70] sm:$0xff]
  %v1546 = vld [vmem:[%s1530 + $0x78] sm:$0xff]
  %1548 = vset.pattern.permute.xlu0 0
  %1549 = vperm.xlu0 %1548, %v1242
  %v1550 = vpop.permute.xlu0 %1549
  %1553 = vset.pattern.permute.xlu0 0
  %1554 = vperm.xlu0 %1553, %v1244
  %v1555 = vpop.permute.xlu0 %1554
  %1558 = vset.pattern.permute.xlu0 0
  %1559 = vperm.xlu0 %1558, %v1246
  %v1560 = vpop.permute.xlu0 %1559
  %1563 = vset.pattern.permute.xlu0 0
  %1564 = vperm.xlu0 %1563, %v1248
  %v1565 = vpop.permute.xlu0 %1564
  %1568 = vset.pattern.permute.xlu0 0
  %1569 = vperm.xlu0 %1568, %v1250
  %v1570 = vpop.permute.xlu0 %1569
  %1573 = vset.pattern.permute.xlu0 0
  %1574 = vperm.xlu0 %1573, %v1252
  %v1575 = vpop.permute.xlu0 %1574
  %1578 = vset.pattern.permute.xlu0 0
  %1579 = vperm.xlu0 %1578, %v1254
  %v1580 = vpop.permute.xlu0 %1579
  %1583 = vset.pattern.permute.xlu0 0
  %1584 = vperm.xlu0 %1583, %v1256
  %v1585 = vpop.permute.xlu0 %1584
  %1588 = vset.pattern.permute.xlu0 0
  %1589 = vperm.xlu0 %1588, %v1258
  %v1590 = vpop.permute.xlu0 %1589
  %1593 = vset.pattern.permute.xlu0 0
  %1594 = vperm.xlu0 %1593, %v1260
  %v1595 = vpop.permute.xlu0 %1594
  %1598 = vset.pattern.permute.xlu0 0
  %1599 = vperm.xlu0 %1598, %v1262
  %v1600 = vpop.permute.xlu0 %1599
  %1603 = vset.pattern.permute.xlu0 0
  %1604 = vperm.xlu0 %1603, %v1264
  %v1605 = vpop.permute.xlu0 %1604
  %1608 = vset.pattern.permute.xlu0 0
  %1609 = vperm.xlu0 %1608, %v1266
  %v1610 = vpop.permute.xlu0 %1609
  %1613 = vset.pattern.permute.xlu0 0
  %1614 = vperm.xlu0 %1613, %v1268
  %v1615 = vpop.permute.xlu0 %1614
  %1618 = vset.pattern.permute.xlu0 0
  %1619 = vperm.xlu0 %1618, %v1270
  %v1620 = vpop.permute.xlu0 %1619
  %1623 = vset.pattern.permute.xlu0 0
  %1624 = vperm.xlu0 %1623, %v1272
  %v1625 = vpop.permute.xlu0 %1624
  %v1627 = vmul.f32 %v1550, %v1531
  %v1628 = vmul.f32 %v1555, %v1532
  %v1629 = vmul.f32 %v1560, %v1533
  %v1630 = vmul.f32 %v1565, %v1534
  %v1631 = vmul.f32 %v1570, %v1535
  %v1632 = vmul.f32 %v1575, %v1536
  %v1633 = vmul.f32 %v1580, %v1537
  %v1634 = vmul.f32 %v1585, %v1538
  %v1635 = vmul.f32 %v1590, %v1539
  %v1636 = vmul.f32 %v1595, %v1540
  %v1637 = vmul.f32 %v1600, %v1541
  %v1638 = vmul.f32 %v1605, %v1542
  %v1639 = vmul.f32 %v1610, %v1543
  %v1640 = vmul.f32 %v1615, %v1544
  %v1641 = vmul.f32 %v1620, %v1545
  %v1642 = vmul.f32 %v1625, %v1546
  %s1643 = scalar_lea.vmem %s3, 128
  %v1644 = vld [vmem:[%s1643] sm:$0xff]
  %v1645 = vld [vmem:[%s1643 + $0x8] sm:$0xff]
  %v1646 = vld [vmem:[%s1643 + $0x10] sm:$0xff]
  %v1647 = vld [vmem:[%s1643 + $0x18] sm:$0xff]
  %v1648 = vld [vmem:[%s1643 + $0x20] sm:$0xff]
  %v1649 = vld [vmem:[%s1643 + $0x28] sm:$0xff]
  %v1650 = vld [vmem:[%s1643 + $0x30] sm:$0xff]
  %v1651 = vld [vmem:[%s1643 + $0x38] sm:$0xff]
  %v1652 = vld [vmem:[%s1643 + $0x40] sm:$0xff]
  %v1653 = vld [vmem:[%s1643 + $0x48] sm:$0xff]
  %v1654 = vld [vmem:[%s1643 + $0x50] sm:$0xff]
  %v1655 = vld [vmem:[%s1643 + $0x58] sm:$0xff]
  %v1656 = vld [vmem:[%s1643 + $0x60] sm:$0xff]
  %v1657 = vld [vmem:[%s1643 + $0x68] sm:$0xff]
  %v1658 = vld [vmem:[%s1643 + $0x70] sm:$0xff]
  %v1659 = vld [vmem:[%s1643 + $0x78] sm:$0xff]
  %1660 = vmatprep.subr.mxu0 0.0
  %1661 = vmatpush1.msra.mxu0 %v1659
  %1662 = vmatprep.subr.mxu0 0.0
  %1663 = vmatpush1.msra.mxu0 %v1658
  %1664 = vmatprep.subr.mxu0 0.0
  %1665 = vmatpush1.msra.mxu0 %v1657
  %1666 = vmatprep.subr.mxu0 0.0
  %1667 = vmatpush1.msra.mxu0 %v1656
  %1668 = vmatprep.subr.mxu0 0.0
  %1669 = vmatpush1.msra.mxu0 %v1655
  %1670 = vmatprep.subr.mxu0 0.0
  %1671 = vmatpush1.msra.mxu0 %v1654
  %1672 = vmatprep.subr.mxu0 0.0
  %1673 = vmatpush1.msra.mxu0 %v1653
  %1674 = vmatprep.subr.mxu0 0.0
  %1675 = vmatpush1.msra.mxu0 %v1652
  %1676 = vmatprep.subr.mxu0 0.0
  %1677 = vmatpush1.msra.mxu0 %v1651
  %1678 = vmatprep.subr.mxu0 0.0
  %1679 = vmatpush1.msra.mxu0 %v1650
  %1680 = vmatprep.subr.mxu0 0.0
  %1681 = vmatpush1.msra.mxu0 %v1649
  %1682 = vmatprep.subr.mxu0 0.0
  %1683 = vmatpush1.msra.mxu0 %v1648
  %1684 = vmatprep.subr.mxu0 0.0
  %1685 = vmatpush1.msra.mxu0 %v1647
  %1686 = vmatprep.subr.mxu0 0.0
  %1687 = vmatpush1.msra.mxu0 %v1646
  %1688 = vmatprep.subr.mxu0 0.0
  %1689 = vmatpush1.msra.mxu0 %v1645
  %1690 = vmatprep.subr.mxu0 0.0
  %1691 = vmatpush1.msra.mxu0 %v1644
  %1692 = vmatprep.subr.mxu0 0.0
  %1693 = vmatpush2.msra.mxu0 0.0
  %1694 = vmatprep.subr.mxu0 0.0
  %1695 = vmatpush2.msra.mxu0 0.0
  %1696 = vmatprep.subr.mxu0 0.0
  %1697 = vmatpush2.msra.mxu0 0.0
  %1698 = vmatprep.subr.mxu0 0.0
  %1699 = vmatpush2.msra.mxu0 0.0
  %1700 = vmatprep.subr.mxu0 0.0
  %1701 = vmatpush2.msra.mxu0 0.0
  %1702 = vmatprep.subr.mxu0 0.0
  %1703 = vmatpush2.msra.mxu0 0.0
  %1704 = vmatprep.subr.mxu0 0.0
  %1705 = vmatpush2.msra.mxu0 0.0
  %1706 = vmatprep.subr.mxu0 0.0
  %1707 = vmatpush2.msra.mxu0 0.0
  %1708 = vmatprep.subr.mxu0 0.0
  %1709 = vmatpush2.msra.mxu0 0.0
  %1710 = vmatprep.subr.mxu0 0.0
  %1711 = vmatpush2.msra.mxu0 0.0
  %1712 = vmatprep.subr.mxu0 0.0
  %1713 = vmatpush2.msra.mxu0 0.0
  %1714 = vmatprep.subr.mxu0 0.0
  %1715 = vmatpush2.msra.mxu0 0.0
  %1716 = vmatprep.subr.mxu0 0.0
  %1717 = vmatpush2.msra.mxu0 0.0
  %1718 = vmatprep.subr.mxu0 0.0
  %1719 = vmatpush2.msra.mxu0 0.0
  %1720 = vmatprep.subr.mxu0 0.0
  %1721 = vmatpush2.msra.mxu0 0.0
  %1722 = vmatprep.subr.mxu0 0.0
  %1723 = vmatpush2.msra.mxu0 0.0
  %1724 = vmatprep.mubr.f32.mxu0 0.0
  %1725 = vmatmul.mubr.f32.gmra.mxu0 %v1417
  %v1726 = vpop.f32.mrf.mxu0
  %v1727 = vadd.f32 0.0, %v1726
  %v1728 = vpop.f32.mrf.mxu0
  %1729 = vmatprep.mubr.f32.mxu0 0.0
  %1730 = vmatmul.mubr.f32.gmra.mxu0 %v1418
  %v1731 = vpop.f32.mrf.mxu0
  %v1732 = vadd.f32 0.0, %v1731
  %v1733 = vpop.f32.mrf.mxu0
  %1734 = vmatprep.mubr.f32.mxu0 0.0
  %1735 = vmatmul.mubr.f32.gmra.mxu0 %v1419
  %v1736 = vpop.f32.mrf.mxu0
  %v1737 = vadd.f32 0.0, %v1736
  %v1738 = vpop.f32.mrf.mxu0
  %1739 = vmatprep.mubr.f32.mxu0 0.0
  %1740 = vmatmul.mubr.f32.gmra.mxu0 %v1420
  %v1741 = vpop.f32.mrf.mxu0
  %v1742 = vadd.f32 0.0, %v1741
  %v1743 = vpop.f32.mrf.mxu0
  %1744 = vmatprep.mubr.f32.mxu0 0.0
  %1745 = vmatmul.mubr.f32.gmra.mxu0 %v1421
  %v1746 = vpop.f32.mrf.mxu0
  %v1747 = vadd.f32 0.0, %v1746
  %v1748 = vpop.f32.mrf.mxu0
  %1749 = vmatprep.mubr.f32.mxu0 0.0
  %1750 = vmatmul.mubr.f32.gmra.mxu0 %v1422
  %v1751 = vpop.f32.mrf.mxu0
  %v1752 = vadd.f32 0.0, %v1751
  %v1753 = vpop.f32.mrf.mxu0
  %1754 = vmatprep.mubr.f32.mxu0 0.0
  %1755 = vmatmul.mubr.f32.gmra.mxu0 %v1423
  %v1756 = vpop.f32.mrf.mxu0
  %v1757 = vadd.f32 0.0, %v1756
  %v1758 = vpop.f32.mrf.mxu0
  %1759 = vmatprep.mubr.f32.mxu0 0.0
  %1760 = vmatmul.mubr.f32.gmra.mxu0 %v1424
  %v1761 = vpop.f32.mrf.mxu0
  %v1762 = vadd.f32 0.0, %v1761
  %v1763 = vpop.f32.mrf.mxu0
  %1764 = vmatprep.mubr.f32.mxu0 0.0
  %1765 = vmatmul.mubr.f32.gmra.mxu0 %v1425
  %v1766 = vpop.f32.mrf.mxu0
  %v1767 = vadd.f32 0.0, %v1766
  %v1768 = vpop.f32.mrf.mxu0
  %1769 = vmatprep.mubr.f32.mxu0 0.0
  %1770 = vmatmul.mubr.f32.gmra.mxu0 %v1426
  %v1771 = vpop.f32.mrf.mxu0
  %v1772 = vadd.f32 0.0, %v1771
  %v1773 = vpop.f32.mrf.mxu0
  %1774 = vmatprep.mubr.f32.mxu0 0.0
  %1775 = vmatmul.mubr.f32.gmra.mxu0 %v1427
  %v1776 = vpop.f32.mrf.mxu0
  %v1777 = vadd.f32 0.0, %v1776
  %v1778 = vpop.f32.mrf.mxu0
  %1779 = vmatprep.mubr.f32.mxu0 0.0
  %1780 = vmatmul.mubr.f32.gmra.mxu0 %v1428
  %v1781 = vpop.f32.mrf.mxu0
  %v1782 = vadd.f32 0.0, %v1781
  %v1783 = vpop.f32.mrf.mxu0
  %1784 = vmatprep.mubr.f32.mxu0 0.0
  %1785 = vmatmul.mubr.f32.gmra.mxu0 %v1429
  %v1786 = vpop.f32.mrf.mxu0
  %v1787 = vadd.f32 0.0, %v1786
  %v1788 = vpop.f32.mrf.mxu0
  %1789 = vmatprep.mubr.f32.mxu0 0.0
  %1790 = vmatmul.mubr.f32.gmra.mxu0 %v1430
  %v1791 = vpop.f32.mrf.mxu0
  %v1792 = vadd.f32 0.0, %v1791
  %v1793 = vpop.f32.mrf.mxu0
  %1794 = vmatprep.mubr.f32.mxu0 0.0
  %1795 = vmatmul.mubr.f32.gmra.mxu0 %v1431
  %v1796 = vpop.f32.mrf.mxu0
  %v1797 = vadd.f32 0.0, %v1796
  %v1798 = vpop.f32.mrf.mxu0
  %1799 = vmatprep.mubr.f32.mxu0 0.0
  %1800 = vmatmul.mubr.f32.gmra.mxu0 %v1432
  %v1801 = vpop.f32.mrf.mxu0
  %v1802 = vadd.f32 0.0, %v1801
  %v1803 = vpop.f32.mrf.mxu0
  %1804 = vdwg.mxu0
  %v1805 = vadd.f32 %v1627, %v1727
  %v1806 = vadd.f32 %v1628, %v1732
  %v1807 = vadd.f32 %v1629, %v1737
  %v1808 = vadd.f32 %v1630, %v1742
  %v1809 = vadd.f32 %v1631, %v1747
  %v1810 = vadd.f32 %v1632, %v1752
  %v1811 = vadd.f32 %v1633, %v1757
  %v1812 = vadd.f32 %v1634, %v1762
  %v1813 = vadd.f32 %v1635, %v1767
  %v1814 = vadd.f32 %v1636, %v1772
  %v1815 = vadd.f32 %v1637, %v1777
  %v1816 = vadd.f32 %v1638, %v1782
  %v1817 = vadd.f32 %v1639, %v1787
  %v1818 = vadd.f32 %v1640, %v1792
  %v1819 = vadd.f32 %v1641, %v1797
  %v1820 = vadd.f32 %v1642, %v1802
  %1821 = vst [vmem:[%s1530] sm:$0xff] %v1805
  %1822 = vst [vmem:[%s1530 + $0x8] sm:$0xff] %v1806
  %1823 = vst [vmem:[%s1530 + $0x10] sm:$0xff] %v1807
  %1824 = vst [vmem:[%s1530 + $0x18] sm:$0xff] %v1808
  %1825 = vst [vmem:[%s1530 + $0x20] sm:$0xff] %v1809
  %1826 = vst [vmem:[%s1530 + $0x28] sm:$0xff] %v1810
  %1827 = vst [vmem:[%s1530 + $0x30] sm:$0xff] %v1811
  %1828 = vst [vmem:[%s1530 + $0x38] sm:$0xff] %v1812
  %1829 = vst [vmem:[%s1530 + $0x40] sm:$0xff] %v1813
  %1830 = vst [vmem:[%s1530 + $0x48] sm:$0xff] %v1814
  %1831 = vst [vmem:[%s1530 + $0x50] sm:$0xff] %v1815
  %1832 = vst [vmem:[%s1530 + $0x58] sm:$0xff] %v1816
  %1833 = vst [vmem:[%s1530 + $0x60] sm:$0xff] %v1817
  %1834 = vst [vmem:[%s1530 + $0x68] sm:$0xff] %v1818
  %1835 = vst [vmem:[%s1530 + $0x70] sm:$0xff] %v1819
  %1836 = vst [vmem:[%s1530 + $0x78] sm:$0xff] %v1820
  %1837 = vst.msk [vmem:[%s1192] sm:$0xff] %vm689, %v1209
  %1838 = vst.msk [vmem:[%s1192 + $0x8] sm:$0xff] %vm689, %v1210
  %1839 = vst.msk [vmem:[%s1192 + $0x10] sm:$0xff] %vm689, %v1211
  %1840 = vst.msk [vmem:[%s1192 + $0x18] sm:$0xff] %vm689, %v1212
  %1841 = vst.msk [vmem:[%s1192 + $0x20] sm:$0xff] %vm689, %v1213
  %1842 = vst.msk [vmem:[%s1192 + $0x28] sm:$0xff] %vm689, %v1214
  %1843 = vst.msk [vmem:[%s1192 + $0x30] sm:$0xff] %vm689, %v1215
  %1844 = vst.msk [vmem:[%s1192 + $0x38] sm:$0xff] %vm689, %v1216
  %1845 = vst.msk [vmem:[%s1192 + $0x40] sm:$0xff] %vm689, %v1217
  %1846 = vst.msk [vmem:[%s1192 + $0x48] sm:$0xff] %vm689, %v1218
  %1847 = vst.msk [vmem:[%s1192 + $0x50] sm:$0xff] %vm689, %v1219
  %1848 = vst.msk [vmem:[%s1192 + $0x58] sm:$0xff] %vm689, %v1220
  %1849 = vst.msk [vmem:[%s1192 + $0x60] sm:$0xff] %vm689, %v1221
  %1850 = vst.msk [vmem:[%s1192 + $0x68] sm:$0xff] %vm689, %v1222
  %1851 = vst.msk [vmem:[%s1192 + $0x70] sm:$0xff] %vm689, %v1223
  %1852 = vst.msk [vmem:[%s1192 + $0x78] sm:$0xff] %vm689, %v1224
  // Predicated region
  $region30: #{lant_gat_forward.3} parent=0 // pred_check
    %p1853 = pneg %p23
  $region31: #{lant_gat_forward.3} parent=0 // pred_check_branch
    %1855 = sbr.rel (%p1853) target = $region33
  $region32: #{lant_gat_forward.3} parent=0 // pred_region
    %v1856 = vld [vmem:[#allocation3] sm:$0xff]
    %v1857 = vld [vmem:[#allocation3 + $0x8] sm:$0xff]
    %v1858 = vld [vmem:[#allocation3 + $0x10] sm:$0xff]
    %v1859 = vld [vmem:[#allocation3 + $0x18] sm:$0xff]
    %v1860 = vld [vmem:[#allocation3 + $0x20] sm:$0xff]
    %v1861 = vld [vmem:[#allocation3 + $0x28] sm:$0xff]
    %v1862 = vld [vmem:[#allocation3 + $0x30] sm:$0xff]
    %v1863 = vld [vmem:[#allocation3 + $0x38] sm:$0xff]
    %v1864 = vld [vmem:[#allocation3 + $0x40] sm:$0xff]
    %v1865 = vld [vmem:[#allocation3 + $0x48] sm:$0xff]
    %v1866 = vld [vmem:[#allocation3 + $0x50] sm:$0xff]
    %v1867 = vld [vmem:[#allocation3 + $0x58] sm:$0xff]
    %v1868 = vld [vmem:[#allocation3 + $0x60] sm:$0xff]
    %v1869 = vld [vmem:[#allocation3 + $0x68] sm:$0xff]
    %v1870 = vld [vmem:[#allocation3 + $0x70] sm:$0xff]
    %v1871 = vld [vmem:[#allocation3 + $0x78] sm:$0xff]
    %v1872 = vmax.f32 %v1856, 1.0
    %v1873 = vmax.f32 %v1857, 1.0
    %v1874 = vmax.f32 %v1858, 1.0
    %v1875 = vmax.f32 %v1859, 1.0
    %v1876 = vmax.f32 %v1860, 1.0
    %v1877 = vmax.f32 %v1861, 1.0
    %v1878 = vmax.f32 %v1862, 1.0
    %v1879 = vmax.f32 %v1863, 1.0
    %v1880 = vmax.f32 %v1864, 1.0
    %v1881 = vmax.f32 %v1865, 1.0
    %v1882 = vmax.f32 %v1866, 1.0
    %v1883 = vmax.f32 %v1867, 1.0
    %v1884 = vmax.f32 %v1868, 1.0
    %v1885 = vmax.f32 %v1869, 1.0
    %v1886 = vmax.f32 %v1870, 1.0
    %v1887 = vmax.f32 %v1871, 1.0
    %v1888 = vrcp.pop %v1872
    %v1889 = vrcp.pop %v1873
    %v1890 = vrcp.pop %v1874
    %v1891 = vrcp.pop %v1875
    %v1892 = vrcp.pop %v1876
    %v1893 = vrcp.pop %v1877
    %v1894 = vrcp.pop %v1878
    %v1895 = vrcp.pop %v1879
    %v1896 = vrcp.pop %v1880
    %v1897 = vrcp.pop %v1881
    %v1898 = vrcp.pop %v1882
    %v1899 = vrcp.pop %v1883
    %v1900 = vrcp.pop %v1884
    %v1901 = vrcp.pop %v1885
    %v1902 = vrcp.pop %v1886
    %v1903 = vrcp.pop %v1887
    %v1904 = vld [vmem:[#allocation4] sm:$0xff]
    %v1905 = vld [vmem:[#allocation4 + $0x8] sm:$0xff]
    %v1906 = vld [vmem:[#allocation4 + $0x10] sm:$0xff]
    %v1907 = vld [vmem:[#allocation4 + $0x18] sm:$0xff]
    %v1908 = vld [vmem:[#allocation4 + $0x20] sm:$0xff]
    %v1909 = vld [vmem:[#allocation4 + $0x28] sm:$0xff]
    %v1910 = vld [vmem:[#allocation4 + $0x30] sm:$0xff]
    %v1911 = vld [vmem:[#allocation4 + $0x38] sm:$0xff]
    %v1912 = vld [vmem:[#allocation4 + $0x40] sm:$0xff]
    %v1913 = vld [vmem:[#allocation4 + $0x48] sm:$0xff]
    %v1914 = vld [vmem:[#allocation4 + $0x50] sm:$0xff]
    %v1915 = vld [vmem:[#allocation4 + $0x58] sm:$0xff]
    %v1916 = vld [vmem:[#allocation4 + $0x60] sm:$0xff]
    %v1917 = vld [vmem:[#allocation4 + $0x68] sm:$0xff]
    %v1918 = vld [vmem:[#allocation4 + $0x70] sm:$0xff]
    %v1919 = vld [vmem:[#allocation4 + $0x78] sm:$0xff]
    %1921 = vset.pattern.permute.xlu0 0
    %1922 = vperm.xlu0 %1921, %v1888
    %v1923 = vpop.permute.xlu0 %1922
    %1926 = vset.pattern.permute.xlu0 0
    %1927 = vperm.xlu0 %1926, %v1889
    %v1928 = vpop.permute.xlu0 %1927
    %1931 = vset.pattern.permute.xlu0 0
    %1932 = vperm.xlu0 %1931, %v1890
    %v1933 = vpop.permute.xlu0 %1932
    %1936 = vset.pattern.permute.xlu0 0
    %1937 = vperm.xlu0 %1936, %v1891
    %v1938 = vpop.permute.xlu0 %1937
    %1941 = vset.pattern.permute.xlu0 0
    %1942 = vperm.xlu0 %1941, %v1892
    %v1943 = vpop.permute.xlu0 %1942
    %1946 = vset.pattern.permute.xlu0 0
    %1947 = vperm.xlu0 %1946, %v1893
    %v1948 = vpop.permute.xlu0 %1947
    %1951 = vset.pattern.permute.xlu0 0
    %1952 = vperm.xlu0 %1951, %v1894
    %v1953 = vpop.permute.xlu0 %1952
    %1956 = vset.pattern.permute.xlu0 0
    %1957 = vperm.xlu0 %1956, %v1895
    %v1958 = vpop.permute.xlu0 %1957
    %1961 = vset.pattern.permute.xlu0 0
    %1962 = vperm.xlu0 %1961, %v1896
    %v1963 = vpop.permute.xlu0 %1962
    %1966 = vset.pattern.permute.xlu0 0
    %1967 = vperm.xlu0 %1966, %v1897
    %v1968 = vpop.permute.xlu0 %1967
    %1971 = vset.pattern.permute.xlu0 0
    %1972 = vperm.xlu0 %1971, %v1898
    %v1973 = vpop.permute.xlu0 %1972
    %1976 = vset.pattern.permute.xlu0 0
    %1977 = vperm.xlu0 %1976, %v1899
    %v1978 = vpop.permute.xlu0 %1977
    %1981 = vset.pattern.permute.xlu0 0
    %1982 = vperm.xlu0 %1981, %v1900
    %v1983 = vpop.permute.xlu0 %1982
    %1986 = vset.pattern.permute.xlu0 0
    %1987 = vperm.xlu0 %1986, %v1901
    %v1988 = vpop.permute.xlu0 %1987
    %1991 = vset.pattern.permute.xlu0 0
    %1992 = vperm.xlu0 %1991, %v1902
    %v1993 = vpop.permute.xlu0 %1992
    %1996 = vset.pattern.permute.xlu0 0
    %1997 = vperm.xlu0 %1996, %v1903
    %v1998 = vpop.permute.xlu0 %1997
    %v2000 = vmul.f32 %v1904, %v1923
    %v2001 = vmul.f32 %v1905, %v1928
    %v2002 = vmul.f32 %v1906, %v1933
    %v2003 = vmul.f32 %v1907, %v1938
    %v2004 = vmul.f32 %v1908, %v1943
    %v2005 = vmul.f32 %v1909, %v1948
    %v2006 = vmul.f32 %v1910, %v1953
    %v2007 = vmul.f32 %v1911, %v1958
    %v2008 = vmul.f32 %v1912, %v1963
    %v2009 = vmul.f32 %v1913, %v1968
    %v2010 = vmul.f32 %v1914, %v1973
    %v2011 = vmul.f32 %v1915, %v1978
    %v2012 = vmul.f32 %v1916, %v1983
    %v2013 = vmul.f32 %v1917, %v1988
    %v2014 = vmul.f32 %v1918, %v1993
    %v2015 = vmul.f32 %v1919, %v1998
    %v2016 = vld [vmem:[%s4] sm:$0x1]
    %v2018 = vlaneseq
    %v2019 = vshrl.u32 %v2018, 7
    %v2020 = vsub.s32 0, %v2019
    %v2021 = vrot.slane %v2016, %v2020
    %v2023 = vadd.f32 %v2000, %v2021
    %v2024 = vadd.f32 %v2001, %v2021
    %v2025 = vadd.f32 %v2002, %v2021
    %v2026 = vadd.f32 %v2003, %v2021
    %v2027 = vadd.f32 %v2004, %v2021
    %v2028 = vadd.f32 %v2005, %v2021
    %v2029 = vadd.f32 %v2006, %v2021
    %v2030 = vadd.f32 %v2007, %v2021
    %v2031 = vadd.f32 %v2008, %v2021
    %v2032 = vadd.f32 %v2009, %v2021
    %v2033 = vadd.f32 %v2010, %v2021
    %v2034 = vadd.f32 %v2011, %v2021
    %v2035 = vadd.f32 %v2012, %v2021
    %v2036 = vadd.f32 %v2013, %v2021
    %v2037 = vadd.f32 %v2014, %v2021
    %v2038 = vadd.f32 %v2015, %v2021
    %vm2039 = vcmp.gt.f32.partialorder %v2023, 0.0
    %vm2040 = vcmp.gt.f32.partialorder %v2024, 0.0
    %vm2041 = vcmp.gt.f32.partialorder %v2025, 0.0
    %vm2042 = vcmp.gt.f32.partialorder %v2026, 0.0
    %vm2043 = vcmp.gt.f32.partialorder %v2027, 0.0
    %vm2044 = vcmp.gt.f32.partialorder %v2028, 0.0
    %vm2045 = vcmp.gt.f32.partialorder %v2029, 0.0
    %vm2046 = vcmp.gt.f32.partialorder %v2030, 0.0
    %vm2047 = vcmp.gt.f32.partialorder %v2031, 0.0
    %vm2048 = vcmp.gt.f32.partialorder %v2032, 0.0
    %vm2049 = vcmp.gt.f32.partialorder %v2033, 0.0
    %vm2050 = vcmp.gt.f32.partialorder %v2034, 0.0
    %vm2051 = vcmp.gt.f32.partialorder %v2035, 0.0
    %vm2052 = vcmp.gt.f32.partialorder %v2036, 0.0
    %vm2053 = vcmp.gt.f32.partialorder %v2037, 0.0
    %vm2054 = vcmp.gt.f32.partialorder %v2038, 0.0
    %v2055 = vld [vmem:[%s5] sm:$0x1]
    %v2057 = vlaneseq
    %v2058 = vshrl.u32 %v2057, 7
    %v2059 = vsub.s32 0, %v2058
    %v2060 = vrot.slane %v2055, %v2059
    %v2062 = vmul.f32 %v2060, %v2023
    %v2063 = vmul.f32 %v2060, %v2024
    %v2064 = vmul.f32 %v2060, %v2025
    %v2065 = vmul.f32 %v2060, %v2026
    %v2066 = vmul.f32 %v2060, %v2027
    %v2067 = vmul.f32 %v2060, %v2028
    %v2068 = vmul.f32 %v2060, %v2029
    %v2069 = vmul.f32 %v2060, %v2030
    %v2070 = vmul.f32 %v2060, %v2031
    %v2071 = vmul.f32 %v2060, %v2032
    %v2072 = vmul.f32 %v2060, %v2033
    %v2073 = vmul.f32 %v2060, %v2034
    %v2074 = vmul.f32 %v2060, %v2035
    %v2075 = vmul.f32 %v2060, %v2036
    %v2076 = vmul.f32 %v2060, %v2037
    %v2077 = vmul.f32 %v2060, %v2038
    %v2078 = vsel %vm2039, %v2023, %v2062
    %v2079 = vsel %vm2040, %v2024, %v2063
    %v2080 = vsel %vm2041, %v2025, %v2064
    %v2081 = vsel %vm2042, %v2026, %v2065
    %v2082 = vsel %vm2043, %v2027, %v2066
    %v2083 = vsel %vm2044, %v2028, %v2067
    %v2084 = vsel %vm2045, %v2029, %v2068
    %v2085 = vsel %vm2046, %v2030, %v2069
    %v2086 = vsel %vm2047, %v2031, %v2070
    %v2087 = vsel %vm2048, %v2032, %v2071
    %v2088 = vsel %vm2049, %v2033, %v2072
    %v2089 = vsel %vm2050, %v2034, %v2073
    %v2090 = vsel %vm2051, %v2035, %v2074
    %v2091 = vsel %vm2052, %v2036, %v2075
    %v2092 = vsel %vm2053, %v2037, %v2076
    %v2093 = vsel %vm2054, %v2038, %v2077
    %2094 = vst [vmem:[%s6] sm:$0xff] %v2078
    %2095 = vst [vmem:[%s6 + $0x8] sm:$0xff] %v2079
    %2096 = vst [vmem:[%s6 + $0x10] sm:$0xff] %v2080
    %2097 = vst [vmem:[%s6 + $0x18] sm:$0xff] %v2081
    %2098 = vst [vmem:[%s6 + $0x20] sm:$0xff] %v2082
    %2099 = vst [vmem:[%s6 + $0x28] sm:$0xff] %v2083
    %2100 = vst [vmem:[%s6 + $0x30] sm:$0xff] %v2084
    %2101 = vst [vmem:[%s6 + $0x38] sm:$0xff] %v2085
    %2102 = vst [vmem:[%s6 + $0x40] sm:$0xff] %v2086
    %2103 = vst [vmem:[%s6 + $0x48] sm:$0xff] %v2087
    %2104 = vst [vmem:[%s6 + $0x50] sm:$0xff] %v2088
    %2105 = vst [vmem:[%s6 + $0x58] sm:$0xff] %v2089
    %2106 = vst [vmem:[%s6 + $0x60] sm:$0xff] %v2090
    %2107 = vst [vmem:[%s6 + $0x68] sm:$0xff] %v2091
    %2108 = vst [vmem:[%s6 + $0x70] sm:$0xff] %v2092
    %2109 = vst [vmem:[%s6 + $0x78] sm:$0xff] %v2093
    %v2110 = vld [vmem:[%s1433] sm:$0xff]
    %v2111 = vld [vmem:[%s1433 + $0x8] sm:$0xff]
    %v2112 = vld [vmem:[%s1433 + $0x10] sm:$0xff]
    %v2113 = vld [vmem:[%s1433 + $0x18] sm:$0xff]
    %v2114 = vld [vmem:[%s1433 + $0x20] sm:$0xff]
    %v2115 = vld [vmem:[%s1433 + $0x28] sm:$0xff]
    %v2116 = vld [vmem:[%s1433 + $0x30] sm:$0xff]
    %v2117 = vld [vmem:[%s1433 + $0x38] sm:$0xff]
    %v2118 = vld [vmem:[%s1433 + $0x40] sm:$0xff]
    %v2119 = vld [vmem:[%s1433 + $0x48] sm:$0xff]
    %v2120 = vld [vmem:[%s1433 + $0x50] sm:$0xff]
    %v2121 = vld [vmem:[%s1433 + $0x58] sm:$0xff]
    %v2122 = vld [vmem:[%s1433 + $0x60] sm:$0xff]
    %v2123 = vld [vmem:[%s1433 + $0x68] sm:$0xff]
    %v2124 = vld [vmem:[%s1433 + $0x70] sm:$0xff]
    %v2125 = vld [vmem:[%s1433 + $0x78] sm:$0xff]
    %v2126 = vmax.f32 %v2110, 1.0
    %v2127 = vmax.f32 %v2111, 1.0
    %v2128 = vmax.f32 %v2112, 1.0
    %v2129 = vmax.f32 %v2113, 1.0
    %v2130 = vmax.f32 %v2114, 1.0
    %v2131 = vmax.f32 %v2115, 1.0
    %v2132 = vmax.f32 %v2116, 1.0
    %v2133 = vmax.f32 %v2117, 1.0
    %v2134 = vmax.f32 %v2118, 1.0
    %v2135 = vmax.f32 %v2119, 1.0
    %v2136 = vmax.f32 %v2120, 1.0
    %v2137 = vmax.f32 %v2121, 1.0
    %v2138 = vmax.f32 %v2122, 1.0
    %v2139 = vmax.f32 %v2123, 1.0
    %v2140 = vmax.f32 %v2124, 1.0
    %v2141 = vmax.f32 %v2125, 1.0
    %v2142 = vrcp.pop %v2126
    %v2143 = vrcp.pop %v2127
    %v2144 = vrcp.pop %v2128
    %v2145 = vrcp.pop %v2129
    %v2146 = vrcp.pop %v2130
    %v2147 = vrcp.pop %v2131
    %v2148 = vrcp.pop %v2132
    %v2149 = vrcp.pop %v2133
    %v2150 = vrcp.pop %v2134
    %v2151 = vrcp.pop %v2135
    %v2152 = vrcp.pop %v2136
    %v2153 = vrcp.pop %v2137
    %v2154 = vrcp.pop %v2138
    %v2155 = vrcp.pop %v2139
    %v2156 = vrcp.pop %v2140
    %v2157 = vrcp.pop %v2141
    %v2158 = vld [vmem:[%s1530] sm:$0xff]
    %v2159 = vld [vmem:[%s1530 + $0x8] sm:$0xff]
    %v2160 = vld [vmem:[%s1530 + $0x10] sm:$0xff]
    %v2161 = vld [vmem:[%s1530 + $0x18] sm:$0xff]
    %v2162 = vld [vmem:[%s1530 + $0x20] sm:$0xff]
    %v2163 = vld [vmem:[%s1530 + $0x28] sm:$0xff]
    %v2164 = vld [vmem:[%s1530 + $0x30] sm:$0xff]
    %v2165 = vld [vmem:[%s1530 + $0x38] sm:$0xff]
    %v2166 = vld [vmem:[%s1530 + $0x40] sm:$0xff]
    %v2167 = vld [vmem:[%s1530 + $0x48] sm:$0xff]
    %v2168 = vld [vmem:[%s1530 + $0x50] sm:$0xff]
    %v2169 = vld [vmem:[%s1530 + $0x58] sm:$0xff]
    %v2170 = vld [vmem:[%s1530 + $0x60] sm:$0xff]
    %v2171 = vld [vmem:[%s1530 + $0x68] sm:$0xff]
    %v2172 = vld [vmem:[%s1530 + $0x70] sm:$0xff]
    %v2173 = vld [vmem:[%s1530 + $0x78] sm:$0xff]
    %2175 = vset.pattern.permute.xlu0 0
    %2176 = vperm.xlu0 %2175, %v2142
    %v2177 = vpop.permute.xlu0 %2176
    %2180 = vset.pattern.permute.xlu0 0
    %2181 = vperm.xlu0 %2180, %v2143
    %v2182 = vpop.permute.xlu0 %2181
    %2185 = vset.pattern.permute.xlu0 0
    %2186 = vperm.xlu0 %2185, %v2144
    %v2187 = vpop.permute.xlu0 %2186
    %2190 = vset.pattern.permute.xlu0 0
    %2191 = vperm.xlu0 %2190, %v2145
    %v2192 = vpop.permute.xlu0 %2191
    %2195 = vset.pattern.permute.xlu0 0
    %2196 = vperm.xlu0 %2195, %v2146
    %v2197 = vpop.permute.xlu0 %2196
    %2200 = vset.pattern.permute.xlu0 0
    %2201 = vperm.xlu0 %2200, %v2147
    %v2202 = vpop.permute.xlu0 %2201
    %2205 = vset.pattern.permute.xlu0 0
    %2206 = vperm.xlu0 %2205, %v2148
    %v2207 = vpop.permute.xlu0 %2206
    %2210 = vset.pattern.permute.xlu0 0
    %2211 = vperm.xlu0 %2210, %v2149
    %v2212 = vpop.permute.xlu0 %2211
    %2215 = vset.pattern.permute.xlu0 0
    %2216 = vperm.xlu0 %2215, %v2150
    %v2217 = vpop.permute.xlu0 %2216
    %2220 = vset.pattern.permute.xlu0 0
    %2221 = vperm.xlu0 %2220, %v2151
    %v2222 = vpop.permute.xlu0 %2221
    %2225 = vset.pattern.permute.xlu0 0
    %2226 = vperm.xlu0 %2225, %v2152
    %v2227 = vpop.permute.xlu0 %2226
    %2230 = vset.pattern.permute.xlu0 0
    %2231 = vperm.xlu0 %2230, %v2153
    %v2232 = vpop.permute.xlu0 %2231
    %2235 = vset.pattern.permute.xlu0 0
    %2236 = vperm.xlu0 %2235, %v2154
    %v2237 = vpop.permute.xlu0 %2236
    %2240 = vset.pattern.permute.xlu0 0
    %2241 = vperm.xlu0 %2240, %v2155
    %v2242 = vpop.permute.xlu0 %2241
    %2245 = vset.pattern.permute.xlu0 0
    %2246 = vperm.xlu0 %2245, %v2156
    %v2247 = vpop.permute.xlu0 %2246
    %2250 = vset.pattern.permute.xlu0 0
    %2251 = vperm.xlu0 %2250, %v2157
    %v2252 = vpop.permute.xlu0 %2251
    %v2254 = vmul.f32 %v2158, %v2177
    %v2255 = vmul.f32 %v2159, %v2182
    %v2256 = vmul.f32 %v2160, %v2187
    %v2257 = vmul.f32 %v2161, %v2192
    %v2258 = vmul.f32 %v2162, %v2197
    %v2259 = vmul.f32 %v2163, %v2202
    %v2260 = vmul.f32 %v2164, %v2207
    %v2261 = vmul.f32 %v2165, %v2212
    %v2262 = vmul.f32 %v2166, %v2217
    %v2263 = vmul.f32 %v2167, %v2222
    %v2264 = vmul.f32 %v2168, %v2227
    %v2265 = vmul.f32 %v2169, %v2232
    %v2266 = vmul.f32 %v2170, %v2237
    %v2267 = vmul.f32 %v2171, %v2242
    %v2268 = vmul.f32 %v2172, %v2247
    %v2269 = vmul.f32 %v2173, %v2252
    %s2270 = scalar_lea.vmem %s4, 1
    %v2271 = vld [vmem:[%s2270] sm:$0x1]
    %v2273 = vlaneseq
    %v2274 = vshrl.u32 %v2273, 7
    %v2275 = vsub.s32 0, %v2274
    %v2276 = vrot.slane %v2271, %v2275
    %v2278 = vadd.f32 %v2254, %v2276
    %v2279 = vadd.f32 %v2255, %v2276
    %v2280 = vadd.f32 %v2256, %v2276
    %v2281 = vadd.f32 %v2257, %v2276
    %v2282 = vadd.f32 %v2258, %v2276
    %v2283 = vadd.f32 %v2259, %v2276
    %v2284 = vadd.f32 %v2260, %v2276
    %v2285 = vadd.f32 %v2261, %v2276
    %v2286 = vadd.f32 %v2262, %v2276
    %v2287 = vadd.f32 %v2263, %v2276
    %v2288 = vadd.f32 %v2264, %v2276
    %v2289 = vadd.f32 %v2265, %v2276
    %v2290 = vadd.f32 %v2266, %v2276
    %v2291 = vadd.f32 %v2267, %v2276
    %v2292 = vadd.f32 %v2268, %v2276
    %v2293 = vadd.f32 %v2269, %v2276
    %vm2294 = vcmp.gt.f32.partialorder %v2278, 0.0
    %vm2295 = vcmp.gt.f32.partialorder %v2279, 0.0
    %vm2296 = vcmp.gt.f32.partialorder %v2280, 0.0
    %vm2297 = vcmp.gt.f32.partialorder %v2281, 0.0
    %vm2298 = vcmp.gt.f32.partialorder %v2282, 0.0
    %vm2299 = vcmp.gt.f32.partialorder %v2283, 0.0
    %vm2300 = vcmp.gt.f32.partialorder %v2284, 0.0
    %vm2301 = vcmp.gt.f32.partialorder %v2285, 0.0
    %vm2302 = vcmp.gt.f32.partialorder %v2286, 0.0
    %vm2303 = vcmp.gt.f32.partialorder %v2287, 0.0
    %vm2304 = vcmp.gt.f32.partialorder %v2288, 0.0
    %vm2305 = vcmp.gt.f32.partialorder %v2289, 0.0
    %vm2306 = vcmp.gt.f32.partialorder %v2290, 0.0
    %vm2307 = vcmp.gt.f32.partialorder %v2291, 0.0
    %vm2308 = vcmp.gt.f32.partialorder %v2292, 0.0
    %vm2309 = vcmp.gt.f32.partialorder %v2293, 0.0
    %s2310 = scalar_lea.vmem %s5, 1
    %v2311 = vld [vmem:[%s2310] sm:$0x1]
    %v2313 = vlaneseq
    %v2314 = vshrl.u32 %v2313, 7
    %v2315 = vsub.s32 0, %v2314
    %v2316 = vrot.slane %v2311, %v2315
    %v2318 = vmul.f32 %v2316, %v2278
    %v2319 = vmul.f32 %v2316, %v2279
    %v2320 = vmul.f32 %v2316, %v2280
    %v2321 = vmul.f32 %v2316, %v2281
    %v2322 = vmul.f32 %v2316, %v2282
    %v2323 = vmul.f32 %v2316, %v2283
    %v2324 = vmul.f32 %v2316, %v2284
    %v2325 = vmul.f32 %v2316, %v2285
    %v2326 = vmul.f32 %v2316, %v2286
    %v2327 = vmul.f32 %v2316, %v2287
    %v2328 = vmul.f32 %v2316, %v2288
    %v2329 = vmul.f32 %v2316, %v2289
    %v2330 = vmul.f32 %v2316, %v2290
    %v2331 = vmul.f32 %v2316, %v2291
    %v2332 = vmul.f32 %v2316, %v2292
    %v2333 = vmul.f32 %v2316, %v2293
    %v2334 = vsel %vm2294, %v2278, %v2318
    %v2335 = vsel %vm2295, %v2279, %v2319
    %v2336 = vsel %vm2296, %v2280, %v2320
    %v2337 = vsel %vm2297, %v2281, %v2321
    %v2338 = vsel %vm2298, %v2282, %v2322
    %v2339 = vsel %vm2299, %v2283, %v2323
    %v2340 = vsel %vm2300, %v2284, %v2324
    %v2341 = vsel %vm2301, %v2285, %v2325
    %v2342 = vsel %vm2302, %v2286, %v2326
    %v2343 = vsel %vm2303, %v2287, %v2327
    %v2344 = vsel %vm2304, %v2288, %v2328
    %v2345 = vsel %vm2305, %v2289, %v2329
    %v2346 = vsel %vm2306, %v2290, %v2330
    %v2347 = vsel %vm2307, %v2291, %v2331
    %v2348 = vsel %vm2308, %v2292, %v2332
    %v2349 = vsel %vm2309, %v2293, %v2333
    %s2350 = scalar_lea.vmem %s6, 128
    %2351 = vst [vmem:[%s2350] sm:$0xff] %v2334
    %2352 = vst [vmem:[%s2350 + $0x8] sm:$0xff] %v2335
    %2353 = vst [vmem:[%s2350 + $0x10] sm:$0xff] %v2336
    %2354 = vst [vmem:[%s2350 + $0x18] sm:$0xff] %v2337
    %2355 = vst [vmem:[%s2350 + $0x20] sm:$0xff] %v2338
    %2356 = vst [vmem:[%s2350 + $0x28] sm:$0xff] %v2339
    %2357 = vst [vmem:[%s2350 + $0x30] sm:$0xff] %v2340
    %2358 = vst [vmem:[%s2350 + $0x38] sm:$0xff] %v2341
    %2359 = vst [vmem:[%s2350 + $0x40] sm:$0xff] %v2342
    %2360 = vst [vmem:[%s2350 + $0x48] sm:$0xff] %v2343
    %2361 = vst [vmem:[%s2350 + $0x50] sm:$0xff] %v2344
    %2362 = vst [vmem:[%s2350 + $0x58] sm:$0xff] %v2345
    %2363 = vst [vmem:[%s2350 + $0x60] sm:$0xff] %v2346
    %2364 = vst [vmem:[%s2350 + $0x68] sm:$0xff] %v2347
    %2365 = vst [vmem:[%s2350 + $0x70] sm:$0xff] %v2348
    %2366 = vst [vmem:[%s2350 + $0x78] sm:$0xff] %v2349
  $region33: #{lant_gat_forward.3} parent=0 // pred_fallthru
    _
  // Predicated region
  $region34: #{lant_gat_forward.3} parent=0 // pred_check
    _
  $region35: #{lant_gat_forward.3} parent=0 // pred_check_branch
    %2368 = sbr.rel (0) target = $region37
  $region36: #{lant_gat_forward.3} parent=0 // pred_region
    _
  $region37: #{lant_gat_forward.3} parent=0 // pred_fallthru
    _
  // Predicated region
  $region38: #{lant_gat_forward.3} parent=0 // pred_check
    _
  $region39: #{lant_gat_forward.3} parent=0 // pred_check_branch
    %2370 = sbr.rel (0) target = $region41
  $region40: #{lant_gat_forward.3} parent=0 // pred_region
    _
  $region41: #{lant_gat_forward.3} parent=0 // pred_fallthru
    _

</llo_original>
